<compile_context>
chip_gen: v7x
topology: tpu7x:2x2x1
jax: 0.10.0
libtpu: 0.0.40
codegen_flags: <defaults>
</compile_context>

<pallas_src>
import jax
import jax.numpy as jnp
from jax.experimental import pallas as pl
from jax.experimental.pallas import tpu as pltpu

latent_dim = 100
num_classes = 5
sequence_length = 8

BN_EPS = 0.8       # nn.BatchNorm1d(N, 0.8) -> eps=0.8 (second positional arg)
IN_PAD = 128       # layer-1 K padded 105 -> 128: noise lanes 0..99, one-hot lanes 100..104
OUT_PAD = 128      # layer-4 N padded 8 -> 128 for lane-dense stores; sliced in wrapper


def _bn_fused(x, gamma, beta):
    """Training-mode BatchNorm1d (biased variance, eps=0.8) with fused scale/shift.

    x: (B, N) f32, gamma/beta: (1, N) f32.
    Column moment sums run on the MXU as (1,B)x(B,N) f32 matmuls (frees VPU/XLU slots
    on v6e/v7x where vector units are the binding slot at large batch).  Single-pass
    variance (E[x^2]-mean^2) is safe here because eps=0.8 dominates any cancellation.
    """
    b = x.shape[0]
    inv_b = jnp.float32(1.0 / b)
    ones_row = jnp.ones((1, b), jnp.float32)
    dims = (((1,), (0,)), ((), ()))
    mean = jax.lax.dot_general(ones_row, x, dims,
                               preferred_element_type=jnp.float32) * inv_b
    mean_sq = jax.lax.dot_general(ones_row, x * x, dims,
                                  preferred_element_type=jnp.float32) * inv_b
    var = mean_sq - mean * mean                     # biased variance (PyTorch training mode)
    scale = gamma * jax.lax.rsqrt(var + BN_EPS)     # rsqrt -> EUP slot
    shift = beta - mean * scale
    return x * scale + shift


def generator_kernel(x_ref,
                     w1_ref, b1_ref,
                     w2_ref, g2_ref, be2_ref,
                     w3_ref, g3_ref, be3_ref,
                     w4_ref, b4_ref,
                     out_ref):
    # ---- Layer 1: fused Linear(105,128) (embedding folded into rows 100..104) + ReLU
    h1 = jnp.dot(x_ref[...], w1_ref[...], preferred_element_type=jnp.float32)
    h1 = jnp.maximum(h1 + b1_ref[...], 0.0)

    # ---- Layer 2: Linear(128,256) + BatchNorm1d(256, eps=0.8) + ReLU ----------------
    # Linear bias omitted: a per-feature bias feeding training-mode BN is exactly
    # cancelled by the mean subtraction.
    h2 = jnp.dot(h1.astype(jnp.bfloat16), w2_ref[...], preferred_element_type=jnp.float32)
    h2 = jnp.maximum(_bn_fused(h2, g2_ref[...], be2_ref[...]), 0.0)

    # ---- Layer 3: Linear(256,512) + BatchNorm1d(512, eps=0.8) + ReLU ----------------
    h3 = jnp.dot(h2.astype(jnp.bfloat16), w3_ref[...], preferred_element_type=jnp.float32)
    h3 = jnp.maximum(_bn_fused(h3, g3_ref[...], be3_ref[...]), 0.0)

    # ---- Layer 4: Linear(512, 8) + Tanh, padded to 128 lanes (tanh(0)=0 in pad) -----
    h4 = jnp.dot(h3.astype(jnp.bfloat16), w4_ref[...], preferred_element_type=jnp.float32)
    out_ref[...] = jnp.tanh(h4 + b4_ref[...])


def prepare_generator_params(params):
    """One-time prep: fold the embedding table into W1, merge into a single padded
    (128,128) layer-1 weight, zero-pad W4/b4 to 128 lanes, cast weights to bf16,
    reshape biases/gamma/beta to (1, N) f32 rows.  b2/b3 are dropped (cancelled by BN)."""
    w1 = params["w1"]                                              # (105, 128) f32
    emb_w1 = jnp.dot(params["emb"], w1[:num_classes],
                     precision=jax.lax.Precision.HIGHEST)          # (5, 128)
    w1_merged = (jnp.zeros((IN_PAD, 128), jnp.float32)
                 .at[:latent_dim].set(w1[num_classes:])            # noise rows -> lanes 0..99
                 .at[latent_dim:latent_dim + num_classes].set(emb_w1))  # one-hot rows

    w4_pad = jnp.zeros((512, OUT_PAD), jnp.float32).at[:, :sequence_length].set(params["w4"])
    b4_pad = jnp.zeros((1, OUT_PAD), jnp.float32).at[:, :sequence_length].set(params["b4"])

    def row(v):
        return v.reshape(1, -1).astype(jnp.float32)

    return {
        "w1": w1_merged.astype(jnp.bfloat16), "b1": row(params["b1"]),
        "w2": params["w2"].astype(jnp.bfloat16),
        "g2": row(params["g2"]), "be2": row(params["be2"]),
        "w3": params["w3"].astype(jnp.bfloat16),
        "g3": row(params["g3"]), "be3": row(params["be3"]),
        "w4": w4_pad.astype(jnp.bfloat16), "b4": b4_pad,
    }


@jax.jit
def generator_forward(noise, labels, kp):
    """noise: (B, latent_dim) f32, labels: (B,) int32 in [0, num_classes), kp: prepared params.

    Whole batch is processed in a single kernel invocation (exact BN statistics for any
    B).  Throughput improves with larger B (target >= 512 per call in production);
    best alignment with B a multiple of 8.
    """
    B = noise.shape[0]
    # One-hot built in the wrapper and merged into the padded input's lanes 100..104,
    # so the kernel sees a single lane-dense (B, 128) bf16 operand.
    one_hot = (labels.reshape(B, 1) ==
               jnp.arange(num_classes, dtype=labels.dtype)[None, :]).astype(noise.dtype)
    x = jnp.concatenate([noise, one_hot], axis=-1)                 # (B, 105)
    x = jnp.pad(x, ((0, 0), (0, IN_PAD - latent_dim - num_classes))).astype(jnp.bfloat16)

    operands = (x,
                kp["w1"], kp["b1"],
                kp["w2"], kp["g2"], kp["be2"],
                kp["w3"], kp["g3"], kp["be3"],
                kp["w4"], kp["b4"])
    vmem = pl.BlockSpec(memory_space=pltpu.MemorySpace.VMEM)
    out_pad = pl.pallas_call(
        generator_kernel,
        out_shape=jax.ShapeDtypeStruct((B, OUT_PAD), jnp.float32),
        in_specs=[vmem] * len(operands),
        out_specs=vmem,
        compiler_params=pltpu.CompilerParams(vmem_limit_bytes=32 * 1024 * 1024),
    )(*operands)
    return out_pad[:, :sequence_length]


def init_params(key):
    """Deterministic PyTorch-style init (uniform +-1/sqrt(fan_in)), f32 master copy."""
    keys = jax.random.split(key, 10)

    def linear(kw, kb, fan_in, fan_out):
        bound = 1.0 / jnp.sqrt(fan_in)
        w = jax.random.uniform(kw, (fan_in, fan_out), jnp.float32, -bound, bound)
        b = jax.random.uniform(kb, (fan_out,), jnp.float32, -bound, bound)
        return w, b

    in_dim = latent_dim + num_classes
    w1, b1 = linear(keys[0], keys[1], in_dim, 128)
    w2, b2 = linear(keys[2], keys[3], 128, 256)
    w3, b3 = linear(keys[4], keys[5], 256, 512)
    w4, b4 = linear(keys[6], keys[7], 512, sequence_length)
    emb = jax.random.normal(keys[8], (num_classes, num_classes), jnp.float32)
    return {
        "emb": emb,
        "w1": w1, "b1": b1,
        "w2": w2, "b2": b2,
        "g2": jnp.ones((256,), jnp.float32), "be2": jnp.zeros((256,), jnp.float32),
        "w3": w3, "b3": b3,
        "g3": jnp.ones((512,), jnp.float32), "be3": jnp.zeros((512,), jnp.float32),
        "w4": w4, "b4": b4,
    }


# ------------------------------ pure-JAX references --------------------------------- #

def _bn_ref(x, gamma, beta, eps):
    mean = jnp.mean(x, axis=0, keepdims=True)
    var = jnp.mean((x - mean) ** 2, axis=0, keepdims=True)
    return (x - mean) * jax.lax.rsqrt(var + eps) * gamma[None, :] + beta[None, :]


def generator_reference_f32(noise, labels, params):
    """Exact f32 mirror of the PyTorch forward (including the b2/b3 biases)."""
    emb = params["emb"][labels]
    x = jnp.concatenate([emb, noise], -1)
    h = jnp.maximum(x @ params["w1"] + params["b1"], 0.0)
    h = _bn_ref(h @ params["w2"] + params["b2"], params["g2"], params["be2"], BN_EPS)
    h = jnp.maximum(h, 0.0)
    h = _bn_ref(h @ params["w3"] + params["b3"], params["g3"], params["be3"], BN_EPS)
    h = jnp.maximum(h, 0.0)
    return jnp.tanh(h @ params["w4"] + params["b4"])


def generator_reference_bf16(noise, labels, params):
    """Same forward with bf16 matmul inputs / f32 accumulation (mirrors kernel precision)."""
    def bdot(a, b):
        return jnp.dot(a.astype(jnp.bfloat16), b.astype(jnp.bfloat16),
                       preferred_element_type=jnp.float32)

    emb = params["emb"][labels]
    x = jnp.concatenate([emb, noise], -1)
    h = jnp.maximum(bdot(x, params["w1"]) + params["b1"], 0.0)
    h = _bn_ref(bdot(h, params["w2"]) + params["b2"], params["g2"], params["be2"], BN_EPS)
    h = jnp.maximum(h, 0.0)
    h = _bn_ref(bdot(h, params["w3"]) + params["b3"], params["g3"], params["be3"], BN_EPS)
    h = jnp.maximum(h, 0.0)
    return jnp.tanh(bdot(h, params["w4"]) + params["b4"])


if __name__ == "__main__":
    key = jax.random.PRNGKey(0)
    k_params, k_noise, k_labels = jax.random.split(key, 3)

    B = 256  # whole batch in one call; multiple of 8 sublanes (larger B -> better MXU use)
    params = init_params(k_params)
    kparams = prepare_generator_params(params)   # fold / pad / bf16-cast weights once

    noise = jax.random.normal(k_noise, (B, latent_dim), jnp.float32)
    labels = jax.random.randint(k_labels, (B,), 0, num_classes, jnp.int32)

    out = jax.block_until_ready(generator_forward(noise, labels, kparams))
    assert out.shape == (B, sequence_length)

    ref_bf16 = generator_reference_bf16(noise, labels, params)
    ref_f32 = generator_reference_f32(noise, labels, params)
    # bf16 matmuls => deliberately relaxed tolerances vs the f32 PyTorch-semantics ref.
    assert jnp.allclose(out, ref_bf16, atol=2e-2), "mismatch vs bf16-precision reference"
    assert jnp.allclose(out, ref_f32, atol=5e-2), "mismatch vs exact f32 reference"

    print("KERNEL_OK")
</pallas_src>

<mosaic_0001>
module attributes {stable_mosaic.version = 11 : i64} {
  func.func @generator_kernel(%arg0: memref<256x128xbf16, #tpu.memory_space<vmem>>, %arg1: memref<128x128xbf16, #tpu.memory_space<vmem>>, %arg2: memref<1x128xf32, #tpu.memory_space<vmem>>, %arg3: memref<128x256xbf16, #tpu.memory_space<vmem>>, %arg4: memref<1x256xf32, #tpu.memory_space<vmem>>, %arg5: memref<1x256xf32, #tpu.memory_space<vmem>>, %arg6: memref<256x512xbf16, #tpu.memory_space<vmem>>, %arg7: memref<1x512xf32, #tpu.memory_space<vmem>>, %arg8: memref<1x512xf32, #tpu.memory_space<vmem>>, %arg9: memref<512x128xbf16, #tpu.memory_space<vmem>>, %arg10: memref<1x128xf32, #tpu.memory_space<vmem>>, %arg11: memref<256x128xf32, #tpu.memory_space<vmem>>) attributes {dimension_semantics = [], scalar_prefetch = 0 : i64, scratch_operands = 0 : i64, tpu.core_type = #tpu.core_type<tc>} {
    %c0 = arith.constant 0 : index
    %c0_0 = arith.constant 0 : index
    %0 = vector.load %arg0[%c0, %c0_0] : memref<256x128xbf16, #tpu.memory_space<vmem>>, vector<256x128xbf16>
    %c0_1 = arith.constant 0 : index
    %c0_2 = arith.constant 0 : index
    %1 = vector.load %arg1[%c0_1, %c0_2] : memref<128x128xbf16, #tpu.memory_space<vmem>>, vector<128x128xbf16>
    %cst = arith.constant dense<0.000000e+00> : vector<256x128xf32>
    %2 = tpu.matmul %0, %1, %cst {dimension_numbers = #tpu.dot_dimension_numbers<[1], [0], [0], [1], [0, 0, 1, 1], [], []>} : vector<256x128xbf16>, vector<128x128xbf16>, vector<256x128xf32> -> vector<256x128xf32>
    %c0_3 = arith.constant 0 : index
    %c0_4 = arith.constant 0 : index
    %3 = vector.load %arg2[%c0_3, %c0_4] : memref<1x128xf32, #tpu.memory_space<vmem>>, vector<1x128xf32>
    %4 = vector.broadcast %3 : vector<1x128xf32> to vector<256x128xf32>
    %5 = arith.addf %2, %4 : vector<256x128xf32>
    %cst_5 = arith.constant 0.000000e+00 : f32
    %6 = vector.broadcast %cst_5 : f32 to vector<256x128xf32>
    %7 = arith.maximumf %5, %6 : vector<256x128xf32>
    %8 = arith.truncf %7 : vector<256x128xf32> to vector<256x128xbf16>
    %c0_6 = arith.constant 0 : index
    %c0_7 = arith.constant 0 : index
    %9 = vector.load %arg3[%c0_6, %c0_7] : memref<128x256xbf16, #tpu.memory_space<vmem>>, vector<128x256xbf16>
    %cst_8 = arith.constant dense<0.000000e+00> : vector<256x256xf32>
    %10 = tpu.matmul %8, %9, %cst_8 {dimension_numbers = #tpu.dot_dimension_numbers<[1], [0], [0], [1], [0, 0, 1, 1], [], []>} : vector<256x128xbf16>, vector<128x256xbf16>, vector<256x256xf32> -> vector<256x256xf32>
    %c0_9 = arith.constant 0 : index
    %c0_10 = arith.constant 0 : index
    %11 = vector.load %arg4[%c0_9, %c0_10] : memref<1x256xf32, #tpu.memory_space<vmem>>, vector<1x256xf32>
    %c0_11 = arith.constant 0 : index
    %c0_12 = arith.constant 0 : index
    %12 = vector.load %arg5[%c0_11, %c0_12] : memref<1x256xf32, #tpu.memory_space<vmem>>, vector<1x256xf32>
    %cst_13 = arith.constant 1.000000e+00 : f32
    %13 = vector.broadcast %cst_13 : f32 to vector<1x256xf32>
    %cst_14 = arith.constant dense<0.000000e+00> : vector<1x256xf32>
    %14 = tpu.matmul %13, %10, %cst_14 {dimension_numbers = #tpu.dot_dimension_numbers<[1], [0], [0], [1], [0, 0, 1, 1], [], []>} : vector<1x256xf32>, vector<256x256xf32>, vector<1x256xf32> -> vector<1x256xf32>
    %cst_15 = arith.constant 3.906250e-03 : f32
    %15 = vector.broadcast %cst_15 : f32 to vector<1x256xf32>
    %16 = arith.mulf %14, %15 : vector<1x256xf32>
    %17 = arith.mulf %10, %10 : vector<256x256xf32>
    %cst_16 = arith.constant dense<0.000000e+00> : vector<1x256xf32>
    %18 = tpu.matmul %13, %17, %cst_16 {dimension_numbers = #tpu.dot_dimension_numbers<[1], [0], [0], [1], [0, 0, 1, 1], [], []>} : vector<1x256xf32>, vector<256x256xf32>, vector<1x256xf32> -> vector<1x256xf32>
    %cst_17 = arith.constant 3.906250e-03 : f32
    %19 = vector.broadcast %cst_17 : f32 to vector<1x256xf32>
    %20 = arith.mulf %18, %19 : vector<1x256xf32>
    %21 = arith.mulf %16, %16 : vector<1x256xf32>
    %22 = arith.subf %20, %21 : vector<1x256xf32>
    %cst_18 = arith.constant 8.000000e-01 : f32
    %23 = vector.broadcast %cst_18 : f32 to vector<1x256xf32>
    %24 = arith.addf %22, %23 : vector<1x256xf32>
    %25 = math.rsqrt %24 : vector<1x256xf32>
    %26 = arith.mulf %11, %25 : vector<1x256xf32>
    %27 = arith.mulf %16, %26 : vector<1x256xf32>
    %28 = arith.subf %12, %27 : vector<1x256xf32>
    %29 = vector.broadcast %26 : vector<1x256xf32> to vector<256x256xf32>
    %30 = arith.mulf %10, %29 : vector<256x256xf32>
    %31 = vector.broadcast %28 : vector<1x256xf32> to vector<256x256xf32>
    %32 = arith.addf %30, %31 : vector<256x256xf32>
    %cst_19 = arith.constant 0.000000e+00 : f32
    %33 = vector.broadcast %cst_19 : f32 to vector<256x256xf32>
    %34 = arith.maximumf %32, %33 : vector<256x256xf32>
    %35 = arith.truncf %34 : vector<256x256xf32> to vector<256x256xbf16>
    %c0_20 = arith.constant 0 : index
    %c0_21 = arith.constant 0 : index
    %36 = vector.load %arg6[%c0_20, %c0_21] : memref<256x512xbf16, #tpu.memory_space<vmem>>, vector<256x512xbf16>
    %cst_22 = arith.constant dense<0.000000e+00> : vector<256x512xf32>
    %37 = tpu.matmul %35, %36, %cst_22 {dimension_numbers = #tpu.dot_dimension_numbers<[1], [0], [0], [1], [0, 0, 1, 1], [], []>} : vector<256x256xbf16>, vector<256x512xbf16>, vector<256x512xf32> -> vector<256x512xf32>
    %c0_23 = arith.constant 0 : index
    %c0_24 = arith.constant 0 : index
    %38 = vector.load %arg7[%c0_23, %c0_24] : memref<1x512xf32, #tpu.memory_space<vmem>>, vector<1x512xf32>
    %c0_25 = arith.constant 0 : index
    %c0_26 = arith.constant 0 : index
    %39 = vector.load %arg8[%c0_25, %c0_26] : memref<1x512xf32, #tpu.memory_space<vmem>>, vector<1x512xf32>
    %cst_27 = arith.constant 1.000000e+00 : f32
    %40 = vector.broadcast %cst_27 : f32 to vector<1x256xf32>
    %cst_28 = arith.constant dense<0.000000e+00> : vector<1x512xf32>
    %41 = tpu.matmul %40, %37, %cst_28 {dimension_numbers = #tpu.dot_dimension_numbers<[1], [0], [0], [1], [0, 0, 1, 1], [], []>} : vector<1x256xf32>, vector<256x512xf32>, vector<1x512xf32> -> vector<1x512xf32>
    %cst_29 = arith.constant 3.906250e-03 : f32
    %42 = vector.broadcast %cst_29 : f32 to vector<1x512xf32>
    %43 = arith.mulf %41, %42 : vector<1x512xf32>
    %44 = arith.mulf %37, %37 : vector<256x512xf32>
    %cst_30 = arith.constant dense<0.000000e+00> : vector<1x512xf32>
    %45 = tpu.matmul %40, %44, %cst_30 {dimension_numbers = #tpu.dot_dimension_numbers<[1], [0], [0], [1], [0, 0, 1, 1], [], []>} : vector<1x256xf32>, vector<256x512xf32>, vector<1x512xf32> -> vector<1x512xf32>
    %cst_31 = arith.constant 3.906250e-03 : f32
    %46 = vector.broadcast %cst_31 : f32 to vector<1x512xf32>
    %47 = arith.mulf %45, %46 : vector<1x512xf32>
    %48 = arith.mulf %43, %43 : vector<1x512xf32>
    %49 = arith.subf %47, %48 : vector<1x512xf32>
    %cst_32 = arith.constant 8.000000e-01 : f32
    %50 = vector.broadcast %cst_32 : f32 to vector<1x512xf32>
    %51 = arith.addf %49, %50 : vector<1x512xf32>
    %52 = math.rsqrt %51 : vector<1x512xf32>
    %53 = arith.mulf %38, %52 : vector<1x512xf32>
    %54 = arith.mulf %43, %53 : vector<1x512xf32>
    %55 = arith.subf %39, %54 : vector<1x512xf32>
    %56 = vector.broadcast %53 : vector<1x512xf32> to vector<256x512xf32>
    %57 = arith.mulf %37, %56 : vector<256x512xf32>
    %58 = vector.broadcast %55 : vector<1x512xf32> to vector<256x512xf32>
    %59 = arith.addf %57, %58 : vector<256x512xf32>
    %cst_33 = arith.constant 0.000000e+00 : f32
    %60 = vector.broadcast %cst_33 : f32 to vector<256x512xf32>
    %61 = arith.maximumf %59, %60 : vector<256x512xf32>
    %62 = arith.truncf %61 : vector<256x512xf32> to vector<256x512xbf16>
    %c0_34 = arith.constant 0 : index
    %c0_35 = arith.constant 0 : index
    %63 = vector.load %arg9[%c0_34, %c0_35] : memref<512x128xbf16, #tpu.memory_space<vmem>>, vector<512x128xbf16>
    %cst_36 = arith.constant dense<0.000000e+00> : vector<256x128xf32>
    %64 = tpu.matmul %62, %63, %cst_36 {dimension_numbers = #tpu.dot_dimension_numbers<[1], [0], [0], [1], [0, 0, 1, 1], [], []>} : vector<256x512xbf16>, vector<512x128xbf16>, vector<256x128xf32> -> vector<256x128xf32>
    %c0_37 = arith.constant 0 : index
    %c0_38 = arith.constant 0 : index
    %65 = vector.load %arg10[%c0_37, %c0_38] : memref<1x128xf32, #tpu.memory_space<vmem>>, vector<1x128xf32>
    %66 = vector.broadcast %65 : vector<1x128xf32> to vector<256x128xf32>
    %67 = arith.addf %64, %66 : vector<256x128xf32>
    %68 = math.tanh %67 : vector<256x128xf32>
    %c0_39 = arith.constant 0 : index
    %c0_40 = arith.constant 0 : index
    %69 = vector.load %arg11[%c0_39, %c0_40] : memref<256x128xf32, #tpu.memory_space<vmem>>, vector<256x128xf32>
    tpu.vector_store %arg11[%c0_39, %c0_40], %68 {strides = array<i32>} : memref<256x128xf32, #tpu.memory_space<vmem>>, vector<256x128xf32>,
    return
  }
}

</mosaic_0001>

<llo_original>
// kernel: generator_forward.1
$region0: #{generator_forward.1}
  #allocation0 [shape = 'u32[]', space=smem, size = 0x4, offset = 0x4, fixed_abs, tag = 'smem constant byte address 0x4 - core index']
  #allocation1 [shape = 'u32[144,128]{1,0:T(1,128)}', space=vmem, size = 0x12000, scoped, tag = 'internal scratch']
  %s0 = inlined_call_operand.vmem [shape: bf16[256,128], index: 0, kind: input, shape index: {}]
  %s1 = inlined_call_operand.vmem [shape: bf16[128,128], index: 1, kind: input, shape index: {}]
  %s2 = inlined_call_operand.vmem [shape: f32[1,128], index: 2, kind: input, shape index: {}]
  %s3 = inlined_call_operand.vmem [shape: bf16[128,256], index: 3, kind: input, shape index: {}]
  %s4 = inlined_call_operand.vmem [shape: f32[1,256], index: 4, kind: input, shape index: {}]
  %s5 = inlined_call_operand.vmem [shape: f32[1,256], index: 5, kind: input, shape index: {}]
  %s6 = inlined_call_operand.vmem [shape: bf16[256,512], index: 6, kind: input, shape index: {}]
  %s7 = inlined_call_operand.vmem [shape: f32[1,512], index: 7, kind: input, shape index: {}]
  %s8 = inlined_call_operand.vmem [shape: f32[1,512], index: 8, kind: input, shape index: {}]
  %s9 = inlined_call_operand.vmem [shape: bf16[512,128], index: 9, kind: input, shape index: {}]
  %s10 = inlined_call_operand.vmem [shape: f32[1,128], index: 10, kind: input, shape index: {}]
  %s11 = inlined_call_operand.vmem [shape: f32[256,128], index: 11, kind: output, shape index: {}]
  %s12 = sld [smem:[#allocation0]]
  $region54: #{generator_forward.1} parent=0
    _
  %s14 = ssub.s32 1, %s12
  %s15 = scalar_select 0, %s14, %s12
  // Predicated region
  $region2: #{generator_forward.1} parent=0 // pred_check
    _
  $region3: #{generator_forward.1} parent=0 // pred_check_branch
    %17 = sbr.rel (0) target = $region5
  $region4: #{generator_forward.1} parent=0 // pred_region
    _
  $region5: #{generator_forward.1} parent=0 // pred_fallthru
    _
  // Predicated region
  $region6: #{generator_forward.1} parent=0 // pred_check
    _
  $region7: #{generator_forward.1} parent=0 // pred_check_branch
    %19 = sbr.rel (0) target = $region9
  $region8: #{generator_forward.1} parent=0 // pred_region
    _
  $region9: #{generator_forward.1} parent=0 // pred_fallthru
    _
  // Predicated region
  $region10: #{generator_forward.1} parent=0 // pred_check
    _
  $region11: #{generator_forward.1} parent=0 // pred_check_branch
    %21 = sbr.rel (0) target = $region13
  $region12: #{generator_forward.1} parent=0 // pred_region
    _
  $region13: #{generator_forward.1} parent=0 // pred_fallthru
    _
  // Predicated region
  $region14: #{generator_forward.1} parent=0 // pred_check
    _
  $region15: #{generator_forward.1} parent=0 // pred_check_branch
    %23 = sbr.rel (0) target = $region17
  $region16: #{generator_forward.1} parent=0 // pred_region
    _
  $region17: #{generator_forward.1} parent=0 // pred_fallthru
    _
  // Predicated region
  $region18: #{generator_forward.1} parent=0 // pred_check
    _
  $region19: #{generator_forward.1} parent=0 // pred_check_branch
    %25 = sbr.rel (0) target = $region21
  $region20: #{generator_forward.1} parent=0 // pred_region
    _
  $region21: #{generator_forward.1} parent=0 // pred_fallthru
    _
  // Predicated region
  $region22: #{generator_forward.1} parent=0 // pred_check
    _
  $region23: #{generator_forward.1} parent=0 // pred_check_branch
    %27 = sbr.rel (0) target = $region25
  $region24: #{generator_forward.1} parent=0 // pred_region
    _
  $region25: #{generator_forward.1} parent=0 // pred_fallthru
    _
  // Predicated region
  $region26: #{generator_forward.1} parent=0 // pred_check
    _
  $region27: #{generator_forward.1} parent=0 // pred_check_branch
    %29 = sbr.rel (0) target = $region29
  $region28: #{generator_forward.1} parent=0 // pred_region
    _
  $region29: #{generator_forward.1} parent=0 // pred_fallthru
    _
  // Predicated region
  $region30: #{generator_forward.1} parent=0 // pred_check
    _
  $region31: #{generator_forward.1} parent=0 // pred_check_branch
    %31 = sbr.rel (0) target = $region33
  $region32: #{generator_forward.1} parent=0 // pred_region
    _
  $region33: #{generator_forward.1} parent=0 // pred_fallthru
    _
  // Predicated region
  $region34: #{generator_forward.1} parent=0 // pred_check
    _
  $region35: #{generator_forward.1} parent=0 // pred_check_branch
    %33 = sbr.rel (0) target = $region37
  $region36: #{generator_forward.1} parent=0 // pred_region
    _
  $region37: #{generator_forward.1} parent=0 // pred_fallthru
    _
  // Predicated region
  $region38: #{generator_forward.1} parent=0 // pred_check
    _
  $region39: #{generator_forward.1} parent=0 // pred_check_branch
    %35 = sbr.rel (0) target = $region41
  $region40: #{generator_forward.1} parent=0 // pred_region
    _
  $region41: #{generator_forward.1} parent=0 // pred_fallthru
    _
  // Predicated region
  $region42: #{generator_forward.1} parent=0 // pred_check
    _
  $region43: #{generator_forward.1} parent=0 // pred_check_branch
    %37 = sbr.rel (0) target = $region45
  $region44: #{generator_forward.1} parent=0 // pred_region
    _
  $region45: #{generator_forward.1} parent=0 // pred_fallthru
    _
  %v39 = vld [vmem:[%s0] sm:$0xf]
  %v40 = vld [vmem:[%s0 + $0x4] sm:$0xf]
  %v41 = vld [vmem:[%s0 + $0x8] sm:$0xf]
  %v42 = vld [vmem:[%s0 + $0xc] sm:$0xf]
  %v43 = vld [vmem:[%s0 + $0x10] sm:$0xf]
  %v44 = vld [vmem:[%s0 + $0x14] sm:$0xf]
  %v45 = vld [vmem:[%s0 + $0x18] sm:$0xf]
  %v46 = vld [vmem:[%s0 + $0x1c] sm:$0xf]
  %v47 = vld [vmem:[%s0 + $0x20] sm:$0xf]
  %v48 = vld [vmem:[%s0 + $0x24] sm:$0xf]
  %v49 = vld [vmem:[%s0 + $0x28] sm:$0xf]
  %v50 = vld [vmem:[%s0 + $0x2c] sm:$0xf]
  %v51 = vld [vmem:[%s0 + $0x30] sm:$0xf]
  %v52 = vld [vmem:[%s0 + $0x34] sm:$0xf]
  %v53 = vld [vmem:[%s0 + $0x38] sm:$0xf]
  %v54 = vld [vmem:[%s0 + $0x3c] sm:$0xf]
  %v55 = vld [vmem:[%s0 + $0x40] sm:$0xf]
  %v56 = vld [vmem:[%s0 + $0x44] sm:$0xf]
  %v57 = vld [vmem:[%s0 + $0x48] sm:$0xf]
  %v58 = vld [vmem:[%s0 + $0x4c] sm:$0xf]
  %v59 = vld [vmem:[%s0 + $0x50] sm:$0xf]
  %v60 = vld [vmem:[%s0 + $0x54] sm:$0xf]
  %v61 = vld [vmem:[%s0 + $0x58] sm:$0xf]
  %v62 = vld [vmem:[%s0 + $0x5c] sm:$0xf]
  %v63 = vld [vmem:[%s0 + $0x60] sm:$0xf]
  %v64 = vld [vmem:[%s0 + $0x64] sm:$0xf]
  %v65 = vld [vmem:[%s0 + $0x68] sm:$0xf]
  %v66 = vld [vmem:[%s0 + $0x6c] sm:$0xf]
  %v67 = vld [vmem:[%s0 + $0x70] sm:$0xf]
  %v68 = vld [vmem:[%s0 + $0x74] sm:$0xf]
  %v69 = vld [vmem:[%s0 + $0x78] sm:$0xf]
  %v70 = vld [vmem:[%s0 + $0x7c] sm:$0xf]
  %v71 = vld [vmem:[%s1] sm:$0xf]
  %v72 = vld [vmem:[%s1 + $0x4] sm:$0xf]
  %v73 = vld [vmem:[%s1 + $0x8] sm:$0xf]
  %v74 = vld [vmem:[%s1 + $0xc] sm:$0xf]
  %v75 = vld [vmem:[%s1 + $0x10] sm:$0xf]
  %v76 = vld [vmem:[%s1 + $0x14] sm:$0xf]
  %v77 = vld [vmem:[%s1 + $0x18] sm:$0xf]
  %v78 = vld [vmem:[%s1 + $0x1c] sm:$0xf]
  %v79 = vld [vmem:[%s1 + $0x20] sm:$0xf]
  %v80 = vld [vmem:[%s1 + $0x24] sm:$0xf]
  %v81 = vld [vmem:[%s1 + $0x28] sm:$0xf]
  %v82 = vld [vmem:[%s1 + $0x2c] sm:$0xf]
  %v83 = vld [vmem:[%s1 + $0x30] sm:$0xf]
  %v84 = vld [vmem:[%s1 + $0x34] sm:$0xf]
  %v85 = vld [vmem:[%s1 + $0x38] sm:$0xf]
  %v86 = vld [vmem:[%s1 + $0x3c] sm:$0xf]
  %v87 = vld [vmem:[%s2] sm:$0x1]
  %v89 = vlaneseq
  %v90 = vshrl.u32 %v89, 7
  %v91 = vsub.s32 0, %v90
  %v92 = vrot.slane %v87, %v91
  %v126 = vunpack.c.l.b16 %v39
  %v127 = vunpack.c.l.b16 %v40
  %v128 = vunpack.c.l.b16 %v41
  %v129 = vunpack.c.l.b16 %v42
  %v130 = vunpack.c.l.b16 %v43
  %v131 = vunpack.c.l.b16 %v44
  %v132 = vunpack.c.l.b16 %v45
  %v133 = vunpack.c.l.b16 %v46
  %v134 = vunpack.c.l.b16 %v47
  %v135 = vunpack.c.l.b16 %v48
  %v136 = vunpack.c.l.b16 %v49
  %v137 = vunpack.c.l.b16 %v50
  %v138 = vunpack.c.l.b16 %v51
  %v139 = vunpack.c.l.b16 %v52
  %v140 = vunpack.c.l.b16 %v53
  %v141 = vunpack.c.l.b16 %v54
  %v142 = vunpack.c.l.b16 %v55
  %v143 = vunpack.c.l.b16 %v56
  %v144 = vunpack.c.l.b16 %v57
  %v145 = vunpack.c.l.b16 %v58
  %v146 = vunpack.c.l.b16 %v59
  %v147 = vunpack.c.l.b16 %v60
  %v148 = vunpack.c.l.b16 %v61
  %v149 = vunpack.c.l.b16 %v62
  %v150 = vunpack.c.l.b16 %v63
  %v151 = vunpack.c.l.b16 %v64
  %v152 = vunpack.c.l.b16 %v65
  %v153 = vunpack.c.l.b16 %v66
  %v154 = vunpack.c.l.b16 %v67
  %v155 = vunpack.c.l.b16 %v68
  %v156 = vunpack.c.l.b16 %v69
  %v157 = vunpack.c.l.b16 %v70
  %v158 = vpack.c.b16 %v127, %v126
  %v159 = vpack.c.b16 %v129, %v128
  %v160 = vpack.c.b16 %v131, %v130
  %v161 = vpack.c.b16 %v133, %v132
  %v162 = vpack.c.b16 %v135, %v134
  %v163 = vpack.c.b16 %v137, %v136
  %v164 = vpack.c.b16 %v139, %v138
  %v165 = vpack.c.b16 %v141, %v140
  %v166 = vpack.c.b16 %v143, %v142
  %v167 = vpack.c.b16 %v145, %v144
  %v168 = vpack.c.b16 %v147, %v146
  %v169 = vpack.c.b16 %v149, %v148
  %v170 = vpack.c.b16 %v151, %v150
  %v171 = vpack.c.b16 %v153, %v152
  %v172 = vpack.c.b16 %v155, %v154
  %v173 = vpack.c.b16 %v157, %v156
  %v206 = vunpack.c.l.b16 %v71
  %v207 = vunpack.c.l.b16 %v72
  %v208 = vunpack.c.l.b16 %v73
  %v209 = vunpack.c.l.b16 %v74
  %v210 = vunpack.c.l.b16 %v75
  %v211 = vunpack.c.l.b16 %v76
  %v212 = vunpack.c.l.b16 %v77
  %v213 = vunpack.c.l.b16 %v78
  %v214 = vunpack.c.l.b16 %v79
  %v215 = vunpack.c.l.b16 %v80
  %v216 = vunpack.c.l.b16 %v81
  %v217 = vunpack.c.l.b16 %v82
  %v218 = vunpack.c.l.b16 %v83
  %v219 = vunpack.c.l.b16 %v84
  %v220 = vunpack.c.l.b16 %v85
  %v221 = vunpack.c.l.b16 %v86
  %v222 = vpack.c.b16 %v207, %v206
  %v223 = vpack.c.b16 %v209, %v208
  %v224 = vpack.c.b16 %v211, %v210
  %v225 = vpack.c.b16 %v213, %v212
  %v226 = vpack.c.b16 %v215, %v214
  %v227 = vpack.c.b16 %v217, %v216
  %v228 = vpack.c.b16 %v219, %v218
  %v229 = vpack.c.b16 %v221, %v220
  %238 = vmatprep.subr.bf16.mxu0 0
  %239 = vmatpush1.bf16.msra.mxu0 %v222
  %240 = vmatprep.subr.bf16.mxu0 0
  %241 = vmatpush1.bf16.msra.mxu0 %v223
  %242 = vmatprep.subr.bf16.mxu0 0
  %243 = vmatpush1.bf16.msra.mxu0 %v224
  %244 = vmatprep.subr.bf16.mxu0 0
  %245 = vmatpush1.bf16.msra.mxu0 %v225
  %246 = vmatprep.subr.bf16.mxu0 0
  %247 = vmatpush1.bf16.msra.mxu0 %v226
  %248 = vmatprep.subr.bf16.mxu0 0
  %249 = vmatpush1.bf16.msra.mxu0 %v227
  %250 = vmatprep.subr.bf16.mxu0 0
  %251 = vmatpush1.bf16.msra.mxu0 %v228
  %252 = vmatprep.subr.bf16.mxu0 0
  %253 = vmatpush1.bf16.msra.mxu0 %v229
  %254 = vmatprep.subr.bf16.mxu0 0
  %255 = vmatpush1.bf16.msra.mxu0 0
  %256 = vmatprep.subr.bf16.mxu0 0
  %257 = vmatpush1.bf16.msra.mxu0 0
  %258 = vmatprep.subr.bf16.mxu0 0
  %259 = vmatpush1.bf16.msra.mxu0 0
  %260 = vmatprep.subr.bf16.mxu0 0
  %261 = vmatpush1.bf16.msra.mxu0 0
  %262 = vmatprep.subr.bf16.mxu0 0
  %263 = vmatpush1.bf16.msra.mxu0 0
  %264 = vmatprep.subr.bf16.mxu0 0
  %265 = vmatpush1.bf16.msra.mxu0 0
  %266 = vmatprep.subr.bf16.mxu0 0
  %267 = vmatpush1.bf16.msra.mxu0 0
  %268 = vmatprep.subr.bf16.mxu0 0
  %269 = vmatpush1.bf16.msra.mxu0 0
  %270 = vmatprep.mubr.bf16.mxu0 0
  %271 = vmatmul.mubr.bf16.gmra.mrb[0].mxu0 %v158
  %v272 = vpop.f32.mrb[0].mxu0
  %v273 = vadd.f32 %v92, %v272
  %v274 = vpop.f32.mrb[0].mxu0
  %v275 = vpop.f32.mrb[0].mxu0
  %v276 = vadd.f32 %v92, %v275
  %v277 = vpop.f32.mrb[0].mxu0
  %278 = vmatprep.mubr.bf16.mxu0 0
  %279 = vmatmul.mubr.bf16.gmra.mrb[0].mxu0 %v159
  %v280 = vpop.f32.mrb[0].mxu0
  %v281 = vadd.f32 %v92, %v280
  %v282 = vpop.f32.mrb[0].mxu0
  %v283 = vpop.f32.mrb[0].mxu0
  %v284 = vadd.f32 %v92, %v283
  %v285 = vpop.f32.mrb[0].mxu0
  %286 = vmatprep.mubr.bf16.mxu0 0
  %287 = vmatmul.mubr.bf16.gmra.mrb[0].mxu0 %v160
  %v288 = vpop.f32.mrb[0].mxu0
  %v289 = vadd.f32 %v92, %v288
  %v290 = vpop.f32.mrb[0].mxu0
  %v291 = vpop.f32.mrb[0].mxu0
  %v292 = vadd.f32 %v92, %v291
  %v293 = vpop.f32.mrb[0].mxu0
  %294 = vmatprep.mubr.bf16.mxu0 0
  %295 = vmatmul.mubr.bf16.gmra.mrb[0].mxu0 %v161
  %v296 = vpop.f32.mrb[0].mxu0
  %v297 = vadd.f32 %v92, %v296
  %v298 = vpop.f32.mrb[0].mxu0
  %v299 = vpop.f32.mrb[0].mxu0
  %v300 = vadd.f32 %v92, %v299
  %v301 = vpop.f32.mrb[0].mxu0
  %302 = vmatprep.mubr.bf16.mxu0 0
  %303 = vmatmul.mubr.bf16.gmra.mrb[0].mxu0 %v162
  %v304 = vpop.f32.mrb[0].mxu0
  %v305 = vadd.f32 %v92, %v304
  %v306 = vpop.f32.mrb[0].mxu0
  %v307 = vpop.f32.mrb[0].mxu0
  %v308 = vadd.f32 %v92, %v307
  %v309 = vpop.f32.mrb[0].mxu0
  %310 = vmatprep.mubr.bf16.mxu0 0
  %311 = vmatmul.mubr.bf16.gmra.mrb[0].mxu0 %v163
  %v312 = vpop.f32.mrb[0].mxu0
  %v313 = vadd.f32 %v92, %v312
  %v314 = vpop.f32.mrb[0].mxu0
  %v315 = vpop.f32.mrb[0].mxu0
  %v316 = vadd.f32 %v92, %v315
  %v317 = vpop.f32.mrb[0].mxu0
  %318 = vmatprep.mubr.bf16.mxu0 0
  %319 = vmatmul.mubr.bf16.gmra.mrb[0].mxu0 %v164
  %v320 = vpop.f32.mrb[0].mxu0
  %v321 = vadd.f32 %v92, %v320
  %v322 = vpop.f32.mrb[0].mxu0
  %v323 = vpop.f32.mrb[0].mxu0
  %v324 = vadd.f32 %v92, %v323
  %v325 = vpop.f32.mrb[0].mxu0
  %326 = vmatprep.mubr.bf16.mxu0 0
  %327 = vmatmul.mubr.bf16.gmra.mrb[0].mxu0 %v165
  %v328 = vpop.f32.mrb[0].mxu0
  %v329 = vadd.f32 %v92, %v328
  %v330 = vpop.f32.mrb[0].mxu0
  %v331 = vpop.f32.mrb[0].mxu0
  %v332 = vadd.f32 %v92, %v331
  %v333 = vpop.f32.mrb[0].mxu0
  %334 = vmatprep.mubr.bf16.mxu0 0
  %335 = vmatmul.mubr.bf16.gmra.mrb[0].mxu0 %v166
  %v336 = vpop.f32.mrb[0].mxu0
  %v337 = vadd.f32 %v92, %v336
  %v338 = vpop.f32.mrb[0].mxu0
  %v339 = vpop.f32.mrb[0].mxu0
  %v340 = vadd.f32 %v92, %v339
  %v341 = vpop.f32.mrb[0].mxu0
  %342 = vmatprep.mubr.bf16.mxu0 0
  %343 = vmatmul.mubr.bf16.gmra.mrb[0].mxu0 %v167
  %v344 = vpop.f32.mrb[0].mxu0
  %v345 = vadd.f32 %v92, %v344
  %v346 = vpop.f32.mrb[0].mxu0
  %v347 = vpop.f32.mrb[0].mxu0
  %v348 = vadd.f32 %v92, %v347
  %v349 = vpop.f32.mrb[0].mxu0
  %350 = vmatprep.mubr.bf16.mxu0 0
  %351 = vmatmul.mubr.bf16.gmra.mrb[0].mxu0 %v168
  %v352 = vpop.f32.mrb[0].mxu0
  %v353 = vadd.f32 %v92, %v352
  %v354 = vpop.f32.mrb[0].mxu0
  %v355 = vpop.f32.mrb[0].mxu0
  %v356 = vadd.f32 %v92, %v355
  %v357 = vpop.f32.mrb[0].mxu0
  %358 = vmatprep.mubr.bf16.mxu0 0
  %359 = vmatmul.mubr.bf16.gmra.mrb[0].mxu0 %v169
  %v360 = vpop.f32.mrb[0].mxu0
  %v361 = vadd.f32 %v92, %v360
  %v362 = vpop.f32.mrb[0].mxu0
  %v363 = vpop.f32.mrb[0].mxu0
  %v364 = vadd.f32 %v92, %v363
  %v365 = vpop.f32.mrb[0].mxu0
  %366 = vmatprep.mubr.bf16.mxu0 0
  %367 = vmatmul.mubr.bf16.gmra.mrb[0].mxu0 %v170
  %v368 = vpop.f32.mrb[0].mxu0
  %v369 = vadd.f32 %v92, %v368
  %v370 = vpop.f32.mrb[0].mxu0
  %v371 = vpop.f32.mrb[0].mxu0
  %v372 = vadd.f32 %v92, %v371
  %v373 = vpop.f32.mrb[0].mxu0
  %374 = vmatprep.mubr.bf16.mxu0 0
  %375 = vmatmul.mubr.bf16.gmra.mrb[0].mxu0 %v171
  %v376 = vpop.f32.mrb[0].mxu0
  %v377 = vadd.f32 %v92, %v376
  %v378 = vpop.f32.mrb[0].mxu0
  %v379 = vpop.f32.mrb[0].mxu0
  %v380 = vadd.f32 %v92, %v379
  %v381 = vpop.f32.mrb[0].mxu0
  %382 = vmatprep.mubr.bf16.mxu0 0
  %383 = vmatmul.mubr.bf16.gmra.mrb[0].mxu0 %v172
  %v384 = vpop.f32.mrb[0].mxu0
  %v385 = vadd.f32 %v92, %v384
  %v386 = vpop.f32.mrb[0].mxu0
  %v387 = vpop.f32.mrb[0].mxu0
  %v388 = vadd.f32 %v92, %v387
  %v389 = vpop.f32.mrb[0].mxu0
  %390 = vmatprep.mubr.bf16.mxu0 0
  %391 = vmatmul.mubr.bf16.gmra.mrb[0].mxu0 %v173
  %v392 = vpop.f32.mrb[0].mxu0
  %v393 = vadd.f32 %v92, %v392
  %v394 = vpop.f32.mrb[0].mxu0
  %v395 = vpop.f32.mrb[0].mxu0
  %v396 = vadd.f32 %v92, %v395
  %v397 = vpop.f32.mrb[0].mxu0
  %398 = vdwg.mxu0
  %v399 = vmax.f32 %v273, 0.0
  %v400 = vmax.f32 %v276, 0.0
  %v401 = vmax.f32 %v281, 0.0
  %v402 = vmax.f32 %v284, 0.0
  %v403 = vmax.f32 %v289, 0.0
  %v404 = vmax.f32 %v292, 0.0
  %v405 = vmax.f32 %v297, 0.0
  %v406 = vmax.f32 %v300, 0.0
  %v407 = vmax.f32 %v305, 0.0
  %v408 = vmax.f32 %v308, 0.0
  %v409 = vmax.f32 %v313, 0.0
  %v410 = vmax.f32 %v316, 0.0
  %v411 = vmax.f32 %v321, 0.0
  %v412 = vmax.f32 %v324, 0.0
  %v413 = vmax.f32 %v329, 0.0
  %v414 = vmax.f32 %v332, 0.0
  %v415 = vmax.f32 %v337, 0.0
  %v416 = vmax.f32 %v340, 0.0
  %v417 = vmax.f32 %v345, 0.0
  %v418 = vmax.f32 %v348, 0.0
  %v419 = vmax.f32 %v353, 0.0
  %v420 = vmax.f32 %v356, 0.0
  %v421 = vmax.f32 %v361, 0.0
  %v422 = vmax.f32 %v364, 0.0
  %v423 = vmax.f32 %v369, 0.0
  %v424 = vmax.f32 %v372, 0.0
  %v425 = vmax.f32 %v377, 0.0
  %v426 = vmax.f32 %v380, 0.0
  %v427 = vmax.f32 %v385, 0.0
  %v428 = vmax.f32 %v388, 0.0
  %v429 = vmax.f32 %v393, 0.0
  %v430 = vmax.f32 %v396, 0.0
  %v431 = vpack.c.bf16 %v400, %v399
  %v432 = vpack.c.bf16 %v402, %v401
  %v433 = vpack.c.bf16 %v404, %v403
  %v434 = vpack.c.bf16 %v406, %v405
  %v435 = vpack.c.bf16 %v408, %v407
  %v436 = vpack.c.bf16 %v410, %v409
  %v437 = vpack.c.bf16 %v412, %v411
  %v438 = vpack.c.bf16 %v414, %v413
  %v439 = vpack.c.bf16 %v416, %v415
  %v440 = vpack.c.bf16 %v418, %v417
  %v441 = vpack.c.bf16 %v420, %v419
  %v442 = vpack.c.bf16 %v422, %v421
  %v443 = vpack.c.bf16 %v424, %v423
  %v444 = vpack.c.bf16 %v426, %v425
  %v445 = vpack.c.bf16 %v428, %v427
  %v446 = vpack.c.bf16 %v430, %v429
  %v447 = vld [vmem:[%s3] sm:$0xff]
  %v448 = vld [vmem:[%s3 + $0x8] sm:$0xff]
  %v449 = vld [vmem:[%s3 + $0x10] sm:$0xff]
  %v450 = vld [vmem:[%s3 + $0x18] sm:$0xff]
  %v451 = vld [vmem:[%s3 + $0x20] sm:$0xff]
  %v452 = vld [vmem:[%s3 + $0x28] sm:$0xff]
  %v453 = vld [vmem:[%s3 + $0x30] sm:$0xff]
  %v454 = vld [vmem:[%s3 + $0x38] sm:$0xff]
  %v455 = vld [vmem:[%s3 + $0x40] sm:$0xff]
  %v456 = vld [vmem:[%s3 + $0x48] sm:$0xff]
  %v457 = vld [vmem:[%s3 + $0x50] sm:$0xff]
  %v458 = vld [vmem:[%s3 + $0x58] sm:$0xff]
  %v459 = vld [vmem:[%s3 + $0x60] sm:$0xff]
  %v460 = vld [vmem:[%s3 + $0x68] sm:$0xff]
  %v461 = vld [vmem:[%s3 + $0x70] sm:$0xff]
  %v462 = vld [vmem:[%s3 + $0x78] sm:$0xff]
  %v479 = vunpack.c.l.b16 %v447
  %v480 = vunpack.c.h.b16 %v447
  %v481 = vunpack.c.l.b16 %v448
  %v482 = vunpack.c.h.b16 %v448
  %v483 = vunpack.c.l.b16 %v449
  %v484 = vunpack.c.h.b16 %v449
  %v485 = vunpack.c.l.b16 %v450
  %v486 = vunpack.c.h.b16 %v450
  %v487 = vunpack.c.l.b16 %v451
  %v488 = vunpack.c.h.b16 %v451
  %v489 = vunpack.c.l.b16 %v452
  %v490 = vunpack.c.h.b16 %v452
  %v491 = vunpack.c.l.b16 %v453
  %v492 = vunpack.c.h.b16 %v453
  %v493 = vunpack.c.l.b16 %v454
  %v494 = vunpack.c.h.b16 %v454
  %v495 = vunpack.c.l.b16 %v455
  %v496 = vunpack.c.h.b16 %v455
  %v497 = vunpack.c.l.b16 %v456
  %v498 = vunpack.c.h.b16 %v456
  %v499 = vunpack.c.l.b16 %v457
  %v500 = vunpack.c.h.b16 %v457
  %v501 = vunpack.c.l.b16 %v458
  %v502 = vunpack.c.h.b16 %v458
  %v503 = vunpack.c.l.b16 %v459
  %v504 = vunpack.c.h.b16 %v459
  %v505 = vunpack.c.l.b16 %v460
  %v506 = vunpack.c.h.b16 %v460
  %v507 = vunpack.c.l.b16 %v461
  %v508 = vunpack.c.h.b16 %v461
  %v509 = vunpack.c.l.b16 %v462
  %v510 = vunpack.c.h.b16 %v462
  %v511 = vpack.c.b16 %v481, %v479
  %v512 = vpack.c.b16 %v482, %v480
  %v513 = vpack.c.b16 %v485, %v483
  %v514 = vpack.c.b16 %v486, %v484
  %v515 = vpack.c.b16 %v489, %v487
  %v516 = vpack.c.b16 %v490, %v488
  %v517 = vpack.c.b16 %v493, %v491
  %v518 = vpack.c.b16 %v494, %v492
  %v519 = vpack.c.b16 %v497, %v495
  %v520 = vpack.c.b16 %v498, %v496
  %v521 = vpack.c.b16 %v501, %v499
  %v522 = vpack.c.b16 %v502, %v500
  %v523 = vpack.c.b16 %v505, %v503
  %v524 = vpack.c.b16 %v506, %v504
  %v525 = vpack.c.b16 %v509, %v507
  %v526 = vpack.c.b16 %v510, %v508
  %543 = vmatprep.subr.bf16.mxu0 %v512
  %544 = vmatpush1.bf16.msra.mxu0 %v511
  %545 = vmatprep.subr.bf16.mxu0 %v514
  %546 = vmatpush1.bf16.msra.mxu0 %v513
  %547 = vmatprep.subr.bf16.mxu0 %v516
  %548 = vmatpush1.bf16.msra.mxu0 %v515
  %549 = vmatprep.subr.bf16.mxu0 %v518
  %550 = vmatpush1.bf16.msra.mxu0 %v517
  %551 = vmatprep.subr.bf16.mxu0 %v520
  %552 = vmatpush1.bf16.msra.mxu0 %v519
  %553 = vmatprep.subr.bf16.mxu0 %v522
  %554 = vmatpush1.bf16.msra.mxu0 %v521
  %555 = vmatprep.subr.bf16.mxu0 %v524
  %556 = vmatpush1.bf16.msra.mxu0 %v523
  %557 = vmatprep.subr.bf16.mxu0 %v526
  %558 = vmatpush1.bf16.msra.mxu0 %v525
  %559 = vmatprep.subr.bf16.mxu0 0
  %560 = vmatpush1.bf16.msra.mxu0 0
  %561 = vmatprep.subr.bf16.mxu0 0
  %562 = vmatpush1.bf16.msra.mxu0 0
  %563 = vmatprep.subr.bf16.mxu0 0
  %564 = vmatpush1.bf16.msra.mxu0 0
  %565 = vmatprep.subr.bf16.mxu0 0
  %566 = vmatpush1.bf16.msra.mxu0 0
  %567 = vmatprep.subr.bf16.mxu0 0
  %568 = vmatpush1.bf16.msra.mxu0 0
  %569 = vmatprep.subr.bf16.mxu0 0
  %570 = vmatpush1.bf16.msra.mxu0 0
  %571 = vmatprep.subr.bf16.mxu0 0
  %572 = vmatpush1.bf16.msra.mxu0 0
  %573 = vmatprep.subr.bf16.mxu0 0
  %574 = vmatpush1.bf16.msra.mxu0 0
  %575 = vmatprep.mubr.bf16.mxu0 0
  %576 = vmatmul.mubr.bf16.gmra.mrb[0].mxu0 %v431
  %v577 = vpop.f32.mrb[0].mxu0
  %v578 = vadd.f32 0.0, %v577
  %v579 = vpop.f32.mrb[0].mxu0
  %v580 = vadd.f32 0.0, %v579
  %v581 = vpop.f32.mrb[0].mxu0
  %v582 = vadd.f32 0.0, %v581
  %v583 = vpop.f32.mrb[0].mxu0
  %v584 = vadd.f32 0.0, %v583
  %585 = vmatprep.mubr.bf16.mxu0 0
  %586 = vmatmul.mubr.bf16.gmra.mrb[0].mxu0 %v432
  %v587 = vpop.f32.mrb[0].mxu0
  %v588 = vadd.f32 0.0, %v587
  %v589 = vpop.f32.mrb[0].mxu0
  %v590 = vadd.f32 0.0, %v589
  %v591 = vpop.f32.mrb[0].mxu0
  %v592 = vadd.f32 0.0, %v591
  %v593 = vpop.f32.mrb[0].mxu0
  %v594 = vadd.f32 0.0, %v593
  %595 = vmatprep.mubr.bf16.mxu0 0
  %596 = vmatmul.mubr.bf16.gmra.mrb[0].mxu0 %v433
  %v597 = vpop.f32.mrb[0].mxu0
  %v598 = vadd.f32 0.0, %v597
  %v599 = vpop.f32.mrb[0].mxu0
  %v600 = vadd.f32 0.0, %v599
  %v601 = vpop.f32.mrb[0].mxu0
  %v602 = vadd.f32 0.0, %v601
  %v603 = vpop.f32.mrb[0].mxu0
  %v604 = vadd.f32 0.0, %v603
  %605 = vmatprep.mubr.bf16.mxu0 0
  %606 = vmatmul.mubr.bf16.gmra.mrb[0].mxu0 %v434
  %v607 = vpop.f32.mrb[0].mxu0
  %v608 = vadd.f32 0.0, %v607
  %v609 = vpop.f32.mrb[0].mxu0
  %v610 = vadd.f32 0.0, %v609
  %v611 = vpop.f32.mrb[0].mxu0
  %v612 = vadd.f32 0.0, %v611
  %v613 = vpop.f32.mrb[0].mxu0
  %v614 = vadd.f32 0.0, %v613
  %615 = vmatprep.mubr.bf16.mxu0 0
  %616 = vmatmul.mubr.bf16.gmra.mrb[0].mxu0 %v435
  %v617 = vpop.f32.mrb[0].mxu0
  %v618 = vadd.f32 0.0, %v617
  %v619 = vpop.f32.mrb[0].mxu0
  %v620 = vadd.f32 0.0, %v619
  %v621 = vpop.f32.mrb[0].mxu0
  %v622 = vadd.f32 0.0, %v621
  %v623 = vpop.f32.mrb[0].mxu0
  %v624 = vadd.f32 0.0, %v623
  %625 = vmatprep.mubr.bf16.mxu0 0
  %626 = vmatmul.mubr.bf16.gmra.mrb[0].mxu0 %v436
  %v627 = vpop.f32.mrb[0].mxu0
  %v628 = vadd.f32 0.0, %v627
  %v629 = vpop.f32.mrb[0].mxu0
  %v630 = vadd.f32 0.0, %v629
  %v631 = vpop.f32.mrb[0].mxu0
  %v632 = vadd.f32 0.0, %v631
  %v633 = vpop.f32.mrb[0].mxu0
  %v634 = vadd.f32 0.0, %v633
  %635 = vmatprep.mubr.bf16.mxu0 0
  %636 = vmatmul.mubr.bf16.gmra.mrb[0].mxu0 %v437
  %v637 = vpop.f32.mrb[0].mxu0
  %v638 = vadd.f32 0.0, %v637
  %v639 = vpop.f32.mrb[0].mxu0
  %v640 = vadd.f32 0.0, %v639
  %v641 = vpop.f32.mrb[0].mxu0
  %v642 = vadd.f32 0.0, %v641
  %v643 = vpop.f32.mrb[0].mxu0
  %v644 = vadd.f32 0.0, %v643
  %645 = vmatprep.mubr.bf16.mxu0 0
  %646 = vmatmul.mubr.bf16.gmra.mrb[0].mxu0 %v438
  %v647 = vpop.f32.mrb[0].mxu0
  %v648 = vadd.f32 0.0, %v647
  %v649 = vpop.f32.mrb[0].mxu0
  %v650 = vadd.f32 0.0, %v649
  %v651 = vpop.f32.mrb[0].mxu0
  %v652 = vadd.f32 0.0, %v651
  %v653 = vpop.f32.mrb[0].mxu0
  %v654 = vadd.f32 0.0, %v653
  %655 = vmatprep.mubr.bf16.mxu0 0
  %656 = vmatmul.mubr.bf16.gmra.mrb[0].mxu0 %v439
  %v657 = vpop.f32.mrb[0].mxu0
  %v658 = vadd.f32 0.0, %v657
  %v659 = vpop.f32.mrb[0].mxu0
  %v660 = vadd.f32 0.0, %v659
  %v661 = vpop.f32.mrb[0].mxu0
  %v662 = vadd.f32 0.0, %v661
  %v663 = vpop.f32.mrb[0].mxu0
  %v664 = vadd.f32 0.0, %v663
  %665 = vmatprep.mubr.bf16.mxu0 0
  %666 = vmatmul.mubr.bf16.gmra.mrb[0].mxu0 %v440
  %v667 = vpop.f32.mrb[0].mxu0
  %v668 = vadd.f32 0.0, %v667
  %v669 = vpop.f32.mrb[0].mxu0
  %v670 = vadd.f32 0.0, %v669
  %v671 = vpop.f32.mrb[0].mxu0
  %v672 = vadd.f32 0.0, %v671
  %v673 = vpop.f32.mrb[0].mxu0
  %v674 = vadd.f32 0.0, %v673
  %675 = vmatprep.mubr.bf16.mxu0 0
  %676 = vmatmul.mubr.bf16.gmra.mrb[0].mxu0 %v441
  %v677 = vpop.f32.mrb[0].mxu0
  %v678 = vadd.f32 0.0, %v677
  %v679 = vpop.f32.mrb[0].mxu0
  %v680 = vadd.f32 0.0, %v679
  %v681 = vpop.f32.mrb[0].mxu0
  %v682 = vadd.f32 0.0, %v681
  %v683 = vpop.f32.mrb[0].mxu0
  %v684 = vadd.f32 0.0, %v683
  %685 = vmatprep.mubr.bf16.mxu0 0
  %686 = vmatmul.mubr.bf16.gmra.mrb[0].mxu0 %v442
  %v687 = vpop.f32.mrb[0].mxu0
  %v688 = vadd.f32 0.0, %v687
  %v689 = vpop.f32.mrb[0].mxu0
  %v690 = vadd.f32 0.0, %v689
  %v691 = vpop.f32.mrb[0].mxu0
  %v692 = vadd.f32 0.0, %v691
  %v693 = vpop.f32.mrb[0].mxu0
  %v694 = vadd.f32 0.0, %v693
  %695 = vmatprep.mubr.bf16.mxu0 0
  %696 = vmatmul.mubr.bf16.gmra.mrb[0].mxu0 %v443
  %v697 = vpop.f32.mrb[0].mxu0
  %v698 = vadd.f32 0.0, %v697
  %v699 = vpop.f32.mrb[0].mxu0
  %v700 = vadd.f32 0.0, %v699
  %v701 = vpop.f32.mrb[0].mxu0
  %v702 = vadd.f32 0.0, %v701
  %v703 = vpop.f32.mrb[0].mxu0
  %v704 = vadd.f32 0.0, %v703
  %705 = vmatprep.mubr.bf16.mxu0 0
  %706 = vmatmul.mubr.bf16.gmra.mrb[0].mxu0 %v444
  %v707 = vpop.f32.mrb[0].mxu0
  %v708 = vadd.f32 0.0, %v707
  %v709 = vpop.f32.mrb[0].mxu0
  %v710 = vadd.f32 0.0, %v709
  %v711 = vpop.f32.mrb[0].mxu0
  %v712 = vadd.f32 0.0, %v711
  %v713 = vpop.f32.mrb[0].mxu0
  %v714 = vadd.f32 0.0, %v713
  %715 = vmatprep.mubr.bf16.mxu0 0
  %716 = vmatmul.mubr.bf16.gmra.mrb[0].mxu0 %v445
  %v717 = vpop.f32.mrb[0].mxu0
  %v718 = vadd.f32 0.0, %v717
  %v719 = vpop.f32.mrb[0].mxu0
  %v720 = vadd.f32 0.0, %v719
  %v721 = vpop.f32.mrb[0].mxu0
  %v722 = vadd.f32 0.0, %v721
  %v723 = vpop.f32.mrb[0].mxu0
  %v724 = vadd.f32 0.0, %v723
  %725 = vmatprep.mubr.bf16.mxu0 0
  %726 = vmatmul.mubr.bf16.gmra.mrb[0].mxu0 %v446
  %v727 = vpop.f32.mrb[0].mxu0
  %v728 = vadd.f32 0.0, %v727
  %v729 = vpop.f32.mrb[0].mxu0
  %v730 = vadd.f32 0.0, %v729
  %v731 = vpop.f32.mrb[0].mxu0
  %v732 = vadd.f32 0.0, %v731
  %v733 = vpop.f32.mrb[0].mxu0
  %v734 = vadd.f32 0.0, %v733
  %735 = vdwg.mxu0
  %v736 = vld [vmem:[%s4] sm:$0x3]
  %v737 = vld [vmem:[%s5] sm:$0x3]
  %738 = vmatprep.subr.mxu0 %v580
  %739 = vmatpush1.msra.mxu0 %v578
  %740 = vmatprep.subr.mxu0 %v584
  %741 = vmatpush1.msra.mxu0 %v582
  %742 = vmatprep.subr.mxu0 %v590
  %743 = vmatpush1.msra.mxu0 %v588
  %744 = vmatprep.subr.mxu0 %v594
  %745 = vmatpush1.msra.mxu0 %v592
  %746 = vmatprep.subr.mxu0 %v600
  %747 = vmatpush1.msra.mxu0 %v598
  %748 = vmatprep.subr.mxu0 %v604
  %749 = vmatpush1.msra.mxu0 %v602
  %750 = vmatprep.subr.mxu0 %v610
  %751 = vmatpush1.msra.mxu0 %v608
  %752 = vmatprep.subr.mxu0 %v614
  %753 = vmatpush1.msra.mxu0 %v612
  %754 = vmatprep.subr.mxu0 %v620
  %755 = vmatpush1.msra.mxu0 %v618
  %756 = vmatprep.subr.mxu0 %v624
  %757 = vmatpush1.msra.mxu0 %v622
  %758 = vmatprep.subr.mxu0 %v630
  %759 = vmatpush1.msra.mxu0 %v628
  %760 = vmatprep.subr.mxu0 %v634
  %761 = vmatpush1.msra.mxu0 %v632
  %762 = vmatprep.subr.mxu0 %v640
  %763 = vmatpush1.msra.mxu0 %v638
  %764 = vmatprep.subr.mxu0 %v644
  %765 = vmatpush1.msra.mxu0 %v642
  %766 = vmatprep.subr.mxu0 %v650
  %767 = vmatpush1.msra.mxu0 %v648
  %768 = vmatprep.subr.mxu0 %v654
  %769 = vmatpush1.msra.mxu0 %v652
  %770 = vmatprep.subr.mxu0 %v660
  %771 = vmatpush1.msra.mxu0 %v658
  %772 = vmatprep.subr.mxu0 %v664
  %773 = vmatpush1.msra.mxu0 %v662
  %774 = vmatprep.subr.mxu0 %v670
  %775 = vmatpush1.msra.mxu0 %v668
  %776 = vmatprep.subr.mxu0 %v674
  %777 = vmatpush1.msra.mxu0 %v672
  %778 = vmatprep.subr.mxu0 %v680
  %779 = vmatpush1.msra.mxu0 %v678
  %780 = vmatprep.subr.mxu0 %v684
  %781 = vmatpush1.msra.mxu0 %v682
  %782 = vmatprep.subr.mxu0 %v690
  %783 = vmatpush1.msra.mxu0 %v688
  %784 = vmatprep.subr.mxu0 %v694
  %785 = vmatpush1.msra.mxu0 %v692
  %786 = vmatprep.subr.mxu0 %v700
  %787 = vmatpush1.msra.mxu0 %v698
  %788 = vmatprep.subr.mxu0 %v704
  %789 = vmatpush1.msra.mxu0 %v702
  %790 = vmatprep.subr.mxu0 %v710
  %791 = vmatpush1.msra.mxu0 %v708
  %792 = vmatprep.subr.mxu0 %v714
  %793 = vmatpush1.msra.mxu0 %v712
  %794 = vmatprep.subr.mxu0 %v720
  %795 = vmatpush1.msra.mxu0 %v718
  %796 = vmatprep.subr.mxu0 %v724
  %797 = vmatpush1.msra.mxu0 %v722
  %798 = vmatprep.subr.mxu0 %v730
  %799 = vmatpush1.msra.mxu0 %v728
  %800 = vmatprep.subr.mxu0 %v734
  %801 = vmatpush1.msra.mxu0 %v732
  %802 = vmatprep.mubr.f32.mxu0 1.0
  %803 = vmatmul.mubr.f32.gmra.mrb[0].mxu0 1.0
  %v804 = vpop.f32.mrb[0].mxu0
  %v805 = vadd.f32 0.0, %v804
  %v806 = vpop.f32.mrb[0].mxu0
  %v807 = vadd.f32 0.0, %v806
  %808 = vdwg.mxu0
  %v809 = vmul.f32 %v805, 0.00390625
  %v810 = vmul.f32 %v807, 0.00390625
  %v811 = vmul.f32 %v578, %v578
  %v812 = vmul.f32 %v580, %v580
  %v813 = vmul.f32 %v582, %v582
  %v814 = vmul.f32 %v584, %v584
  %v815 = vmul.f32 %v588, %v588
  %v816 = vmul.f32 %v590, %v590
  %v817 = vmul.f32 %v592, %v592
  %v818 = vmul.f32 %v594, %v594
  %v819 = vmul.f32 %v598, %v598
  %v820 = vmul.f32 %v600, %v600
  %v821 = vmul.f32 %v602, %v602
  %v822 = vmul.f32 %v604, %v604
  %v823 = vmul.f32 %v608, %v608
  %v824 = vmul.f32 %v610, %v610
  %v825 = vmul.f32 %v612, %v612
  %v826 = vmul.f32 %v614, %v614
  %v827 = vmul.f32 %v618, %v618
  %v828 = vmul.f32 %v620, %v620
  %v829 = vmul.f32 %v622, %v622
  %v830 = vmul.f32 %v624, %v624
  %v831 = vmul.f32 %v628, %v628
  %v832 = vmul.f32 %v630, %v630
  %v833 = vmul.f32 %v632, %v632
  %v834 = vmul.f32 %v634, %v634
  %v835 = vmul.f32 %v638, %v638
  %v836 = vmul.f32 %v640, %v640
  %v837 = vmul.f32 %v642, %v642
  %v838 = vmul.f32 %v644, %v644
  %v839 = vmul.f32 %v648, %v648
  %v840 = vmul.f32 %v650, %v650
  %v841 = vmul.f32 %v652, %v652
  %v842 = vmul.f32 %v654, %v654
  %v843 = vmul.f32 %v658, %v658
  %v844 = vmul.f32 %v660, %v660
  %v845 = vmul.f32 %v662, %v662
  %v846 = vmul.f32 %v664, %v664
  %v847 = vmul.f32 %v668, %v668
  %v848 = vmul.f32 %v670, %v670
  %v849 = vmul.f32 %v672, %v672
  %v850 = vmul.f32 %v674, %v674
  %v851 = vmul.f32 %v678, %v678
  %v852 = vmul.f32 %v680, %v680
  %v853 = vmul.f32 %v682, %v682
  %v854 = vmul.f32 %v684, %v684
  %v855 = vmul.f32 %v688, %v688
  %v856 = vmul.f32 %v690, %v690
  %v857 = vmul.f32 %v692, %v692
  %v858 = vmul.f32 %v694, %v694
  %v859 = vmul.f32 %v698, %v698
  %v860 = vmul.f32 %v700, %v700
  %v861 = vmul.f32 %v702, %v702
  %v862 = vmul.f32 %v704, %v704
  %v863 = vmul.f32 %v708, %v708
  %v864 = vmul.f32 %v710, %v710
  %v865 = vmul.f32 %v712, %v712
  %v866 = vmul.f32 %v714, %v714
  %v867 = vmul.f32 %v718, %v718
  %v868 = vmul.f32 %v720, %v720
  %v869 = vmul.f32 %v722, %v722
  %v870 = vmul.f32 %v724, %v724
  %v871 = vmul.f32 %v728, %v728
  %v872 = vmul.f32 %v730, %v730
  %v873 = vmul.f32 %v732, %v732
  %v874 = vmul.f32 %v734, %v734
  %875 = vmatprep.subr.mxu0 %v812
  %876 = vmatpush1.msra.mxu0 %v811
  %877 = vmatprep.subr.mxu0 %v814
  %878 = vmatpush1.msra.mxu0 %v813
  %879 = vmatprep.subr.mxu0 %v816
  %880 = vmatpush1.msra.mxu0 %v815
  %881 = vmatprep.subr.mxu0 %v818
  %882 = vmatpush1.msra.mxu0 %v817
  %883 = vmatprep.subr.mxu0 %v820
  %884 = vmatpush1.msra.mxu0 %v819
  %885 = vmatprep.subr.mxu0 %v822
  %886 = vmatpush1.msra.mxu0 %v821
  %887 = vmatprep.subr.mxu0 %v824
  %888 = vmatpush1.msra.mxu0 %v823
  %889 = vmatprep.subr.mxu0 %v826
  %890 = vmatpush1.msra.mxu0 %v825
  %891 = vmatprep.subr.mxu0 %v828
  %892 = vmatpush1.msra.mxu0 %v827
  %893 = vmatprep.subr.mxu0 %v830
  %894 = vmatpush1.msra.mxu0 %v829
  %895 = vmatprep.subr.mxu0 %v832
  %896 = vmatpush1.msra.mxu0 %v831
  %897 = vmatprep.subr.mxu0 %v834
  %898 = vmatpush1.msra.mxu0 %v833
  %899 = vmatprep.subr.mxu0 %v836
  %900 = vmatpush1.msra.mxu0 %v835
  %901 = vmatprep.subr.mxu0 %v838
  %902 = vmatpush1.msra.mxu0 %v837
  %903 = vmatprep.subr.mxu0 %v840
  %904 = vmatpush1.msra.mxu0 %v839
  %905 = vmatprep.subr.mxu0 %v842
  %906 = vmatpush1.msra.mxu0 %v841
  %907 = vmatprep.subr.mxu0 %v844
  %908 = vmatpush1.msra.mxu0 %v843
  %909 = vmatprep.subr.mxu0 %v846
  %910 = vmatpush1.msra.mxu0 %v845
  %911 = vmatprep.subr.mxu0 %v848
  %912 = vmatpush1.msra.mxu0 %v847
  %913 = vmatprep.subr.mxu0 %v850
  %914 = vmatpush1.msra.mxu0 %v849
  %915 = vmatprep.subr.mxu0 %v852
  %916 = vmatpush1.msra.mxu0 %v851
  %917 = vmatprep.subr.mxu0 %v854
  %918 = vmatpush1.msra.mxu0 %v853
  %919 = vmatprep.subr.mxu0 %v856
  %920 = vmatpush1.msra.mxu0 %v855
  %921 = vmatprep.subr.mxu0 %v858
  %922 = vmatpush1.msra.mxu0 %v857
  %923 = vmatprep.subr.mxu0 %v860
  %924 = vmatpush1.msra.mxu0 %v859
  %925 = vmatprep.subr.mxu0 %v862
  %926 = vmatpush1.msra.mxu0 %v861
  %927 = vmatprep.subr.mxu0 %v864
  %928 = vmatpush1.msra.mxu0 %v863
  %929 = vmatprep.subr.mxu0 %v866
  %930 = vmatpush1.msra.mxu0 %v865
  %931 = vmatprep.subr.mxu0 %v868
  %932 = vmatpush1.msra.mxu0 %v867
  %933 = vmatprep.subr.mxu0 %v870
  %934 = vmatpush1.msra.mxu0 %v869
  %935 = vmatprep.subr.mxu0 %v872
  %936 = vmatpush1.msra.mxu0 %v871
  %937 = vmatprep.subr.mxu0 %v874
  %938 = vmatpush1.msra.mxu0 %v873
  %939 = vmatprep.mubr.f32.mxu0 1.0
  %940 = vmatmul.mubr.f32.gmra.mrb[0].mxu0 1.0
  %v941 = vpop.f32.mrb[0].mxu0
  %v942 = vadd.f32 0.0, %v941
  %v943 = vpop.f32.mrb[0].mxu0
  %v944 = vadd.f32 0.0, %v943
  %945 = vdwg.mxu0
  %v946 = vmul.f32 %v942, 0.00390625
  %v947 = vmul.f32 %v944, 0.00390625
  %v948 = vmul.f32 %v809, %v809
  %v949 = vmul.f32 %v810, %v810
  %v950 = vsub.f32 %v946, %v948
  %v951 = vsub.f32 %v947, %v949
  %v952 = vadd.f32 %v950, 0.8
  %v953 = vadd.f32 %v951, 0.8
  %v954 = vrsqrt.pop %v952
  %v955 = vrsqrt.pop %v953
  %v958 = vcombine.low %v954, %v955
  %v960 = vunpack.c.l.s4 1966171168
  %v961 = vunpack.c.0.s8 %v960
  %v962 = vlaneseq
  %v963 = vshrl.u32 %v962, 7
  %v964 = vsub.s32 %v961, %v963
  %v965 = vrot.slane %v958, %v964
  %v967 = vunpack.c.l.s4 1966171168
  %v968 = vunpack.c.0.s8 %v967
  %v969 = vlaneseq
  %v970 = vshrl.u32 %v969, 7
  %v971 = vsub.s32 %v968, %v970
  %v972 = vrot.slane %v965, %v971
  %v974 = vmul.f32 %v736, %v972
  %v976 = vlaneseq
  %v977 = vshrl.u32 %v976, 7
  %v978 = vsub.s32 0, %v977
  %v979 = vrot.slane %v974, %v978
  %v980 = vlaneseq
  %v981 = vshrl.u32 %v980, 7
  %v982 = vsub.s32 1, %v981
  %v983 = vrot.slane %v974, %v982
  %v986 = vmul.f32 %v809, %v979
  %v987 = vmul.f32 %v810, %v983
  %v990 = vcombine.low %v986, %v987
  %v992 = vunpack.c.l.s4 1966171168
  %v993 = vunpack.c.0.s8 %v992
  %v994 = vlaneseq
  %v995 = vshrl.u32 %v994, 7
  %v996 = vsub.s32 %v993, %v995
  %v997 = vrot.slane %v990, %v996
  %v999 = vunpack.c.l.s4 1966171168
  %v1000 = vunpack.c.0.s8 %v999
  %v1001 = vlaneseq
  %v1002 = vshrl.u32 %v1001, 7
  %v1003 = vsub.s32 %v1000, %v1002
  %v1004 = vrot.slane %v997, %v1003
  %v1006 = vsub.f32 %v737, %v1004
  %v1007 = vmul.f32 %v578, %v979
  %v1008 = vmul.f32 %v580, %v983
  %v1009 = vmul.f32 %v582, %v979
  %v1010 = vmul.f32 %v584, %v983
  %v1011 = vmul.f32 %v588, %v979
  %v1012 = vmul.f32 %v590, %v983
  %v1013 = vmul.f32 %v592, %v979
  %v1014 = vmul.f32 %v594, %v983
  %v1015 = vmul.f32 %v598, %v979
  %v1016 = vmul.f32 %v600, %v983
  %v1017 = vmul.f32 %v602, %v979
  %v1018 = vmul.f32 %v604, %v983
  %v1019 = vmul.f32 %v608, %v979
  %v1020 = vmul.f32 %v610, %v983
  %v1021 = vmul.f32 %v612, %v979
  %v1022 = vmul.f32 %v614, %v983
  %v1023 = vmul.f32 %v618, %v979
  %v1024 = vmul.f32 %v620, %v983
  %v1025 = vmul.f32 %v622, %v979
  %v1026 = vmul.f32 %v624, %v983
  %v1027 = vmul.f32 %v628, %v979
  %v1028 = vmul.f32 %v630, %v983
  %v1029 = vmul.f32 %v632, %v979
  %v1030 = vmul.f32 %v634, %v983
  %v1031 = vmul.f32 %v638, %v979
  %v1032 = vmul.f32 %v640, %v983
  %v1033 = vmul.f32 %v642, %v979
  %v1034 = vmul.f32 %v644, %v983
  %v1035 = vmul.f32 %v648, %v979
  %v1036 = vmul.f32 %v650, %v983
  %v1037 = vmul.f32 %v652, %v979
  %v1038 = vmul.f32 %v654, %v983
  %v1039 = vmul.f32 %v658, %v979
  %v1040 = vmul.f32 %v660, %v983
  %v1041 = vmul.f32 %v662, %v979
  %v1042 = vmul.f32 %v664, %v983
  %v1043 = vmul.f32 %v668, %v979
  %v1044 = vmul.f32 %v670, %v983
  %v1045 = vmul.f32 %v672, %v979
  %v1046 = vmul.f32 %v674, %v983
  %v1047 = vmul.f32 %v678, %v979
  %v1048 = vmul.f32 %v680, %v983
  %v1049 = vmul.f32 %v682, %v979
  %v1050 = vmul.f32 %v684, %v983
  %v1051 = vmul.f32 %v688, %v979
  %v1052 = vmul.f32 %v690, %v983
  %v1053 = vmul.f32 %v692, %v979
  %v1054 = vmul.f32 %v694, %v983
  %v1055 = vmul.f32 %v698, %v979
  %v1056 = vmul.f32 %v700, %v983
  %v1057 = vmul.f32 %v702, %v979
  %v1058 = vmul.f32 %v704, %v983
  %v1059 = vmul.f32 %v708, %v979
  %v1060 = vmul.f32 %v710, %v983
  %v1061 = vmul.f32 %v712, %v979
  %v1062 = vmul.f32 %v714, %v983
  %v1063 = vmul.f32 %v718, %v979
  %v1064 = vmul.f32 %v720, %v983
  %v1065 = vmul.f32 %v722, %v979
  %v1066 = vmul.f32 %v724, %v983
  %v1067 = vmul.f32 %v728, %v979
  %v1068 = vmul.f32 %v730, %v983
  %v1069 = vmul.f32 %v732, %v979
  %v1070 = vmul.f32 %v734, %v983
  %v1072 = vlaneseq
  %v1073 = vshrl.u32 %v1072, 7
  %v1074 = vsub.s32 0, %v1073
  %v1075 = vrot.slane %v1006, %v1074
  %v1076 = vlaneseq
  %v1077 = vshrl.u32 %v1076, 7
  %v1078 = vsub.s32 1, %v1077
  %v1079 = vrot.slane %v1006, %v1078
  %v1082 = vadd.f32 %v1007, %v1075
  %v1083 = vadd.f32 %v1008, %v1079
  %v1084 = vadd.f32 %v1009, %v1075
  %v1085 = vadd.f32 %v1010, %v1079
  %v1086 = vadd.f32 %v1011, %v1075
  %v1087 = vadd.f32 %v1012, %v1079
  %v1088 = vadd.f32 %v1013, %v1075
  %v1089 = vadd.f32 %v1014, %v1079
  %v1090 = vadd.f32 %v1015, %v1075
  %v1091 = vadd.f32 %v1016, %v1079
  %v1092 = vadd.f32 %v1017, %v1075
  %v1093 = vadd.f32 %v1018, %v1079
  %v1094 = vadd.f32 %v1019, %v1075
  %v1095 = vadd.f32 %v1020, %v1079
  %v1096 = vadd.f32 %v1021, %v1075
  %v1097 = vadd.f32 %v1022, %v1079
  %v1098 = vadd.f32 %v1023, %v1075
  %v1099 = vadd.f32 %v1024, %v1079
  %v1100 = vadd.f32 %v1025, %v1075
  %v1101 = vadd.f32 %v1026, %v1079
  %v1102 = vadd.f32 %v1027, %v1075
  %v1103 = vadd.f32 %v1028, %v1079
  %v1104 = vadd.f32 %v1029, %v1075
  %v1105 = vadd.f32 %v1030, %v1079
  %v1106 = vadd.f32 %v1031, %v1075
  %v1107 = vadd.f32 %v1032, %v1079
  %v1108 = vadd.f32 %v1033, %v1075
  %v1109 = vadd.f32 %v1034, %v1079
  %v1110 = vadd.f32 %v1035, %v1075
  %v1111 = vadd.f32 %v1036, %v1079
  %v1112 = vadd.f32 %v1037, %v1075
  %v1113 = vadd.f32 %v1038, %v1079
  %v1114 = vadd.f32 %v1039, %v1075
  %v1115 = vadd.f32 %v1040, %v1079
  %v1116 = vadd.f32 %v1041, %v1075
  %v1117 = vadd.f32 %v1042, %v1079
  %v1118 = vadd.f32 %v1043, %v1075
  %v1119 = vadd.f32 %v1044, %v1079
  %v1120 = vadd.f32 %v1045, %v1075
  %v1121 = vadd.f32 %v1046, %v1079
  %v1122 = vadd.f32 %v1047, %v1075
  %v1123 = vadd.f32 %v1048, %v1079
  %v1124 = vadd.f32 %v1049, %v1075
  %v1125 = vadd.f32 %v1050, %v1079
  %v1126 = vadd.f32 %v1051, %v1075
  %v1127 = vadd.f32 %v1052, %v1079
  %v1128 = vadd.f32 %v1053, %v1075
  %v1129 = vadd.f32 %v1054, %v1079
  %v1130 = vadd.f32 %v1055, %v1075
  %v1131 = vadd.f32 %v1056, %v1079
  %v1132 = vadd.f32 %v1057, %v1075
  %v1133 = vadd.f32 %v1058, %v1079
  %v1134 = vadd.f32 %v1059, %v1075
  %v1135 = vadd.f32 %v1060, %v1079
  %v1136 = vadd.f32 %v1061, %v1075
  %v1137 = vadd.f32 %v1062, %v1079
  %v1138 = vadd.f32 %v1063, %v1075
  %v1139 = vadd.f32 %v1064, %v1079
  %v1140 = vadd.f32 %v1065, %v1075
  %v1141 = vadd.f32 %v1066, %v1079
  %v1142 = vadd.f32 %v1067, %v1075
  %v1143 = vadd.f32 %v1068, %v1079
  %v1144 = vadd.f32 %v1069, %v1075
  %v1145 = vadd.f32 %v1070, %v1079
  %v1146 = vmax.f32 %v1082, 0.0
  %v1147 = vmax.f32 %v1083, 0.0
  %v1148 = vmax.f32 %v1084, 0.0
  %v1149 = vmax.f32 %v1085, 0.0
  %v1150 = vmax.f32 %v1086, 0.0
  %v1151 = vmax.f32 %v1087, 0.0
  %v1152 = vmax.f32 %v1088, 0.0
  %v1153 = vmax.f32 %v1089, 0.0
  %v1154 = vmax.f32 %v1090, 0.0
  %v1155 = vmax.f32 %v1091, 0.0
  %v1156 = vmax.f32 %v1092, 0.0
  %v1157 = vmax.f32 %v1093, 0.0
  %v1158 = vmax.f32 %v1094, 0.0
  %v1159 = vmax.f32 %v1095, 0.0
  %v1160 = vmax.f32 %v1096, 0.0
  %v1161 = vmax.f32 %v1097, 0.0
  %v1162 = vmax.f32 %v1098, 0.0
  %v1163 = vmax.f32 %v1099, 0.0
  %v1164 = vmax.f32 %v1100, 0.0
  %v1165 = vmax.f32 %v1101, 0.0
  %v1166 = vmax.f32 %v1102, 0.0
  %v1167 = vmax.f32 %v1103, 0.0
  %v1168 = vmax.f32 %v1104, 0.0
  %v1169 = vmax.f32 %v1105, 0.0
  %v1170 = vmax.f32 %v1106, 0.0
  %v1171 = vmax.f32 %v1107, 0.0
  %v1172 = vmax.f32 %v1108, 0.0
  %v1173 = vmax.f32 %v1109, 0.0
  %v1174 = vmax.f32 %v1110, 0.0
  %v1175 = vmax.f32 %v1111, 0.0
  %v1176 = vmax.f32 %v1112, 0.0
  %v1177 = vmax.f32 %v1113, 0.0
  %v1178 = vmax.f32 %v1114, 0.0
  %v1179 = vmax.f32 %v1115, 0.0
  %v1180 = vmax.f32 %v1116, 0.0
  %v1181 = vmax.f32 %v1117, 0.0
  %v1182 = vmax.f32 %v1118, 0.0
  %v1183 = vmax.f32 %v1119, 0.0
  %v1184 = vmax.f32 %v1120, 0.0
  %v1185 = vmax.f32 %v1121, 0.0
  %v1186 = vmax.f32 %v1122, 0.0
  %v1187 = vmax.f32 %v1123, 0.0
  %v1188 = vmax.f32 %v1124, 0.0
  %v1189 = vmax.f32 %v1125, 0.0
  %v1190 = vmax.f32 %v1126, 0.0
  %v1191 = vmax.f32 %v1127, 0.0
  %v1192 = vmax.f32 %v1128, 0.0
  %v1193 = vmax.f32 %v1129, 0.0
  %v1194 = vmax.f32 %v1130, 0.0
  %v1195 = vmax.f32 %v1131, 0.0
  %v1196 = vmax.f32 %v1132, 0.0
  %v1197 = vmax.f32 %v1133, 0.0
  %v1198 = vmax.f32 %v1134, 0.0
  %v1199 = vmax.f32 %v1135, 0.0
  %v1200 = vmax.f32 %v1136, 0.0
  %v1201 = vmax.f32 %v1137, 0.0
  %v1202 = vmax.f32 %v1138, 0.0
  %v1203 = vmax.f32 %v1139, 0.0
  %v1204 = vmax.f32 %v1140, 0.0
  %v1205 = vmax.f32 %v1141, 0.0
  %v1206 = vmax.f32 %v1142, 0.0
  %v1207 = vmax.f32 %v1143, 0.0
  %v1208 = vmax.f32 %v1144, 0.0
  %v1209 = vmax.f32 %v1145, 0.0
  %v1210 = vpack.c.bf16 %v1148, %v1146
  %v1211 = vpack.c.bf16 %v1149, %v1147
  %v1212 = vpack.c.bf16 %v1152, %v1150
  %v1213 = vpack.c.bf16 %v1153, %v1151
  %v1214 = vpack.c.bf16 %v1156, %v1154
  %v1215 = vpack.c.bf16 %v1157, %v1155
  %v1216 = vpack.c.bf16 %v1160, %v1158
  %v1217 = vpack.c.bf16 %v1161, %v1159
  %v1218 = vpack.c.bf16 %v1164, %v1162
  %v1219 = vpack.c.bf16 %v1165, %v1163
  %v1220 = vpack.c.bf16 %v1168, %v1166
  %v1221 = vpack.c.bf16 %v1169, %v1167
  %v1222 = vpack.c.bf16 %v1172, %v1170
  %v1223 = vpack.c.bf16 %v1173, %v1171
  %v1224 = vpack.c.bf16 %v1176, %v1174
  %v1225 = vpack.c.bf16 %v1177, %v1175
  %v1226 = vpack.c.bf16 %v1180, %v1178
  %v1227 = vpack.c.bf16 %v1181, %v1179
  %v1228 = vpack.c.bf16 %v1184, %v1182
  %v1229 = vpack.c.bf16 %v1185, %v1183
  %v1230 = vpack.c.bf16 %v1188, %v1186
  %v1231 = vpack.c.bf16 %v1189, %v1187
  %v1232 = vpack.c.bf16 %v1192, %v1190
  %v1233 = vpack.c.bf16 %v1193, %v1191
  %v1234 = vpack.c.bf16 %v1196, %v1194
  %v1235 = vpack.c.bf16 %v1197, %v1195
  %v1236 = vpack.c.bf16 %v1200, %v1198
  %v1237 = vpack.c.bf16 %v1201, %v1199
  %v1238 = vpack.c.bf16 %v1204, %v1202
  %v1239 = vpack.c.bf16 %v1205, %v1203
  %v1240 = vpack.c.bf16 %v1208, %v1206
  %v1241 = vpack.c.bf16 %v1209, %v1207
  %v1242 = vld [vmem:[%s6] sm:$0xff]
  %v1243 = vld [vmem:[%s6 + $0x8] sm:$0xff]
  %v1244 = vld [vmem:[%s6 + $0x10] sm:$0xff]
  %v1245 = vld [vmem:[%s6 + $0x18] sm:$0xff]
  %v1246 = vld [vmem:[%s6 + $0x20] sm:$0xff]
  %v1247 = vld [vmem:[%s6 + $0x28] sm:$0xff]
  %v1248 = vld [vmem:[%s6 + $0x30] sm:$0xff]
  %v1249 = vld [vmem:[%s6 + $0x38] sm:$0xff]
  %v1250 = vld [vmem:[%s6 + $0x40] sm:$0xff]
  %v1251 = vld [vmem:[%s6 + $0x48] sm:$0xff]
  %v1252 = vld [vmem:[%s6 + $0x50] sm:$0xff]
  %v1253 = vld [vmem:[%s6 + $0x58] sm:$0xff]
  %v1254 = vld [vmem:[%s6 + $0x60] sm:$0xff]
  %v1255 = vld [vmem:[%s6 + $0x68] sm:$0xff]
  %v1256 = vld [vmem:[%s6 + $0x70] sm:$0xff]
  %v1257 = vld [vmem:[%s6 + $0x78] sm:$0xff]
  %v1258 = vld [vmem:[%s6 + $0x80] sm:$0xff]
  %v1259 = vld [vmem:[%s6 + $0x88] sm:$0xff]
  %v1260 = vld [vmem:[%s6 + $0x90] sm:$0xff]
  %v1261 = vld [vmem:[%s6 + $0x98] sm:$0xff]
  %v1262 = vld [vmem:[%s6 + $0xa0] sm:$0xff]
  %v1263 = vld [vmem:[%s6 + $0xa8] sm:$0xff]
  %v1264 = vld [vmem:[%s6 + $0xb0] sm:$0xff]
  %v1265 = vld [vmem:[%s6 + $0xb8] sm:$0xff]
  %v1266 = vld [vmem:[%s6 + $0xc0] sm:$0xff]
  %v1267 = vld [vmem:[%s6 + $0xc8] sm:$0xff]
  %v1268 = vld [vmem:[%s6 + $0xd0] sm:$0xff]
  %v1269 = vld [vmem:[%s6 + $0xd8] sm:$0xff]
  %v1270 = vld [vmem:[%s6 + $0xe0] sm:$0xff]
  %v1271 = vld [vmem:[%s6 + $0xe8] sm:$0xff]
  %v1272 = vld [vmem:[%s6 + $0xf0] sm:$0xff]
  %v1273 = vld [vmem:[%s6 + $0xf8] sm:$0xff]
  %v1274 = vld [vmem:[%s6 + $0x100] sm:$0xff]
  %v1275 = vld [vmem:[%s6 + $0x108] sm:$0xff]
  %v1276 = vld [vmem:[%s6 + $0x110] sm:$0xff]
  %v1277 = vld [vmem:[%s6 + $0x118] sm:$0xff]
  %v1278 = vld [vmem:[%s6 + $0x120] sm:$0xff]
  %v1279 = vld [vmem:[%s6 + $0x128] sm:$0xff]
  %v1280 = vld [vmem:[%s6 + $0x130] sm:$0xff]
  %v1281 = vld [vmem:[%s6 + $0x138] sm:$0xff]
  %v1282 = vld [vmem:[%s6 + $0x140] sm:$0xff]
  %v1283 = vld [vmem:[%s6 + $0x148] sm:$0xff]
  %v1284 = vld [vmem:[%s6 + $0x150] sm:$0xff]
  %v1285 = vld [vmem:[%s6 + $0x158] sm:$0xff]
  %v1286 = vld [vmem:[%s6 + $0x160] sm:$0xff]
  %v1287 = vld [vmem:[%s6 + $0x168] sm:$0xff]
  %v1288 = vld [vmem:[%s6 + $0x170] sm:$0xff]
  %v1289 = vld [vmem:[%s6 + $0x178] sm:$0xff]
  %v1290 = vld [vmem:[%s6 + $0x180] sm:$0xff]
  %v1291 = vld [vmem:[%s6 + $0x188] sm:$0xff]
  %v1292 = vld [vmem:[%s6 + $0x190] sm:$0xff]
  %v1293 = vld [vmem:[%s6 + $0x198] sm:$0xff]
  %v1294 = vld [vmem:[%s6 + $0x1a0] sm:$0xff]
  %v1295 = vld [vmem:[%s6 + $0x1a8] sm:$0xff]
  %v1296 = vld [vmem:[%s6 + $0x1b0] sm:$0xff]
  %v1297 = vld [vmem:[%s6 + $0x1b8] sm:$0xff]
  %v1298 = vld [vmem:[%s6 + $0x1c0] sm:$0xff]
  %v1299 = vld [vmem:[%s6 + $0x1c8] sm:$0xff]
  %v1300 = vld [vmem:[%s6 + $0x1d0] sm:$0xff]
  %v1301 = vld [vmem:[%s6 + $0x1d8] sm:$0xff]
  %v1302 = vld [vmem:[%s6 + $0x1e0] sm:$0xff]
  %v1303 = vld [vmem:[%s6 + $0x1e8] sm:$0xff]
  %v1304 = vld [vmem:[%s6 + $0x1f0] sm:$0xff]
  %v1305 = vld [vmem:[%s6 + $0x1f8] sm:$0xff]
  %v1370 = vunpack.c.l.b16 %v1242
  %v1371 = vunpack.c.h.b16 %v1242
  %v1372 = vunpack.c.l.b16 %v1243
  %v1373 = vunpack.c.h.b16 %v1243
  %v1374 = vunpack.c.l.b16 %v1244
  %v1375 = vunpack.c.h.b16 %v1244
  %v1376 = vunpack.c.l.b16 %v1245
  %v1377 = vunpack.c.h.b16 %v1245
  %v1378 = vunpack.c.l.b16 %v1246
  %v1379 = vunpack.c.h.b16 %v1246
  %v1380 = vunpack.c.l.b16 %v1247
  %v1381 = vunpack.c.h.b16 %v1247
  %v1382 = vunpack.c.l.b16 %v1248
  %v1383 = vunpack.c.h.b16 %v1248
  %v1384 = vunpack.c.l.b16 %v1249
  %v1385 = vunpack.c.h.b16 %v1249
  %v1386 = vunpack.c.l.b16 %v1250
  %v1387 = vunpack.c.h.b16 %v1250
  %v1388 = vunpack.c.l.b16 %v1251
  %v1389 = vunpack.c.h.b16 %v1251
  %v1390 = vunpack.c.l.b16 %v1252
  %v1391 = vunpack.c.h.b16 %v1252
  %v1392 = vunpack.c.l.b16 %v1253
  %v1393 = vunpack.c.h.b16 %v1253
  %v1394 = vunpack.c.l.b16 %v1254
  %v1395 = vunpack.c.h.b16 %v1254
  %v1396 = vunpack.c.l.b16 %v1255
  %v1397 = vunpack.c.h.b16 %v1255
  %v1398 = vunpack.c.l.b16 %v1256
  %v1399 = vunpack.c.h.b16 %v1256
  %v1400 = vunpack.c.l.b16 %v1257
  %v1401 = vunpack.c.h.b16 %v1257
  %v1402 = vunpack.c.l.b16 %v1258
  %v1403 = vunpack.c.h.b16 %v1258
  %v1404 = vunpack.c.l.b16 %v1259
  %v1405 = vunpack.c.h.b16 %v1259
  %v1406 = vunpack.c.l.b16 %v1260
  %v1407 = vunpack.c.h.b16 %v1260
  %v1408 = vunpack.c.l.b16 %v1261
  %v1409 = vunpack.c.h.b16 %v1261
  %v1410 = vunpack.c.l.b16 %v1262
  %v1411 = vunpack.c.h.b16 %v1262
  %v1412 = vunpack.c.l.b16 %v1263
  %v1413 = vunpack.c.h.b16 %v1263
  %v1414 = vunpack.c.l.b16 %v1264
  %v1415 = vunpack.c.h.b16 %v1264
  %v1416 = vunpack.c.l.b16 %v1265
  %v1417 = vunpack.c.h.b16 %v1265
  %v1418 = vunpack.c.l.b16 %v1266
  %v1419 = vunpack.c.h.b16 %v1266
  %v1420 = vunpack.c.l.b16 %v1267
  %v1421 = vunpack.c.h.b16 %v1267
  %v1422 = vunpack.c.l.b16 %v1268
  %v1423 = vunpack.c.h.b16 %v1268
  %v1424 = vunpack.c.l.b16 %v1269
  %v1425 = vunpack.c.h.b16 %v1269
  %v1426 = vunpack.c.l.b16 %v1270
  %v1427 = vunpack.c.h.b16 %v1270
  %v1428 = vunpack.c.l.b16 %v1271
  %v1429 = vunpack.c.h.b16 %v1271
  %v1430 = vunpack.c.l.b16 %v1272
  %v1431 = vunpack.c.h.b16 %v1272
  %v1432 = vunpack.c.l.b16 %v1273
  %v1433 = vunpack.c.h.b16 %v1273
  %v1434 = vunpack.c.l.b16 %v1274
  %v1435 = vunpack.c.h.b16 %v1274
  %v1436 = vunpack.c.l.b16 %v1275
  %v1437 = vunpack.c.h.b16 %v1275
  %v1438 = vunpack.c.l.b16 %v1276
  %v1439 = vunpack.c.h.b16 %v1276
  %v1440 = vunpack.c.l.b16 %v1277
  %v1441 = vunpack.c.h.b16 %v1277
  %v1442 = vunpack.c.l.b16 %v1278
  %v1443 = vunpack.c.h.b16 %v1278
  %v1444 = vunpack.c.l.b16 %v1279
  %v1445 = vunpack.c.h.b16 %v1279
  %v1446 = vunpack.c.l.b16 %v1280
  %v1447 = vunpack.c.h.b16 %v1280
  %v1448 = vunpack.c.l.b16 %v1281
  %v1449 = vunpack.c.h.b16 %v1281
  %v1450 = vunpack.c.l.b16 %v1282
  %v1451 = vunpack.c.h.b16 %v1282
  %v1452 = vunpack.c.l.b16 %v1283
  %v1453 = vunpack.c.h.b16 %v1283
  %v1454 = vunpack.c.l.b16 %v1284
  %v1455 = vunpack.c.h.b16 %v1284
  %v1456 = vunpack.c.l.b16 %v1285
  %v1457 = vunpack.c.h.b16 %v1285
  %v1458 = vunpack.c.l.b16 %v1286
  %v1459 = vunpack.c.h.b16 %v1286
  %v1460 = vunpack.c.l.b16 %v1287
  %v1461 = vunpack.c.h.b16 %v1287
  %v1462 = vunpack.c.l.b16 %v1288
  %v1463 = vunpack.c.h.b16 %v1288
  %v1464 = vunpack.c.l.b16 %v1289
  %v1465 = vunpack.c.h.b16 %v1289
  %v1466 = vunpack.c.l.b16 %v1290
  %v1467 = vunpack.c.h.b16 %v1290
  %v1468 = vunpack.c.l.b16 %v1291
  %v1469 = vunpack.c.h.b16 %v1291
  %v1470 = vunpack.c.l.b16 %v1292
  %v1471 = vunpack.c.h.b16 %v1292
  %v1472 = vunpack.c.l.b16 %v1293
  %v1473 = vunpack.c.h.b16 %v1293
  %v1474 = vunpack.c.l.b16 %v1294
  %v1475 = vunpack.c.h.b16 %v1294
  %v1476 = vunpack.c.l.b16 %v1295
  %v1477 = vunpack.c.h.b16 %v1295
  %v1478 = vunpack.c.l.b16 %v1296
  %v1479 = vunpack.c.h.b16 %v1296
  %v1480 = vunpack.c.l.b16 %v1297
  %v1481 = vunpack.c.h.b16 %v1297
  %v1482 = vunpack.c.l.b16 %v1298
  %v1483 = vunpack.c.h.b16 %v1298
  %v1484 = vunpack.c.l.b16 %v1299
  %v1485 = vunpack.c.h.b16 %v1299
  %v1486 = vunpack.c.l.b16 %v1300
  %v1487 = vunpack.c.h.b16 %v1300
  %v1488 = vunpack.c.l.b16 %v1301
  %v1489 = vunpack.c.h.b16 %v1301
  %v1490 = vunpack.c.l.b16 %v1302
  %v1491 = vunpack.c.h.b16 %v1302
  %v1492 = vunpack.c.l.b16 %v1303
  %v1493 = vunpack.c.h.b16 %v1303
  %v1494 = vunpack.c.l.b16 %v1304
  %v1495 = vunpack.c.h.b16 %v1304
  %v1496 = vunpack.c.l.b16 %v1305
  %v1497 = vunpack.c.h.b16 %v1305
  %v1498 = vpack.c.b16 %v1374, %v1370
  %v1499 = vpack.c.b16 %v1375, %v1371
  %v1500 = vpack.c.b16 %v1376, %v1372
  %v1501 = vpack.c.b16 %v1377, %v1373
  %v1502 = vpack.c.b16 %v1382, %v1378
  %v1503 = vpack.c.b16 %v1383, %v1379
  %v1504 = vpack.c.b16 %v1384, %v1380
  %v1505 = vpack.c.b16 %v1385, %v1381
  %v1506 = vpack.c.b16 %v1390, %v1386
  %v1507 = vpack.c.b16 %v1391, %v1387
  %v1508 = vpack.c.b16 %v1392, %v1388
  %v1509 = vpack.c.b16 %v1393, %v1389
  %v1510 = vpack.c.b16 %v1398, %v1394
  %v1511 = vpack.c.b16 %v1399, %v1395
  %v1512 = vpack.c.b16 %v1400, %v1396
  %v1513 = vpack.c.b16 %v1401, %v1397
  %v1514 = vpack.c.b16 %v1406, %v1402
  %v1515 = vpack.c.b16 %v1407, %v1403
  %v1516 = vpack.c.b16 %v1408, %v1404
  %v1517 = vpack.c.b16 %v1409, %v1405
  %v1518 = vpack.c.b16 %v1414, %v1410
  %v1519 = vpack.c.b16 %v1415, %v1411
  %v1520 = vpack.c.b16 %v1416, %v1412
  %v1521 = vpack.c.b16 %v1417, %v1413
  %v1522 = vpack.c.b16 %v1422, %v1418
  %v1523 = vpack.c.b16 %v1423, %v1419
  %v1524 = vpack.c.b16 %v1424, %v1420
  %v1525 = vpack.c.b16 %v1425, %v1421
  %v1526 = vpack.c.b16 %v1430, %v1426
  %v1527 = vpack.c.b16 %v1431, %v1427
  %v1528 = vpack.c.b16 %v1432, %v1428
  %v1529 = vpack.c.b16 %v1433, %v1429
  %v1530 = vpack.c.b16 %v1438, %v1434
  %v1531 = vpack.c.b16 %v1439, %v1435
  %v1532 = vpack.c.b16 %v1440, %v1436
  %v1533 = vpack.c.b16 %v1441, %v1437
  %v1534 = vpack.c.b16 %v1446, %v1442
  %v1535 = vpack.c.b16 %v1447, %v1443
  %v1536 = vpack.c.b16 %v1448, %v1444
  %v1537 = vpack.c.b16 %v1449, %v1445
  %v1538 = vpack.c.b16 %v1454, %v1450
  %v1539 = vpack.c.b16 %v1455, %v1451
  %v1540 = vpack.c.b16 %v1456, %v1452
  %v1541 = vpack.c.b16 %v1457, %v1453
  %v1542 = vpack.c.b16 %v1462, %v1458
  %v1543 = vpack.c.b16 %v1463, %v1459
  %v1544 = vpack.c.b16 %v1464, %v1460
  %v1545 = vpack.c.b16 %v1465, %v1461
  %v1546 = vpack.c.b16 %v1470, %v1466
  %v1547 = vpack.c.b16 %v1471, %v1467
  %v1548 = vpack.c.b16 %v1472, %v1468
  %v1549 = vpack.c.b16 %v1473, %v1469
  %v1550 = vpack.c.b16 %v1478, %v1474
  %v1551 = vpack.c.b16 %v1479, %v1475
  %v1552 = vpack.c.b16 %v1480, %v1476
  %v1553 = vpack.c.b16 %v1481, %v1477
  %v1554 = vpack.c.b16 %v1486, %v1482
  %v1555 = vpack.c.b16 %v1487, %v1483
  %v1556 = vpack.c.b16 %v1488, %v1484
  %v1557 = vpack.c.b16 %v1489, %v1485
  %v1558 = vpack.c.b16 %v1494, %v1490
  %v1559 = vpack.c.b16 %v1495, %v1491
  %v1560 = vpack.c.b16 %v1496, %v1492
  %v1561 = vpack.c.b16 %v1497, %v1493
  %1626 = vmatprep.subr.bf16.mxu0 %v1499
  %1627 = vmatpush1.bf16.msra.mxu0 %v1498
  %1628 = vmatprep.subr.bf16.mxu0 %v1503
  %1629 = vmatpush1.bf16.msra.mxu0 %v1502
  %1630 = vmatprep.subr.bf16.mxu0 %v1507
  %1631 = vmatpush1.bf16.msra.mxu0 %v1506
  %1632 = vmatprep.subr.bf16.mxu0 %v1511
  %1633 = vmatpush1.bf16.msra.mxu0 %v1510
  %1634 = vmatprep.subr.bf16.mxu0 %v1515
  %1635 = vmatpush1.bf16.msra.mxu0 %v1514
  %1636 = vmatprep.subr.bf16.mxu0 %v1519
  %1637 = vmatpush1.bf16.msra.mxu0 %v1518
  %1638 = vmatprep.subr.bf16.mxu0 %v1523
  %1639 = vmatpush1.bf16.msra.mxu0 %v1522
  %1640 = vmatprep.subr.bf16.mxu0 %v1527
  %1641 = vmatpush1.bf16.msra.mxu0 %v1526
  %1642 = vmatprep.subr.bf16.mxu0 %v1531
  %1643 = vmatpush1.bf16.msra.mxu0 %v1530
  %1644 = vmatprep.subr.bf16.mxu0 %v1535
  %1645 = vmatpush1.bf16.msra.mxu0 %v1534
  %1646 = vmatprep.subr.bf16.mxu0 %v1539
  %1647 = vmatpush1.bf16.msra.mxu0 %v1538
  %1648 = vmatprep.subr.bf16.mxu0 %v1543
  %1649 = vmatpush1.bf16.msra.mxu0 %v1542
  %1650 = vmatprep.subr.bf16.mxu0 %v1547
  %1651 = vmatpush1.bf16.msra.mxu0 %v1546
  %1652 = vmatprep.subr.bf16.mxu0 %v1551
  %1653 = vmatpush1.bf16.msra.mxu0 %v1550
  %1654 = vmatprep.subr.bf16.mxu0 %v1555
  %1655 = vmatpush1.bf16.msra.mxu0 %v1554
  %1656 = vmatprep.subr.bf16.mxu0 %v1559
  %1657 = vmatpush1.bf16.msra.mxu0 %v1558
  %1658 = vmatprep.mubr.bf16.mxu0 %v1211
  %1659 = vmatmul.mubr.bf16.gmra.mrb[0].mxu0 %v1210
  %v1660 = vpop.f32.mrb[0].mxu0
  %v1661 = vadd.f32 0.0, %v1660
  %v1662 = vpop.f32.mrb[0].mxu0
  %v1663 = vadd.f32 0.0, %v1662
  %v1664 = vpop.f32.mrb[0].mxu0
  %v1665 = vadd.f32 0.0, %v1664
  %v1666 = vpop.f32.mrb[0].mxu0
  %v1667 = vadd.f32 0.0, %v1666
  %1668 = vmatprep.mubr.bf16.mxu0 %v1213
  %1669 = vmatmul.mubr.bf16.gmra.mrb[0].mxu0 %v1212
  %v1670 = vpop.f32.mrb[0].mxu0
  %v1671 = vadd.f32 0.0, %v1670
  %v1672 = vpop.f32.mrb[0].mxu0
  %v1673 = vadd.f32 0.0, %v1672
  %v1674 = vpop.f32.mrb[0].mxu0
  %v1675 = vadd.f32 0.0, %v1674
  %v1676 = vpop.f32.mrb[0].mxu0
  %v1677 = vadd.f32 0.0, %v1676
  %1678 = vmatprep.mubr.bf16.mxu0 %v1215
  %1679 = vmatmul.mubr.bf16.gmra.mrb[0].mxu0 %v1214
  %v1680 = vpop.f32.mrb[0].mxu0
  %v1681 = vadd.f32 0.0, %v1680
  %v1682 = vpop.f32.mrb[0].mxu0
  %v1683 = vadd.f32 0.0, %v1682
  %v1684 = vpop.f32.mrb[0].mxu0
  %v1685 = vadd.f32 0.0, %v1684
  %v1686 = vpop.f32.mrb[0].mxu0
  %v1687 = vadd.f32 0.0, %v1686
  %1688 = vmatprep.mubr.bf16.mxu0 %v1217
  %1689 = vmatmul.mubr.bf16.gmra.mrb[0].mxu0 %v1216
  %v1690 = vpop.f32.mrb[0].mxu0
  %v1691 = vadd.f32 0.0, %v1690
  %v1692 = vpop.f32.mrb[0].mxu0
  %v1693 = vadd.f32 0.0, %v1692
  %v1694 = vpop.f32.mrb[0].mxu0
  %v1695 = vadd.f32 0.0, %v1694
  %v1696 = vpop.f32.mrb[0].mxu0
  %v1697 = vadd.f32 0.0, %v1696
  %1698 = vmatprep.mubr.bf16.mxu0 %v1219
  %1699 = vmatmul.mubr.bf16.gmra.mrb[0].mxu0 %v1218
  %v1700 = vpop.f32.mrb[0].mxu0
  %v1701 = vadd.f32 0.0, %v1700
  %v1702 = vpop.f32.mrb[0].mxu0
  %v1703 = vadd.f32 0.0, %v1702
  %v1704 = vpop.f32.mrb[0].mxu0
  %v1705 = vadd.f32 0.0, %v1704
  %v1706 = vpop.f32.mrb[0].mxu0
  %v1707 = vadd.f32 0.0, %v1706
  %1708 = vmatprep.mubr.bf16.mxu0 %v1221
  %1709 = vmatmul.mubr.bf16.gmra.mrb[0].mxu0 %v1220
  %v1710 = vpop.f32.mrb[0].mxu0
  %v1711 = vadd.f32 0.0, %v1710
  %v1712 = vpop.f32.mrb[0].mxu0
  %v1713 = vadd.f32 0.0, %v1712
  %v1714 = vpop.f32.mrb[0].mxu0
  %v1715 = vadd.f32 0.0, %v1714
  %v1716 = vpop.f32.mrb[0].mxu0
  %v1717 = vadd.f32 0.0, %v1716
  %1718 = vmatprep.mubr.bf16.mxu0 %v1223
  %1719 = vmatmul.mubr.bf16.gmra.mrb[0].mxu0 %v1222
  %v1720 = vpop.f32.mrb[0].mxu0
  %v1721 = vadd.f32 0.0, %v1720
  %v1722 = vpop.f32.mrb[0].mxu0
  %v1723 = vadd.f32 0.0, %v1722
  %v1724 = vpop.f32.mrb[0].mxu0
  %v1725 = vadd.f32 0.0, %v1724
  %v1726 = vpop.f32.mrb[0].mxu0
  %v1727 = vadd.f32 0.0, %v1726
  %1728 = vmatprep.mubr.bf16.mxu0 %v1225
  %1729 = vmatmul.mubr.bf16.gmra.mrb[0].mxu0 %v1224
  %v1730 = vpop.f32.mrb[0].mxu0
  %v1731 = vadd.f32 0.0, %v1730
  %v1732 = vpop.f32.mrb[0].mxu0
  %v1733 = vadd.f32 0.0, %v1732
  %v1734 = vpop.f32.mrb[0].mxu0
  %v1735 = vadd.f32 0.0, %v1734
  %v1736 = vpop.f32.mrb[0].mxu0
  %v1737 = vadd.f32 0.0, %v1736
  %1738 = vmatprep.mubr.bf16.mxu0 %v1227
  %1739 = vmatmul.mubr.bf16.gmra.mrb[0].mxu0 %v1226
  %v1740 = vpop.f32.mrb[0].mxu0
  %v1741 = vadd.f32 0.0, %v1740
  %v1742 = vpop.f32.mrb[0].mxu0
  %v1743 = vadd.f32 0.0, %v1742
  %v1744 = vpop.f32.mrb[0].mxu0
  %v1745 = vadd.f32 0.0, %v1744
  %v1746 = vpop.f32.mrb[0].mxu0
  %v1747 = vadd.f32 0.0, %v1746
  %1748 = vmatprep.mubr.bf16.mxu0 %v1229
  %1749 = vmatmul.mubr.bf16.gmra.mrb[0].mxu0 %v1228
  %v1750 = vpop.f32.mrb[0].mxu0
  %v1751 = vadd.f32 0.0, %v1750
  %v1752 = vpop.f32.mrb[0].mxu0
  %v1753 = vadd.f32 0.0, %v1752
  %v1754 = vpop.f32.mrb[0].mxu0
  %v1755 = vadd.f32 0.0, %v1754
  %v1756 = vpop.f32.mrb[0].mxu0
  %v1757 = vadd.f32 0.0, %v1756
  %1758 = vmatprep.mubr.bf16.mxu0 %v1231
  %1759 = vmatmul.mubr.bf16.gmra.mrb[0].mxu0 %v1230
  %v1760 = vpop.f32.mrb[0].mxu0
  %v1761 = vadd.f32 0.0, %v1760
  %v1762 = vpop.f32.mrb[0].mxu0
  %v1763 = vadd.f32 0.0, %v1762
  %v1764 = vpop.f32.mrb[0].mxu0
  %v1765 = vadd.f32 0.0, %v1764
  %v1766 = vpop.f32.mrb[0].mxu0
  %v1767 = vadd.f32 0.0, %v1766
  %1768 = vmatprep.mubr.bf16.mxu0 %v1233
  %1769 = vmatmul.mubr.bf16.gmra.mrb[0].mxu0 %v1232
  %v1770 = vpop.f32.mrb[0].mxu0
  %v1771 = vadd.f32 0.0, %v1770
  %v1772 = vpop.f32.mrb[0].mxu0
  %v1773 = vadd.f32 0.0, %v1772
  %v1774 = vpop.f32.mrb[0].mxu0
  %v1775 = vadd.f32 0.0, %v1774
  %v1776 = vpop.f32.mrb[0].mxu0
  %v1777 = vadd.f32 0.0, %v1776
  %1778 = vmatprep.mubr.bf16.mxu0 %v1235
  %1779 = vmatmul.mubr.bf16.gmra.mrb[0].mxu0 %v1234
  %v1780 = vpop.f32.mrb[0].mxu0
  %v1781 = vadd.f32 0.0, %v1780
  %v1782 = vpop.f32.mrb[0].mxu0
  %v1783 = vadd.f32 0.0, %v1782
  %v1784 = vpop.f32.mrb[0].mxu0
  %v1785 = vadd.f32 0.0, %v1784
  %v1786 = vpop.f32.mrb[0].mxu0
  %v1787 = vadd.f32 0.0, %v1786
  %1788 = vmatprep.mubr.bf16.mxu0 %v1237
  %1789 = vmatmul.mubr.bf16.gmra.mrb[0].mxu0 %v1236
  %v1790 = vpop.f32.mrb[0].mxu0
  %v1791 = vadd.f32 0.0, %v1790
  %v1792 = vpop.f32.mrb[0].mxu0
  %v1793 = vadd.f32 0.0, %v1792
  %v1794 = vpop.f32.mrb[0].mxu0
  %v1795 = vadd.f32 0.0, %v1794
  %v1796 = vpop.f32.mrb[0].mxu0
  %v1797 = vadd.f32 0.0, %v1796
  %1798 = vmatprep.mubr.bf16.mxu0 %v1239
  %1799 = vmatmul.mubr.bf16.gmra.mrb[0].mxu0 %v1238
  %v1800 = vpop.f32.mrb[0].mxu0
  %v1801 = vadd.f32 0.0, %v1800
  %v1802 = vpop.f32.mrb[0].mxu0
  %v1803 = vadd.f32 0.0, %v1802
  %v1804 = vpop.f32.mrb[0].mxu0
  %v1805 = vadd.f32 0.0, %v1804
  %v1806 = vpop.f32.mrb[0].mxu0
  %v1807 = vadd.f32 0.0, %v1806
  %1808 = vmatprep.mubr.bf16.mxu0 %v1241
  %1809 = vmatmul.mubr.bf16.gmra.mrb[0].mxu0 %v1240
  %v1810 = vpop.f32.mrb[0].mxu0
  %v1811 = vadd.f32 0.0, %v1810
  %v1812 = vpop.f32.mrb[0].mxu0
  %v1813 = vadd.f32 0.0, %v1812
  %v1814 = vpop.f32.mrb[0].mxu0
  %v1815 = vadd.f32 0.0, %v1814
  %v1816 = vpop.f32.mrb[0].mxu0
  %v1817 = vadd.f32 0.0, %v1816
  %1818 = vdwg.mxu0
  %1819 = vmatprep.subr.bf16.mxu0 %v1501
  %1820 = vmatpush1.bf16.msra.mxu0 %v1500
  %1821 = vmatprep.subr.bf16.mxu0 %v1505
  %1822 = vmatpush1.bf16.msra.mxu0 %v1504
  %1823 = vmatprep.subr.bf16.mxu0 %v1509
  %1824 = vmatpush1.bf16.msra.mxu0 %v1508
  %1825 = vmatprep.subr.bf16.mxu0 %v1513
  %1826 = vmatpush1.bf16.msra.mxu0 %v1512
  %1827 = vmatprep.subr.bf16.mxu0 %v1517
  %1828 = vmatpush1.bf16.msra.mxu0 %v1516
  %1829 = vmatprep.subr.bf16.mxu0 %v1521
  %1830 = vmatpush1.bf16.msra.mxu0 %v1520
  %1831 = vmatprep.subr.bf16.mxu0 %v1525
  %1832 = vmatpush1.bf16.msra.mxu0 %v1524
  %1833 = vmatprep.subr.bf16.mxu0 %v1529
  %1834 = vmatpush1.bf16.msra.mxu0 %v1528
  %1835 = vmatprep.subr.bf16.mxu0 %v1533
  %1836 = vmatpush1.bf16.msra.mxu0 %v1532
  %1837 = vmatprep.subr.bf16.mxu0 %v1537
  %1838 = vmatpush1.bf16.msra.mxu0 %v1536
  %1839 = vmatprep.subr.bf16.mxu0 %v1541
  %1840 = vmatpush1.bf16.msra.mxu0 %v1540
  %1841 = vmatprep.subr.bf16.mxu0 %v1545
  %1842 = vmatpush1.bf16.msra.mxu0 %v1544
  %1843 = vmatprep.subr.bf16.mxu0 %v1549
  %1844 = vmatpush1.bf16.msra.mxu0 %v1548
  %1845 = vmatprep.subr.bf16.mxu0 %v1553
  %1846 = vmatpush1.bf16.msra.mxu0 %v1552
  %1847 = vmatprep.subr.bf16.mxu0 %v1557
  %1848 = vmatpush1.bf16.msra.mxu0 %v1556
  %1849 = vmatprep.subr.bf16.mxu0 %v1561
  %1850 = vmatpush1.bf16.msra.mxu0 %v1560
  %1851 = vmatprep.mubr.bf16.mxu0 %v1211
  %1852 = vmatmul.mubr.bf16.gmra.mrb[0].mxu0 %v1210
  %v1853 = vpop.f32.mrb[0].mxu0
  %v1854 = vadd.f32 0.0, %v1853
  %v1855 = vpop.f32.mrb[0].mxu0
  %v1856 = vadd.f32 0.0, %v1855
  %v1857 = vpop.f32.mrb[0].mxu0
  %v1858 = vadd.f32 0.0, %v1857
  %v1859 = vpop.f32.mrb[0].mxu0
  %v1860 = vadd.f32 0.0, %v1859
  %1861 = vmatprep.mubr.bf16.mxu0 %v1213
  %1862 = vmatmul.mubr.bf16.gmra.mrb[0].mxu0 %v1212
  %v1863 = vpop.f32.mrb[0].mxu0
  %v1864 = vadd.f32 0.0, %v1863
  %v1865 = vpop.f32.mrb[0].mxu0
  %v1866 = vadd.f32 0.0, %v1865
  %v1867 = vpop.f32.mrb[0].mxu0
  %v1868 = vadd.f32 0.0, %v1867
  %v1869 = vpop.f32.mrb[0].mxu0
  %v1870 = vadd.f32 0.0, %v1869
  %1871 = vmatprep.mubr.bf16.mxu0 %v1215
  %1872 = vmatmul.mubr.bf16.gmra.mrb[0].mxu0 %v1214
  %v1873 = vpop.f32.mrb[0].mxu0
  %v1874 = vadd.f32 0.0, %v1873
  %v1875 = vpop.f32.mrb[0].mxu0
  %v1876 = vadd.f32 0.0, %v1875
  %v1877 = vpop.f32.mrb[0].mxu0
  %v1878 = vadd.f32 0.0, %v1877
  %v1879 = vpop.f32.mrb[0].mxu0
  %v1880 = vadd.f32 0.0, %v1879
  %1881 = vmatprep.mubr.bf16.mxu0 %v1217
  %1882 = vmatmul.mubr.bf16.gmra.mrb[0].mxu0 %v1216
  %v1883 = vpop.f32.mrb[0].mxu0
  %v1884 = vadd.f32 0.0, %v1883
  %v1885 = vpop.f32.mrb[0].mxu0
  %v1886 = vadd.f32 0.0, %v1885
  %v1887 = vpop.f32.mrb[0].mxu0
  %v1888 = vadd.f32 0.0, %v1887
  %v1889 = vpop.f32.mrb[0].mxu0
  %v1890 = vadd.f32 0.0, %v1889
  %1891 = vmatprep.mubr.bf16.mxu0 %v1219
  %1892 = vmatmul.mubr.bf16.gmra.mrb[0].mxu0 %v1218
  %v1893 = vpop.f32.mrb[0].mxu0
  %v1894 = vadd.f32 0.0, %v1893
  %v1895 = vpop.f32.mrb[0].mxu0
  %v1896 = vadd.f32 0.0, %v1895
  %v1897 = vpop.f32.mrb[0].mxu0
  %v1898 = vadd.f32 0.0, %v1897
  %v1899 = vpop.f32.mrb[0].mxu0
  %v1900 = vadd.f32 0.0, %v1899
  %1901 = vmatprep.mubr.bf16.mxu0 %v1221
  %1902 = vmatmul.mubr.bf16.gmra.mrb[0].mxu0 %v1220
  %v1903 = vpop.f32.mrb[0].mxu0
  %v1904 = vadd.f32 0.0, %v1903
  %v1905 = vpop.f32.mrb[0].mxu0
  %v1906 = vadd.f32 0.0, %v1905
  %v1907 = vpop.f32.mrb[0].mxu0
  %v1908 = vadd.f32 0.0, %v1907
  %v1909 = vpop.f32.mrb[0].mxu0
  %v1910 = vadd.f32 0.0, %v1909
  %1911 = vmatprep.mubr.bf16.mxu0 %v1223
  %1912 = vmatmul.mubr.bf16.gmra.mrb[0].mxu0 %v1222
  %v1913 = vpop.f32.mrb[0].mxu0
  %v1914 = vadd.f32 0.0, %v1913
  %v1915 = vpop.f32.mrb[0].mxu0
  %v1916 = vadd.f32 0.0, %v1915
  %v1917 = vpop.f32.mrb[0].mxu0
  %v1918 = vadd.f32 0.0, %v1917
  %v1919 = vpop.f32.mrb[0].mxu0
  %v1920 = vadd.f32 0.0, %v1919
  %1921 = vmatprep.mubr.bf16.mxu0 %v1225
  %1922 = vmatmul.mubr.bf16.gmra.mrb[0].mxu0 %v1224
  %v1923 = vpop.f32.mrb[0].mxu0
  %v1924 = vadd.f32 0.0, %v1923
  %v1925 = vpop.f32.mrb[0].mxu0
  %v1926 = vadd.f32 0.0, %v1925
  %v1927 = vpop.f32.mrb[0].mxu0
  %v1928 = vadd.f32 0.0, %v1927
  %v1929 = vpop.f32.mrb[0].mxu0
  %v1930 = vadd.f32 0.0, %v1929
  %1931 = vmatprep.mubr.bf16.mxu0 %v1227
  %1932 = vmatmul.mubr.bf16.gmra.mrb[0].mxu0 %v1226
  %v1933 = vpop.f32.mrb[0].mxu0
  %v1934 = vadd.f32 0.0, %v1933
  %v1935 = vpop.f32.mrb[0].mxu0
  %v1936 = vadd.f32 0.0, %v1935
  %v1937 = vpop.f32.mrb[0].mxu0
  %v1938 = vadd.f32 0.0, %v1937
  %v1939 = vpop.f32.mrb[0].mxu0
  %v1940 = vadd.f32 0.0, %v1939
  %1941 = vmatprep.mubr.bf16.mxu0 %v1229
  %1942 = vmatmul.mubr.bf16.gmra.mrb[0].mxu0 %v1228
  %v1943 = vpop.f32.mrb[0].mxu0
  %v1944 = vadd.f32 0.0, %v1943
  %v1945 = vpop.f32.mrb[0].mxu0
  %v1946 = vadd.f32 0.0, %v1945
  %v1947 = vpop.f32.mrb[0].mxu0
  %v1948 = vadd.f32 0.0, %v1947
  %v1949 = vpop.f32.mrb[0].mxu0
  %v1950 = vadd.f32 0.0, %v1949
  %1951 = vmatprep.mubr.bf16.mxu0 %v1231
  %1952 = vmatmul.mubr.bf16.gmra.mrb[0].mxu0 %v1230
  %v1953 = vpop.f32.mrb[0].mxu0
  %v1954 = vadd.f32 0.0, %v1953
  %v1955 = vpop.f32.mrb[0].mxu0
  %v1956 = vadd.f32 0.0, %v1955
  %v1957 = vpop.f32.mrb[0].mxu0
  %v1958 = vadd.f32 0.0, %v1957
  %v1959 = vpop.f32.mrb[0].mxu0
  %v1960 = vadd.f32 0.0, %v1959
  %1961 = vmatprep.mubr.bf16.mxu0 %v1233
  %1962 = vmatmul.mubr.bf16.gmra.mrb[0].mxu0 %v1232
  %v1963 = vpop.f32.mrb[0].mxu0
  %v1964 = vadd.f32 0.0, %v1963
  %v1965 = vpop.f32.mrb[0].mxu0
  %v1966 = vadd.f32 0.0, %v1965
  %v1967 = vpop.f32.mrb[0].mxu0
  %v1968 = vadd.f32 0.0, %v1967
  %v1969 = vpop.f32.mrb[0].mxu0
  %v1970 = vadd.f32 0.0, %v1969
  %1971 = vmatprep.mubr.bf16.mxu0 %v1235
  %1972 = vmatmul.mubr.bf16.gmra.mrb[0].mxu0 %v1234
  %v1973 = vpop.f32.mrb[0].mxu0
  %v1974 = vadd.f32 0.0, %v1973
  %v1975 = vpop.f32.mrb[0].mxu0
  %v1976 = vadd.f32 0.0, %v1975
  %v1977 = vpop.f32.mrb[0].mxu0
  %v1978 = vadd.f32 0.0, %v1977
  %v1979 = vpop.f32.mrb[0].mxu0
  %v1980 = vadd.f32 0.0, %v1979
  %1981 = vmatprep.mubr.bf16.mxu0 %v1237
  %1982 = vmatmul.mubr.bf16.gmra.mrb[0].mxu0 %v1236
  %v1983 = vpop.f32.mrb[0].mxu0
  %v1984 = vadd.f32 0.0, %v1983
  %v1985 = vpop.f32.mrb[0].mxu0
  %v1986 = vadd.f32 0.0, %v1985
  %v1987 = vpop.f32.mrb[0].mxu0
  %v1988 = vadd.f32 0.0, %v1987
  %v1989 = vpop.f32.mrb[0].mxu0
  %v1990 = vadd.f32 0.0, %v1989
  %1991 = vmatprep.mubr.bf16.mxu0 %v1239
  %1992 = vmatmul.mubr.bf16.gmra.mrb[0].mxu0 %v1238
  %v1993 = vpop.f32.mrb[0].mxu0
  %v1994 = vadd.f32 0.0, %v1993
  %v1995 = vpop.f32.mrb[0].mxu0
  %v1996 = vadd.f32 0.0, %v1995
  %v1997 = vpop.f32.mrb[0].mxu0
  %v1998 = vadd.f32 0.0, %v1997
  %v1999 = vpop.f32.mrb[0].mxu0
  %v2000 = vadd.f32 0.0, %v1999
  %2001 = vmatprep.mubr.bf16.mxu0 %v1241
  %2002 = vmatmul.mubr.bf16.gmra.mrb[0].mxu0 %v1240
  %v2003 = vpop.f32.mrb[0].mxu0
  %v2004 = vadd.f32 0.0, %v2003
  %v2005 = vpop.f32.mrb[0].mxu0
  %v2006 = vadd.f32 0.0, %v2005
  %v2007 = vpop.f32.mrb[0].mxu0
  %v2008 = vadd.f32 0.0, %v2007
  %v2009 = vpop.f32.mrb[0].mxu0
  %v2010 = vadd.f32 0.0, %v2009
  %2011 = vdwg.mxu0
  %v2012 = vld [vmem:[%s7] sm:$0xf]
  %v2013 = vld [vmem:[%s8] sm:$0xf]
  %2014 = vmatprep.subr.mxu0 %v1663
  %2015 = vmatpush1.msra.mxu0 %v1661
  %2016 = vmatprep.subr.mxu0 %v1667
  %2017 = vmatpush1.msra.mxu0 %v1665
  %2018 = vmatprep.subr.mxu0 %v1673
  %2019 = vmatpush1.msra.mxu0 %v1671
  %2020 = vmatprep.subr.mxu0 %v1677
  %2021 = vmatpush1.msra.mxu0 %v1675
  %2022 = vmatprep.subr.mxu0 %v1683
  %2023 = vmatpush1.msra.mxu0 %v1681
  %2024 = vmatprep.subr.mxu0 %v1687
  %2025 = vmatpush1.msra.mxu0 %v1685
  %2026 = vmatprep.subr.mxu0 %v1693
  %2027 = vmatpush1.msra.mxu0 %v1691
  %2028 = vmatprep.subr.mxu0 %v1697
  %2029 = vmatpush1.msra.mxu0 %v1695
  %2030 = vmatprep.subr.mxu0 %v1703
  %2031 = vmatpush1.msra.mxu0 %v1701
  %2032 = vmatprep.subr.mxu0 %v1707
  %2033 = vmatpush1.msra.mxu0 %v1705
  %2034 = vmatprep.subr.mxu0 %v1713
  %2035 = vmatpush1.msra.mxu0 %v1711
  %2036 = vmatprep.subr.mxu0 %v1717
  %2037 = vmatpush1.msra.mxu0 %v1715
  %2038 = vmatprep.subr.mxu0 %v1723
  %2039 = vmatpush1.msra.mxu0 %v1721
  %2040 = vmatprep.subr.mxu0 %v1727
  %2041 = vmatpush1.msra.mxu0 %v1725
  %2042 = vmatprep.subr.mxu0 %v1733
  %2043 = vmatpush1.msra.mxu0 %v1731
  %2044 = vmatprep.subr.mxu0 %v1737
  %2045 = vmatpush1.msra.mxu0 %v1735
  %2046 = vmatprep.subr.mxu0 %v1743
  %2047 = vmatpush1.msra.mxu0 %v1741
  %2048 = vmatprep.subr.mxu0 %v1747
  %2049 = vmatpush1.msra.mxu0 %v1745
  %2050 = vmatprep.subr.mxu0 %v1753
  %2051 = vmatpush1.msra.mxu0 %v1751
  %2052 = vmatprep.subr.mxu0 %v1757
  %2053 = vmatpush1.msra.mxu0 %v1755
  %2054 = vmatprep.subr.mxu0 %v1763
  %2055 = vmatpush1.msra.mxu0 %v1761
  %2056 = vmatprep.subr.mxu0 %v1767
  %2057 = vmatpush1.msra.mxu0 %v1765
  %2058 = vmatprep.subr.mxu0 %v1773
  %2059 = vmatpush1.msra.mxu0 %v1771
  %2060 = vmatprep.subr.mxu0 %v1777
  %2061 = vmatpush1.msra.mxu0 %v1775
  %2062 = vmatprep.subr.mxu0 %v1783
  %2063 = vmatpush1.msra.mxu0 %v1781
  %2064 = vmatprep.subr.mxu0 %v1787
  %2065 = vmatpush1.msra.mxu0 %v1785
  %2066 = vmatprep.subr.mxu0 %v1793
  %2067 = vmatpush1.msra.mxu0 %v1791
  %2068 = vmatprep.subr.mxu0 %v1797
  %2069 = vmatpush1.msra.mxu0 %v1795
  %2070 = vmatprep.subr.mxu0 %v1803
  %2071 = vmatpush1.msra.mxu0 %v1801
  %2072 = vmatprep.subr.mxu0 %v1807
  %2073 = vmatpush1.msra.mxu0 %v1805
  %2074 = vmatprep.subr.mxu0 %v1813
  %2075 = vmatpush1.msra.mxu0 %v1811
  %2076 = vmatprep.subr.mxu0 %v1817
  %2077 = vmatpush1.msra.mxu0 %v1815
  %2078 = vmatprep.mubr.f32.mxu0 1.0
  %2079 = vmatmul.mubr.f32.gmra.mrb[0].mxu0 1.0
  %v2080 = vpop.f32.mrb[0].mxu0
  %v2081 = vadd.f32 0.0, %v2080
  %v2082 = vpop.f32.mrb[0].mxu0
  %v2083 = vadd.f32 0.0, %v2082
  %2084 = vdwg.mxu0
  %2085 = vmatprep.subr.mxu0 %v1856
  %2086 = vmatpush1.msra.mxu0 %v1854
  %2087 = vmatprep.subr.mxu0 %v1860
  %2088 = vmatpush1.msra.mxu0 %v1858
  %2089 = vmatprep.subr.mxu0 %v1866
  %2090 = vmatpush1.msra.mxu0 %v1864
  %2091 = vmatprep.subr.mxu0 %v1870
  %2092 = vmatpush1.msra.mxu0 %v1868
  %2093 = vmatprep.subr.mxu0 %v1876
  %2094 = vmatpush1.msra.mxu0 %v1874
  %2095 = vmatprep.subr.mxu0 %v1880
  %2096 = vmatpush1.msra.mxu0 %v1878
  %2097 = vmatprep.subr.mxu0 %v1886
  %2098 = vmatpush1.msra.mxu0 %v1884
  %2099 = vmatprep.subr.mxu0 %v1890
  %2100 = vmatpush1.msra.mxu0 %v1888
  %2101 = vmatprep.subr.mxu0 %v1896
  %2102 = vmatpush1.msra.mxu0 %v1894
  %2103 = vmatprep.subr.mxu0 %v1900
  %2104 = vmatpush1.msra.mxu0 %v1898
  %2105 = vmatprep.subr.mxu0 %v1906
  %2106 = vmatpush1.msra.mxu0 %v1904
  %2107 = vmatprep.subr.mxu0 %v1910
  %2108 = vmatpush1.msra.mxu0 %v1908
  %2109 = vmatprep.subr.mxu0 %v1916
  %2110 = vmatpush1.msra.mxu0 %v1914
  %2111 = vmatprep.subr.mxu0 %v1920
  %2112 = vmatpush1.msra.mxu0 %v1918
  %2113 = vmatprep.subr.mxu0 %v1926
  %2114 = vmatpush1.msra.mxu0 %v1924
  %2115 = vmatprep.subr.mxu0 %v1930
  %2116 = vmatpush1.msra.mxu0 %v1928
  %2117 = vmatprep.subr.mxu0 %v1936
  %2118 = vmatpush1.msra.mxu0 %v1934
  %2119 = vmatprep.subr.mxu0 %v1940
  %2120 = vmatpush1.msra.mxu0 %v1938
  %2121 = vmatprep.subr.mxu0 %v1946
  %2122 = vmatpush1.msra.mxu0 %v1944
  %2123 = vmatprep.subr.mxu0 %v1950
  %2124 = vmatpush1.msra.mxu0 %v1948
  %2125 = vmatprep.subr.mxu0 %v1956
  %2126 = vmatpush1.msra.mxu0 %v1954
  %2127 = vmatprep.subr.mxu0 %v1960
  %2128 = vmatpush1.msra.mxu0 %v1958
  %2129 = vmatprep.subr.mxu0 %v1966
  %2130 = vmatpush1.msra.mxu0 %v1964
  %2131 = vmatprep.subr.mxu0 %v1970
  %2132 = vmatpush1.msra.mxu0 %v1968
  %2133 = vmatprep.subr.mxu0 %v1976
  %2134 = vmatpush1.msra.mxu0 %v1974
  %2135 = vmatprep.subr.mxu0 %v1980
  %2136 = vmatpush1.msra.mxu0 %v1978
  %2137 = vmatprep.subr.mxu0 %v1986
  %2138 = vmatpush1.msra.mxu0 %v1984
  %2139 = vmatprep.subr.mxu0 %v1990
  %2140 = vmatpush1.msra.mxu0 %v1988
  %2141 = vmatprep.subr.mxu0 %v1996
  %2142 = vmatpush1.msra.mxu0 %v1994
  %2143 = vmatprep.subr.mxu0 %v2000
  %2144 = vmatpush1.msra.mxu0 %v1998
  %2145 = vmatprep.subr.mxu0 %v2006
  %2146 = vmatpush1.msra.mxu0 %v2004
  %2147 = vmatprep.subr.mxu0 %v2010
  %2148 = vmatpush1.msra.mxu0 %v2008
  %2149 = vmatprep.mubr.f32.mxu0 1.0
  %2150 = vmatmul.mubr.f32.gmra.mrb[0].mxu0 1.0
  %v2151 = vpop.f32.mrb[0].mxu0
  %v2152 = vadd.f32 0.0, %v2151
  %v2153 = vpop.f32.mrb[0].mxu0
  %v2154 = vadd.f32 0.0, %v2153
  %2155 = vdwg.mxu0
  %v2156 = vmul.f32 %v2081, 0.00390625
  %v2157 = vmul.f32 %v2083, 0.00390625
  %v2158 = vmul.f32 %v2152, 0.00390625
  %v2159 = vmul.f32 %v2154, 0.00390625
  %v2160 = vmul.f32 %v1661, %v1661
  %v2161 = vmul.f32 %v1663, %v1663
  %v2162 = vmul.f32 %v1854, %v1854
  %v2163 = vmul.f32 %v1856, %v1856
  %v2164 = vmul.f32 %v1665, %v1665
  %v2165 = vmul.f32 %v1667, %v1667
  %v2166 = vmul.f32 %v1858, %v1858
  %v2167 = vmul.f32 %v1860, %v1860
  %v2168 = vmul.f32 %v1671, %v1671
  %v2169 = vmul.f32 %v1673, %v1673
  %v2170 = vmul.f32 %v1864, %v1864
  %v2171 = vmul.f32 %v1866, %v1866
  %v2172 = vmul.f32 %v1675, %v1675
  %v2173 = vmul.f32 %v1677, %v1677
  %v2174 = vmul.f32 %v1868, %v1868
  %v2175 = vmul.f32 %v1870, %v1870
  %v2176 = vmul.f32 %v1681, %v1681
  %v2177 = vmul.f32 %v1683, %v1683
  %v2178 = vmul.f32 %v1874, %v1874
  %v2179 = vmul.f32 %v1876, %v1876
  %v2180 = vmul.f32 %v1685, %v1685
  %v2181 = vmul.f32 %v1687, %v1687
  %v2182 = vmul.f32 %v1878, %v1878
  %v2183 = vmul.f32 %v1880, %v1880
  %v2184 = vmul.f32 %v1691, %v1691
  %v2185 = vmul.f32 %v1693, %v1693
  %v2186 = vmul.f32 %v1884, %v1884
  %v2187 = vmul.f32 %v1886, %v1886
  %v2188 = vmul.f32 %v1695, %v1695
  %v2189 = vmul.f32 %v1697, %v1697
  %v2190 = vmul.f32 %v1888, %v1888
  %v2191 = vmul.f32 %v1890, %v1890
  %v2192 = vmul.f32 %v1701, %v1701
  %v2193 = vmul.f32 %v1703, %v1703
  %v2194 = vmul.f32 %v1894, %v1894
  %v2195 = vmul.f32 %v1896, %v1896
  %v2196 = vmul.f32 %v1705, %v1705
  %v2197 = vmul.f32 %v1707, %v1707
  %v2198 = vmul.f32 %v1898, %v1898
  %v2199 = vmul.f32 %v1900, %v1900
  %v2200 = vmul.f32 %v1711, %v1711
  %v2201 = vmul.f32 %v1713, %v1713
  %v2202 = vmul.f32 %v1904, %v1904
  %v2203 = vmul.f32 %v1906, %v1906
  %v2204 = vmul.f32 %v1715, %v1715
  %v2205 = vmul.f32 %v1717, %v1717
  %v2206 = vmul.f32 %v1908, %v1908
  %v2207 = vmul.f32 %v1910, %v1910
  %v2208 = vmul.f32 %v1721, %v1721
  %v2209 = vmul.f32 %v1723, %v1723
  %v2210 = vmul.f32 %v1914, %v1914
  %v2211 = vmul.f32 %v1916, %v1916
  %v2212 = vmul.f32 %v1725, %v1725
  %v2213 = vmul.f32 %v1727, %v1727
  %v2214 = vmul.f32 %v1918, %v1918
  %v2215 = vmul.f32 %v1920, %v1920
  %v2216 = vmul.f32 %v1731, %v1731
  %v2217 = vmul.f32 %v1733, %v1733
  %v2218 = vmul.f32 %v1924, %v1924
  %v2219 = vmul.f32 %v1926, %v1926
  %v2220 = vmul.f32 %v1735, %v1735
  %v2221 = vmul.f32 %v1737, %v1737
  %v2222 = vmul.f32 %v1928, %v1928
  %v2223 = vmul.f32 %v1930, %v1930
  %v2224 = vmul.f32 %v1741, %v1741
  %v2225 = vmul.f32 %v1743, %v1743
  %v2226 = vmul.f32 %v1934, %v1934
  %v2227 = vmul.f32 %v1936, %v1936
  %v2228 = vmul.f32 %v1745, %v1745
  %v2229 = vmul.f32 %v1747, %v1747
  %v2230 = vmul.f32 %v1938, %v1938
  %v2231 = vmul.f32 %v1940, %v1940
  %v2232 = vmul.f32 %v1751, %v1751
  %v2233 = vmul.f32 %v1753, %v1753
  %v2234 = vmul.f32 %v1944, %v1944
  %v2235 = vmul.f32 %v1946, %v1946
  %v2236 = vmul.f32 %v1755, %v1755
  %v2237 = vmul.f32 %v1757, %v1757
  %v2238 = vmul.f32 %v1948, %v1948
  %v2239 = vmul.f32 %v1950, %v1950
  %v2240 = vmul.f32 %v1761, %v1761
  %v2241 = vmul.f32 %v1763, %v1763
  %v2242 = vmul.f32 %v1954, %v1954
  %v2243 = vmul.f32 %v1956, %v1956
  %v2244 = vmul.f32 %v1765, %v1765
  %v2245 = vmul.f32 %v1767, %v1767
  %v2246 = vmul.f32 %v1958, %v1958
  %v2247 = vmul.f32 %v1960, %v1960
  %v2248 = vmul.f32 %v1771, %v1771
  %v2249 = vmul.f32 %v1773, %v1773
  %v2250 = vmul.f32 %v1964, %v1964
  %v2251 = vmul.f32 %v1966, %v1966
  %v2252 = vmul.f32 %v1775, %v1775
  %v2253 = vmul.f32 %v1777, %v1777
  %v2254 = vmul.f32 %v1968, %v1968
  %v2255 = vmul.f32 %v1970, %v1970
  %v2256 = vmul.f32 %v1781, %v1781
  %v2257 = vmul.f32 %v1783, %v1783
  %v2258 = vmul.f32 %v1974, %v1974
  %v2259 = vmul.f32 %v1976, %v1976
  %v2260 = vmul.f32 %v1785, %v1785
  %v2261 = vmul.f32 %v1787, %v1787
  %v2262 = vmul.f32 %v1978, %v1978
  %v2263 = vmul.f32 %v1980, %v1980
  %v2264 = vmul.f32 %v1791, %v1791
  %v2265 = vmul.f32 %v1793, %v1793
  %v2266 = vmul.f32 %v1984, %v1984
  %v2267 = vmul.f32 %v1986, %v1986
  %v2268 = vmul.f32 %v1795, %v1795
  %v2269 = vmul.f32 %v1797, %v1797
  %v2270 = vmul.f32 %v1988, %v1988
  %v2271 = vmul.f32 %v1990, %v1990
  %v2272 = vmul.f32 %v1801, %v1801
  %v2273 = vmul.f32 %v1803, %v1803
  %v2274 = vmul.f32 %v1994, %v1994
  %v2275 = vmul.f32 %v1996, %v1996
  %v2276 = vmul.f32 %v1805, %v1805
  %v2277 = vmul.f32 %v1807, %v1807
  %v2278 = vmul.f32 %v1998, %v1998
  %v2279 = vmul.f32 %v2000, %v2000
  %v2280 = vmul.f32 %v1811, %v1811
  %v2281 = vmul.f32 %v1813, %v1813
  %v2282 = vmul.f32 %v2004, %v2004
  %v2283 = vmul.f32 %v2006, %v2006
  %v2284 = vmul.f32 %v1815, %v1815
  %v2285 = vmul.f32 %v1817, %v1817
  %v2286 = vmul.f32 %v2008, %v2008
  %v2287 = vmul.f32 %v2010, %v2010
  %2288 = vmatprep.subr.mxu0 %v2161
  %2289 = vmatpush1.msra.mxu0 %v2160
  %2290 = vmatprep.subr.mxu0 %v2165
  %2291 = vmatpush1.msra.mxu0 %v2164
  %2292 = vmatprep.subr.mxu0 %v2169
  %2293 = vmatpush1.msra.mxu0 %v2168
  %2294 = vmatprep.subr.mxu0 %v2173
  %2295 = vmatpush1.msra.mxu0 %v2172
  %2296 = vmatprep.subr.mxu0 %v2177
  %2297 = vmatpush1.msra.mxu0 %v2176
  %2298 = vmatprep.subr.mxu0 %v2181
  %2299 = vmatpush1.msra.mxu0 %v2180
  %2300 = vmatprep.subr.mxu0 %v2185
  %2301 = vmatpush1.msra.mxu0 %v2184
  %2302 = vmatprep.subr.mxu0 %v2189
  %2303 = vmatpush1.msra.mxu0 %v2188
  %2304 = vmatprep.subr.mxu0 %v2193
  %2305 = vmatpush1.msra.mxu0 %v2192
  %2306 = vmatprep.subr.mxu0 %v2197
  %2307 = vmatpush1.msra.mxu0 %v2196
  %2308 = vmatprep.subr.mxu0 %v2201
  %2309 = vmatpush1.msra.mxu0 %v2200
  %2310 = vmatprep.subr.mxu0 %v2205
  %2311 = vmatpush1.msra.mxu0 %v2204
  %2312 = vmatprep.subr.mxu0 %v2209
  %2313 = vmatpush1.msra.mxu0 %v2208
  %2314 = vmatprep.subr.mxu0 %v2213
  %2315 = vmatpush1.msra.mxu0 %v2212
  %2316 = vmatprep.subr.mxu0 %v2217
  %2317 = vmatpush1.msra.mxu0 %v2216
  %2318 = vmatprep.subr.mxu0 %v2221
  %2319 = vmatpush1.msra.mxu0 %v2220
  %2320 = vmatprep.subr.mxu0 %v2225
  %2321 = vmatpush1.msra.mxu0 %v2224
  %2322 = vmatprep.subr.mxu0 %v2229
  %2323 = vmatpush1.msra.mxu0 %v2228
  %2324 = vmatprep.subr.mxu0 %v2233
  %2325 = vmatpush1.msra.mxu0 %v2232
  %2326 = vmatprep.subr.mxu0 %v2237
  %2327 = vmatpush1.msra.mxu0 %v2236
  %2328 = vmatprep.subr.mxu0 %v2241
  %2329 = vmatpush1.msra.mxu0 %v2240
  %2330 = vmatprep.subr.mxu0 %v2245
  %2331 = vmatpush1.msra.mxu0 %v2244
  %2332 = vmatprep.subr.mxu0 %v2249
  %2333 = vmatpush1.msra.mxu0 %v2248
  %2334 = vmatprep.subr.mxu0 %v2253
  %2335 = vmatpush1.msra.mxu0 %v2252
  %2336 = vmatprep.subr.mxu0 %v2257
  %2337 = vmatpush1.msra.mxu0 %v2256
  %2338 = vmatprep.subr.mxu0 %v2261
  %2339 = vmatpush1.msra.mxu0 %v2260
  %2340 = vmatprep.subr.mxu0 %v2265
  %2341 = vmatpush1.msra.mxu0 %v2264
  %2342 = vmatprep.subr.mxu0 %v2269
  %2343 = vmatpush1.msra.mxu0 %v2268
  %2344 = vmatprep.subr.mxu0 %v2273
  %2345 = vmatpush1.msra.mxu0 %v2272
  %2346 = vmatprep.subr.mxu0 %v2277
  %2347 = vmatpush1.msra.mxu0 %v2276
  %2348 = vmatprep.subr.mxu0 %v2281
  %2349 = vmatpush1.msra.mxu0 %v2280
  %2350 = vmatprep.subr.mxu0 %v2285
  %2351 = vmatpush1.msra.mxu0 %v2284
  %2352 = vmatprep.mubr.f32.mxu0 1.0
  %2353 = vmatmul.mubr.f32.gmra.mrb[0].mxu0 1.0
  %v2354 = vpop.f32.mrb[0].mxu0
  %v2355 = vadd.f32 0.0, %v2354
  %v2356 = vpop.f32.mrb[0].mxu0
  %v2357 = vadd.f32 0.0, %v2356
  %2358 = vdwg.mxu0
  %2359 = vmatprep.subr.mxu0 %v2163
  %2360 = vmatpush1.msra.mxu0 %v2162
  %2361 = vmatprep.subr.mxu0 %v2167
  %2362 = vmatpush1.msra.mxu0 %v2166
  %2363 = vmatprep.subr.mxu0 %v2171
  %2364 = vmatpush1.msra.mxu0 %v2170
  %2365 = vmatprep.subr.mxu0 %v2175
  %2366 = vmatpush1.msra.mxu0 %v2174
  %2367 = vmatprep.subr.mxu0 %v2179
  %2368 = vmatpush1.msra.mxu0 %v2178
  %2369 = vmatprep.subr.mxu0 %v2183
  %2370 = vmatpush1.msra.mxu0 %v2182
  %2371 = vmatprep.subr.mxu0 %v2187
  %2372 = vmatpush1.msra.mxu0 %v2186
  %2373 = vmatprep.subr.mxu0 %v2191
  %2374 = vmatpush1.msra.mxu0 %v2190
  %2375 = vmatprep.subr.mxu0 %v2195
  %2376 = vmatpush1.msra.mxu0 %v2194
  %2377 = vmatprep.subr.mxu0 %v2199
  %2378 = vmatpush1.msra.mxu0 %v2198
  %2379 = vmatprep.subr.mxu0 %v2203
  %2380 = vmatpush1.msra.mxu0 %v2202
  %2381 = vmatprep.subr.mxu0 %v2207
  %2382 = vmatpush1.msra.mxu0 %v2206
  %2383 = vmatprep.subr.mxu0 %v2211
  %2384 = vmatpush1.msra.mxu0 %v2210
  %2385 = vmatprep.subr.mxu0 %v2215
  %2386 = vmatpush1.msra.mxu0 %v2214
  %2387 = vmatprep.subr.mxu0 %v2219
  %2388 = vmatpush1.msra.mxu0 %v2218
  %2389 = vmatprep.subr.mxu0 %v2223
  %2390 = vmatpush1.msra.mxu0 %v2222
  %2391 = vmatprep.subr.mxu0 %v2227
  %2392 = vmatpush1.msra.mxu0 %v2226
  %2393 = vmatprep.subr.mxu0 %v2231
  %2394 = vmatpush1.msra.mxu0 %v2230
  %2395 = vmatprep.subr.mxu0 %v2235
  %2396 = vmatpush1.msra.mxu0 %v2234
  %2397 = vmatprep.subr.mxu0 %v2239
  %2398 = vmatpush1.msra.mxu0 %v2238
  %2399 = vmatprep.subr.mxu0 %v2243
  %2400 = vmatpush1.msra.mxu0 %v2242
  %2401 = vmatprep.subr.mxu0 %v2247
  %2402 = vmatpush1.msra.mxu0 %v2246
  %2403 = vmatprep.subr.mxu0 %v2251
  %2404 = vmatpush1.msra.mxu0 %v2250
  %2405 = vmatprep.subr.mxu0 %v2255
  %2406 = vmatpush1.msra.mxu0 %v2254
  %2407 = vmatprep.subr.mxu0 %v2259
  %2408 = vmatpush1.msra.mxu0 %v2258
  %2409 = vmatprep.subr.mxu0 %v2263
  %2410 = vmatpush1.msra.mxu0 %v2262
  %2411 = vmatprep.subr.mxu0 %v2267
  %2412 = vmatpush1.msra.mxu0 %v2266
  %2413 = vmatprep.subr.mxu0 %v2271
  %2414 = vmatpush1.msra.mxu0 %v2270
  %2415 = vmatprep.subr.mxu0 %v2275
  %2416 = vmatpush1.msra.mxu0 %v2274
  %2417 = vmatprep.subr.mxu0 %v2279
  %2418 = vmatpush1.msra.mxu0 %v2278
  %2419 = vmatprep.subr.mxu0 %v2283
  %2420 = vmatpush1.msra.mxu0 %v2282
  %2421 = vmatprep.subr.mxu0 %v2287
  %2422 = vmatpush1.msra.mxu0 %v2286
  %2423 = vmatprep.mubr.f32.mxu0 1.0
  %2424 = vmatmul.mubr.f32.gmra.mrb[0].mxu0 1.0
  %v2425 = vpop.f32.mrb[0].mxu0
  %v2426 = vadd.f32 0.0, %v2425
  %v2427 = vpop.f32.mrb[0].mxu0
  %v2428 = vadd.f32 0.0, %v2427
  %2429 = vdwg.mxu0
  %v2430 = vmul.f32 %v2355, 0.00390625
  %v2431 = vmul.f32 %v2357, 0.00390625
  %v2432 = vmul.f32 %v2426, 0.00390625
  %v2433 = vmul.f32 %v2428, 0.00390625
  %v2434 = vmul.f32 %v2156, %v2156
  %v2435 = vmul.f32 %v2157, %v2157
  %v2436 = vmul.f32 %v2158, %v2158
  %v2437 = vmul.f32 %v2159, %v2159
  %v2438 = vsub.f32 %v2430, %v2434
  %v2439 = vsub.f32 %v2431, %v2435
  %v2440 = vsub.f32 %v2432, %v2436
  %v2441 = vsub.f32 %v2433, %v2437
  %v2442 = vadd.f32 %v2438, 0.8
  %v2443 = vadd.f32 %v2439, 0.8
  %v2444 = vadd.f32 %v2440, 0.8
  %v2445 = vadd.f32 %v2441, 0.8
  %v2446 = vrsqrt.pop %v2442
  %v2447 = vrsqrt.pop %v2443
  %v2448 = vrsqrt.pop %v2444
  %v2449 = vrsqrt.pop %v2445
  %v2454 = vcombine.low %v2446, %v2447
  %v2455 = vcombine.low %v2448, %v2449
  %v2457 = vunpack.c.l.s4 1966171168
  %v2458 = vunpack.c.0.s8 %v2457
  %v2459 = vlaneseq
  %v2460 = vshrl.u32 %v2459, 7
  %v2461 = vsub.s32 %v2458, %v2460
  %v2462 = vrot.slane %v2454, %v2461
  %v2464 = vunpack.c.l.s4 1966171168
  %v2465 = vunpack.c.0.s8 %v2464
  %v2466 = vlaneseq
  %v2467 = vshrl.u32 %v2466, 7
  %v2468 = vsub.s32 %v2465, %v2467
  %v2469 = vrot.slane %v2455, %v2468
  %v2470 = vcombine.low %v2462, %v2469
  %v2472 = vunpack.c.l.s4 1966171168
  %v2473 = vunpack.c.0.s8 %v2472
  %v2474 = vlaneseq
  %v2475 = vshrl.u32 %v2474, 7
  %v2476 = vsub.s32 %v2473, %v2475
  %v2477 = vrot.slane %v2470, %v2476
  %v2479 = vmul.f32 %v2012, %v2477
  %v2481 = vlaneseq
  %v2482 = vshrl.u32 %v2481, 7
  %v2483 = vsub.s32 0, %v2482
  %v2484 = vrot.slane %v2479, %v2483
  %v2485 = vlaneseq
  %v2486 = vshrl.u32 %v2485, 7
  %v2487 = vsub.s32 1, %v2486
  %v2488 = vrot.slane %v2479, %v2487
  %v2489 = vlaneseq
  %v2490 = vshrl.u32 %v2489, 7
  %v2491 = vsub.s32 2, %v2490
  %v2492 = vrot.slane %v2479, %v2491
  %v2493 = vlaneseq
  %v2494 = vshrl.u32 %v2493, 7
  %v2495 = vsub.s32 3, %v2494
  %v2496 = vrot.slane %v2479, %v2495
  %v2501 = vmul.f32 %v2156, %v2484
  %v2502 = vmul.f32 %v2157, %v2488
  %v2503 = vmul.f32 %v2158, %v2492
  %v2504 = vmul.f32 %v2159, %v2496
  %v2509 = vcombine.low %v2501, %v2502
  %v2510 = vcombine.low %v2503, %v2504
  %v2512 = vunpack.c.l.s4 1966171168
  %v2513 = vunpack.c.0.s8 %v2512
  %v2514 = vlaneseq
  %v2515 = vshrl.u32 %v2514, 7
  %v2516 = vsub.s32 %v2513, %v2515
  %v2517 = vrot.slane %v2509, %v2516
  %v2519 = vunpack.c.l.s4 1966171168
  %v2520 = vunpack.c.0.s8 %v2519
  %v2521 = vlaneseq
  %v2522 = vshrl.u32 %v2521, 7
  %v2523 = vsub.s32 %v2520, %v2522
  %v2524 = vrot.slane %v2510, %v2523
  %v2525 = vcombine.low %v2517, %v2524
  %v2527 = vunpack.c.l.s4 1966171168
  %v2528 = vunpack.c.0.s8 %v2527
  %v2529 = vlaneseq
  %v2530 = vshrl.u32 %v2529, 7
  %v2531 = vsub.s32 %v2528, %v2530
  %v2532 = vrot.slane %v2525, %v2531
  %v2534 = vsub.f32 %v2013, %v2532
  %v2535 = vmul.f32 %v1661, %v2484
  %v2536 = vmul.f32 %v1663, %v2488
  %v2537 = vmul.f32 %v1854, %v2492
  %v2538 = vmul.f32 %v1856, %v2496
  %v2539 = vmul.f32 %v1665, %v2484
  %v2540 = vmul.f32 %v1667, %v2488
  %v2541 = vmul.f32 %v1858, %v2492
  %v2542 = vmul.f32 %v1860, %v2496
  %v2543 = vmul.f32 %v1671, %v2484
  %v2544 = vmul.f32 %v1673, %v2488
  %v2545 = vmul.f32 %v1864, %v2492
  %v2546 = vmul.f32 %v1866, %v2496
  %v2547 = vmul.f32 %v1675, %v2484
  %v2548 = vmul.f32 %v1677, %v2488
  %v2549 = vmul.f32 %v1868, %v2492
  %v2550 = vmul.f32 %v1870, %v2496
  %v2551 = vmul.f32 %v1681, %v2484
  %v2552 = vmul.f32 %v1683, %v2488
  %v2553 = vmul.f32 %v1874, %v2492
  %v2554 = vmul.f32 %v1876, %v2496
  %v2555 = vmul.f32 %v1685, %v2484
  %v2556 = vmul.f32 %v1687, %v2488
  %v2557 = vmul.f32 %v1878, %v2492
  %v2558 = vmul.f32 %v1880, %v2496
  %v2559 = vmul.f32 %v1691, %v2484
  %v2560 = vmul.f32 %v1693, %v2488
  %v2561 = vmul.f32 %v1884, %v2492
  %v2562 = vmul.f32 %v1886, %v2496
  %v2563 = vmul.f32 %v1695, %v2484
  %v2564 = vmul.f32 %v1697, %v2488
  %v2565 = vmul.f32 %v1888, %v2492
  %v2566 = vmul.f32 %v1890, %v2496
  %v2567 = vmul.f32 %v1701, %v2484
  %v2568 = vmul.f32 %v1703, %v2488
  %v2569 = vmul.f32 %v1894, %v2492
  %v2570 = vmul.f32 %v1896, %v2496
  %v2571 = vmul.f32 %v1705, %v2484
  %v2572 = vmul.f32 %v1707, %v2488
  %v2573 = vmul.f32 %v1898, %v2492
  %v2574 = vmul.f32 %v1900, %v2496
  %v2575 = vmul.f32 %v1711, %v2484
  %v2576 = vmul.f32 %v1713, %v2488
  %v2577 = vmul.f32 %v1904, %v2492
  %v2578 = vmul.f32 %v1906, %v2496
  %v2579 = vmul.f32 %v1715, %v2484
  %v2580 = vmul.f32 %v1717, %v2488
  %v2581 = vmul.f32 %v1908, %v2492
  %v2582 = vmul.f32 %v1910, %v2496
  %v2583 = vmul.f32 %v1721, %v2484
  %v2584 = vmul.f32 %v1723, %v2488
  %v2585 = vmul.f32 %v1914, %v2492
  %v2586 = vmul.f32 %v1916, %v2496
  %v2587 = vmul.f32 %v1725, %v2484
  %v2588 = vmul.f32 %v1727, %v2488
  %v2589 = vmul.f32 %v1918, %v2492
  %v2590 = vmul.f32 %v1920, %v2496
  %v2591 = vmul.f32 %v1731, %v2484
  %v2592 = vmul.f32 %v1733, %v2488
  %v2593 = vmul.f32 %v1924, %v2492
  %v2594 = vmul.f32 %v1926, %v2496
  %v2595 = vmul.f32 %v1735, %v2484
  %v2596 = vmul.f32 %v1737, %v2488
  %v2597 = vmul.f32 %v1928, %v2492
  %v2598 = vmul.f32 %v1930, %v2496
  %v2599 = vmul.f32 %v1741, %v2484
  %v2600 = vmul.f32 %v1743, %v2488
  %v2601 = vmul.f32 %v1934, %v2492
  %v2602 = vmul.f32 %v1936, %v2496
  %v2603 = vmul.f32 %v1745, %v2484
  %v2604 = vmul.f32 %v1747, %v2488
  %v2605 = vmul.f32 %v1938, %v2492
  %v2606 = vmul.f32 %v1940, %v2496
  %v2607 = vmul.f32 %v1751, %v2484
  %v2608 = vmul.f32 %v1753, %v2488
  %v2609 = vmul.f32 %v1944, %v2492
  %v2610 = vmul.f32 %v1946, %v2496
  %v2611 = vmul.f32 %v1755, %v2484
  %v2612 = vmul.f32 %v1757, %v2488
  %v2613 = vmul.f32 %v1948, %v2492
  %v2614 = vmul.f32 %v1950, %v2496
  %v2615 = vmul.f32 %v1761, %v2484
  %v2616 = vmul.f32 %v1763, %v2488
  %v2617 = vmul.f32 %v1954, %v2492
  %v2618 = vmul.f32 %v1956, %v2496
  %v2619 = vmul.f32 %v1765, %v2484
  %v2620 = vmul.f32 %v1767, %v2488
  %v2621 = vmul.f32 %v1958, %v2492
  %v2622 = vmul.f32 %v1960, %v2496
  %v2623 = vmul.f32 %v1771, %v2484
  %v2624 = vmul.f32 %v1773, %v2488
  %v2625 = vmul.f32 %v1964, %v2492
  %v2626 = vmul.f32 %v1966, %v2496
  %v2627 = vmul.f32 %v1775, %v2484
  %v2628 = vmul.f32 %v1777, %v2488
  %v2629 = vmul.f32 %v1968, %v2492
  %v2630 = vmul.f32 %v1970, %v2496
  %v2631 = vmul.f32 %v1781, %v2484
  %v2632 = vmul.f32 %v1783, %v2488
  %v2633 = vmul.f32 %v1974, %v2492
  %v2634 = vmul.f32 %v1976, %v2496
  %v2635 = vmul.f32 %v1785, %v2484
  %v2636 = vmul.f32 %v1787, %v2488
  %v2637 = vmul.f32 %v1978, %v2492
  %v2638 = vmul.f32 %v1980, %v2496
  %v2639 = vmul.f32 %v1791, %v2484
  %v2640 = vmul.f32 %v1793, %v2488
  %v2641 = vmul.f32 %v1984, %v2492
  %v2642 = vmul.f32 %v1986, %v2496
  %v2643 = vmul.f32 %v1795, %v2484
  %v2644 = vmul.f32 %v1797, %v2488
  %v2645 = vmul.f32 %v1988, %v2492
  %v2646 = vmul.f32 %v1990, %v2496
  %v2647 = vmul.f32 %v1801, %v2484
  %v2648 = vmul.f32 %v1803, %v2488
  %v2649 = vmul.f32 %v1994, %v2492
  %v2650 = vmul.f32 %v1996, %v2496
  %v2651 = vmul.f32 %v1805, %v2484
  %v2652 = vmul.f32 %v1807, %v2488
  %v2653 = vmul.f32 %v1998, %v2492
  %v2654 = vmul.f32 %v2000, %v2496
  %v2655 = vmul.f32 %v1811, %v2484
  %v2656 = vmul.f32 %v1813, %v2488
  %v2657 = vmul.f32 %v2004, %v2492
  %v2658 = vmul.f32 %v2006, %v2496
  %v2659 = vmul.f32 %v1815, %v2484
  %v2660 = vmul.f32 %v1817, %v2488
  %v2661 = vmul.f32 %v2008, %v2492
  %v2662 = vmul.f32 %v2010, %v2496
  %v2664 = vlaneseq
  %v2665 = vshrl.u32 %v2664, 7
  %v2666 = vsub.s32 0, %v2665
  %v2667 = vrot.slane %v2534, %v2666
  %v2668 = vlaneseq
  %v2669 = vshrl.u32 %v2668, 7
  %v2670 = vsub.s32 1, %v2669
  %v2671 = vrot.slane %v2534, %v2670
  %v2672 = vlaneseq
  %v2673 = vshrl.u32 %v2672, 7
  %v2674 = vsub.s32 2, %v2673
  %v2675 = vrot.slane %v2534, %v2674
  %v2676 = vlaneseq
  %v2677 = vshrl.u32 %v2676, 7
  %v2678 = vsub.s32 3, %v2677
  %v2679 = vrot.slane %v2534, %v2678
  %v2684 = vadd.f32 %v2535, %v2667
  %v2685 = vadd.f32 %v2536, %v2671
  %v2686 = vadd.f32 %v2537, %v2675
  %v2687 = vadd.f32 %v2538, %v2679
  %v2688 = vadd.f32 %v2539, %v2667
  %v2689 = vadd.f32 %v2540, %v2671
  %v2690 = vadd.f32 %v2541, %v2675
  %v2691 = vadd.f32 %v2542, %v2679
  %v2692 = vadd.f32 %v2543, %v2667
  %v2693 = vadd.f32 %v2544, %v2671
  %v2694 = vadd.f32 %v2545, %v2675
  %v2695 = vadd.f32 %v2546, %v2679
  %v2696 = vadd.f32 %v2547, %v2667
  %v2697 = vadd.f32 %v2548, %v2671
  %v2698 = vadd.f32 %v2549, %v2675
  %v2699 = vadd.f32 %v2550, %v2679
  %v2700 = vadd.f32 %v2551, %v2667
  %v2701 = vadd.f32 %v2552, %v2671
  %v2702 = vadd.f32 %v2553, %v2675
  %v2703 = vadd.f32 %v2554, %v2679
  %v2704 = vadd.f32 %v2555, %v2667
  %v2705 = vadd.f32 %v2556, %v2671
  %v2706 = vadd.f32 %v2557, %v2675
  %v2707 = vadd.f32 %v2558, %v2679
  %v2708 = vadd.f32 %v2559, %v2667
  %v2709 = vadd.f32 %v2560, %v2671
  %v2710 = vadd.f32 %v2561, %v2675
  %v2711 = vadd.f32 %v2562, %v2679
  %v2712 = vadd.f32 %v2563, %v2667
  %v2713 = vadd.f32 %v2564, %v2671
  %v2714 = vadd.f32 %v2565, %v2675
  %v2715 = vadd.f32 %v2566, %v2679
  %v2716 = vadd.f32 %v2567, %v2667
  %v2717 = vadd.f32 %v2568, %v2671
  %v2718 = vadd.f32 %v2569, %v2675
  %v2719 = vadd.f32 %v2570, %v2679
  %v2720 = vadd.f32 %v2571, %v2667
  %v2721 = vadd.f32 %v2572, %v2671
  %v2722 = vadd.f32 %v2573, %v2675
  %v2723 = vadd.f32 %v2574, %v2679
  %v2724 = vadd.f32 %v2575, %v2667
  %v2725 = vadd.f32 %v2576, %v2671
  %v2726 = vadd.f32 %v2577, %v2675
  %v2727 = vadd.f32 %v2578, %v2679
  %v2728 = vadd.f32 %v2579, %v2667
  %v2729 = vadd.f32 %v2580, %v2671
  %v2730 = vadd.f32 %v2581, %v2675
  %v2731 = vadd.f32 %v2582, %v2679
  %v2732 = vadd.f32 %v2583, %v2667
  %v2733 = vadd.f32 %v2584, %v2671
  %v2734 = vadd.f32 %v2585, %v2675
  %v2735 = vadd.f32 %v2586, %v2679
  %v2736 = vadd.f32 %v2587, %v2667
  %v2737 = vadd.f32 %v2588, %v2671
  %v2738 = vadd.f32 %v2589, %v2675
  %v2739 = vadd.f32 %v2590, %v2679
  %v2740 = vadd.f32 %v2591, %v2667
  %v2741 = vadd.f32 %v2592, %v2671
  %v2742 = vadd.f32 %v2593, %v2675
  %v2743 = vadd.f32 %v2594, %v2679
  %v2744 = vadd.f32 %v2595, %v2667
  %v2745 = vadd.f32 %v2596, %v2671
  %v2746 = vadd.f32 %v2597, %v2675
  %v2747 = vadd.f32 %v2598, %v2679
  %v2748 = vadd.f32 %v2599, %v2667
  %v2749 = vadd.f32 %v2600, %v2671
  %v2750 = vadd.f32 %v2601, %v2675
  %v2751 = vadd.f32 %v2602, %v2679
  %v2752 = vadd.f32 %v2603, %v2667
  %v2753 = vadd.f32 %v2604, %v2671
  %v2754 = vadd.f32 %v2605, %v2675
  %v2755 = vadd.f32 %v2606, %v2679
  %v2756 = vadd.f32 %v2607, %v2667
  %v2757 = vadd.f32 %v2608, %v2671
  %v2758 = vadd.f32 %v2609, %v2675
  %v2759 = vadd.f32 %v2610, %v2679
  %v2760 = vadd.f32 %v2611, %v2667
  %v2761 = vadd.f32 %v2612, %v2671
  %v2762 = vadd.f32 %v2613, %v2675
  %v2763 = vadd.f32 %v2614, %v2679
  %v2764 = vadd.f32 %v2615, %v2667
  %v2765 = vadd.f32 %v2616, %v2671
  %v2766 = vadd.f32 %v2617, %v2675
  %v2767 = vadd.f32 %v2618, %v2679
  %v2768 = vadd.f32 %v2619, %v2667
  %v2769 = vadd.f32 %v2620, %v2671
  %v2770 = vadd.f32 %v2621, %v2675
  %v2771 = vadd.f32 %v2622, %v2679
  %v2772 = vadd.f32 %v2623, %v2667
  %v2773 = vadd.f32 %v2624, %v2671
  %v2774 = vadd.f32 %v2625, %v2675
  %v2775 = vadd.f32 %v2626, %v2679
  %v2776 = vadd.f32 %v2627, %v2667
  %v2777 = vadd.f32 %v2628, %v2671
  %v2778 = vadd.f32 %v2629, %v2675
  %v2779 = vadd.f32 %v2630, %v2679
  %v2780 = vadd.f32 %v2631, %v2667
  %v2781 = vadd.f32 %v2632, %v2671
  %v2782 = vadd.f32 %v2633, %v2675
  %v2783 = vadd.f32 %v2634, %v2679
  %v2784 = vadd.f32 %v2635, %v2667
  %v2785 = vadd.f32 %v2636, %v2671
  %v2786 = vadd.f32 %v2637, %v2675
  %v2787 = vadd.f32 %v2638, %v2679
  %v2788 = vadd.f32 %v2639, %v2667
  %v2789 = vadd.f32 %v2640, %v2671
  %v2790 = vadd.f32 %v2641, %v2675
  %v2791 = vadd.f32 %v2642, %v2679
  %v2792 = vadd.f32 %v2643, %v2667
  %v2793 = vadd.f32 %v2644, %v2671
  %v2794 = vadd.f32 %v2645, %v2675
  %v2795 = vadd.f32 %v2646, %v2679
  %v2796 = vadd.f32 %v2647, %v2667
  %v2797 = vadd.f32 %v2648, %v2671
  %v2798 = vadd.f32 %v2649, %v2675
  %v2799 = vadd.f32 %v2650, %v2679
  %v2800 = vadd.f32 %v2651, %v2667
  %v2801 = vadd.f32 %v2652, %v2671
  %v2802 = vadd.f32 %v2653, %v2675
  %v2803 = vadd.f32 %v2654, %v2679
  %v2804 = vadd.f32 %v2655, %v2667
  %v2805 = vadd.f32 %v2656, %v2671
  %v2806 = vadd.f32 %v2657, %v2675
  %v2807 = vadd.f32 %v2658, %v2679
  %v2808 = vadd.f32 %v2659, %v2667
  %v2809 = vadd.f32 %v2660, %v2671
  %v2810 = vadd.f32 %v2661, %v2675
  %v2811 = vadd.f32 %v2662, %v2679
  %v2812 = vmax.f32 %v2684, 0.0
  %v2813 = vmax.f32 %v2685, 0.0
  %v2814 = vmax.f32 %v2686, 0.0
  %v2815 = vmax.f32 %v2687, 0.0
  %v2816 = vmax.f32 %v2688, 0.0
  %v2817 = vmax.f32 %v2689, 0.0
  %v2818 = vmax.f32 %v2690, 0.0
  %v2819 = vmax.f32 %v2691, 0.0
  %v2820 = vmax.f32 %v2692, 0.0
  %v2821 = vmax.f32 %v2693, 0.0
  %v2822 = vmax.f32 %v2694, 0.0
  %v2823 = vmax.f32 %v2695, 0.0
  %v2824 = vmax.f32 %v2696, 0.0
  %v2825 = vmax.f32 %v2697, 0.0
  %v2826 = vmax.f32 %v2698, 0.0
  %v2827 = vmax.f32 %v2699, 0.0
  %v2828 = vmax.f32 %v2700, 0.0
  %v2829 = vmax.f32 %v2701, 0.0
  %v2830 = vmax.f32 %v2702, 0.0
  %v2831 = vmax.f32 %v2703, 0.0
  %v2832 = vmax.f32 %v2704, 0.0
  %v2833 = vmax.f32 %v2705, 0.0
  %v2834 = vmax.f32 %v2706, 0.0
  %v2835 = vmax.f32 %v2707, 0.0
  %v2836 = vmax.f32 %v2708, 0.0
  %v2837 = vmax.f32 %v2709, 0.0
  %v2838 = vmax.f32 %v2710, 0.0
  %v2839 = vmax.f32 %v2711, 0.0
  %v2840 = vmax.f32 %v2712, 0.0
  %v2841 = vmax.f32 %v2713, 0.0
  %v2842 = vmax.f32 %v2714, 0.0
  %v2843 = vmax.f32 %v2715, 0.0
  %v2844 = vmax.f32 %v2716, 0.0
  %v2845 = vmax.f32 %v2717, 0.0
  %v2846 = vmax.f32 %v2718, 0.0
  %v2847 = vmax.f32 %v2719, 0.0
  %v2848 = vmax.f32 %v2720, 0.0
  %v2849 = vmax.f32 %v2721, 0.0
  %v2850 = vmax.f32 %v2722, 0.0
  %v2851 = vmax.f32 %v2723, 0.0
  %v2852 = vmax.f32 %v2724, 0.0
  %v2853 = vmax.f32 %v2725, 0.0
  %v2854 = vmax.f32 %v2726, 0.0
  %v2855 = vmax.f32 %v2727, 0.0
  %v2856 = vmax.f32 %v2728, 0.0
  %v2857 = vmax.f32 %v2729, 0.0
  %v2858 = vmax.f32 %v2730, 0.0
  %v2859 = vmax.f32 %v2731, 0.0
  %v2860 = vmax.f32 %v2732, 0.0
  %v2861 = vmax.f32 %v2733, 0.0
  %v2862 = vmax.f32 %v2734, 0.0
  %v2863 = vmax.f32 %v2735, 0.0
  %v2864 = vmax.f32 %v2736, 0.0
  %v2865 = vmax.f32 %v2737, 0.0
  %v2866 = vmax.f32 %v2738, 0.0
  %v2867 = vmax.f32 %v2739, 0.0
  %v2868 = vmax.f32 %v2740, 0.0
  %v2869 = vmax.f32 %v2741, 0.0
  %v2870 = vmax.f32 %v2742, 0.0
  %v2871 = vmax.f32 %v2743, 0.0
  %v2872 = vmax.f32 %v2744, 0.0
  %v2873 = vmax.f32 %v2745, 0.0
  %v2874 = vmax.f32 %v2746, 0.0
  %v2875 = vmax.f32 %v2747, 0.0
  %v2876 = vmax.f32 %v2748, 0.0
  %v2877 = vmax.f32 %v2749, 0.0
  %v2878 = vmax.f32 %v2750, 0.0
  %v2879 = vmax.f32 %v2751, 0.0
  %v2880 = vmax.f32 %v2752, 0.0
  %v2881 = vmax.f32 %v2753, 0.0
  %v2882 = vmax.f32 %v2754, 0.0
  %v2883 = vmax.f32 %v2755, 0.0
  %v2884 = vmax.f32 %v2756, 0.0
  %v2885 = vmax.f32 %v2757, 0.0
  %v2886 = vmax.f32 %v2758, 0.0
  %v2887 = vmax.f32 %v2759, 0.0
  %v2888 = vmax.f32 %v2760, 0.0
  %v2889 = vmax.f32 %v2761, 0.0
  %v2890 = vmax.f32 %v2762, 0.0
  %v2891 = vmax.f32 %v2763, 0.0
  %v2892 = vmax.f32 %v2764, 0.0
  %v2893 = vmax.f32 %v2765, 0.0
  %v2894 = vmax.f32 %v2766, 0.0
  %v2895 = vmax.f32 %v2767, 0.0
  %v2896 = vmax.f32 %v2768, 0.0
  %v2897 = vmax.f32 %v2769, 0.0
  %v2898 = vmax.f32 %v2770, 0.0
  %v2899 = vmax.f32 %v2771, 0.0
  %v2900 = vmax.f32 %v2772, 0.0
  %v2901 = vmax.f32 %v2773, 0.0
  %v2902 = vmax.f32 %v2774, 0.0
  %v2903 = vmax.f32 %v2775, 0.0
  %v2904 = vmax.f32 %v2776, 0.0
  %v2905 = vmax.f32 %v2777, 0.0
  %v2906 = vmax.f32 %v2778, 0.0
  %v2907 = vmax.f32 %v2779, 0.0
  %v2908 = vmax.f32 %v2780, 0.0
  %v2909 = vmax.f32 %v2781, 0.0
  %v2910 = vmax.f32 %v2782, 0.0
  %v2911 = vmax.f32 %v2783, 0.0
  %v2912 = vmax.f32 %v2784, 0.0
  %v2913 = vmax.f32 %v2785, 0.0
  %v2914 = vmax.f32 %v2786, 0.0
  %v2915 = vmax.f32 %v2787, 0.0
  %v2916 = vmax.f32 %v2788, 0.0
  %v2917 = vmax.f32 %v2789, 0.0
  %v2918 = vmax.f32 %v2790, 0.0
  %v2919 = vmax.f32 %v2791, 0.0
  %v2920 = vmax.f32 %v2792, 0.0
  %v2921 = vmax.f32 %v2793, 0.0
  %v2922 = vmax.f32 %v2794, 0.0
  %v2923 = vmax.f32 %v2795, 0.0
  %v2924 = vmax.f32 %v2796, 0.0
  %v2925 = vmax.f32 %v2797, 0.0
  %v2926 = vmax.f32 %v2798, 0.0
  %v2927 = vmax.f32 %v2799, 0.0
  %v2928 = vmax.f32 %v2800, 0.0
  %v2929 = vmax.f32 %v2801, 0.0
  %v2930 = vmax.f32 %v2802, 0.0
  %v2931 = vmax.f32 %v2803, 0.0
  %v2932 = vmax.f32 %v2804, 0.0
  %v2933 = vmax.f32 %v2805, 0.0
  %v2934 = vmax.f32 %v2806, 0.0
  %v2935 = vmax.f32 %v2807, 0.0
  %v2936 = vmax.f32 %v2808, 0.0
  %v2937 = vmax.f32 %v2809, 0.0
  %v2938 = vmax.f32 %v2810, 0.0
  %v2939 = vmax.f32 %v2811, 0.0
  %v2940 = vpack.c.bf16 %v2816, %v2812
  %v2941 = vpack.c.bf16 %v2817, %v2813
  %v2942 = vpack.c.bf16 %v2818, %v2814
  %v2943 = vpack.c.bf16 %v2819, %v2815
  %v2944 = vpack.c.bf16 %v2824, %v2820
  %v2945 = vpack.c.bf16 %v2825, %v2821
  %v2946 = vpack.c.bf16 %v2826, %v2822
  %v2947 = vpack.c.bf16 %v2827, %v2823
  %v2948 = vpack.c.bf16 %v2832, %v2828
  %v2949 = vpack.c.bf16 %v2833, %v2829
  %v2950 = vpack.c.bf16 %v2834, %v2830
  %v2951 = vpack.c.bf16 %v2835, %v2831
  %v2952 = vpack.c.bf16 %v2840, %v2836
  %v2953 = vpack.c.bf16 %v2841, %v2837
  %v2954 = vpack.c.bf16 %v2842, %v2838
  %v2955 = vpack.c.bf16 %v2843, %v2839
  %v2956 = vpack.c.bf16 %v2848, %v2844
  %v2957 = vpack.c.bf16 %v2849, %v2845
  %v2958 = vpack.c.bf16 %v2850, %v2846
  %v2959 = vpack.c.bf16 %v2851, %v2847
  %v2960 = vpack.c.bf16 %v2856, %v2852
  %v2961 = vpack.c.bf16 %v2857, %v2853
  %v2962 = vpack.c.bf16 %v2858, %v2854
  %v2963 = vpack.c.bf16 %v2859, %v2855
  %v2964 = vpack.c.bf16 %v2864, %v2860
  %v2965 = vpack.c.bf16 %v2865, %v2861
  %v2966 = vpack.c.bf16 %v2866, %v2862
  %v2967 = vpack.c.bf16 %v2867, %v2863
  %v2968 = vpack.c.bf16 %v2872, %v2868
  %v2969 = vpack.c.bf16 %v2873, %v2869
  %v2970 = vpack.c.bf16 %v2874, %v2870
  %v2971 = vpack.c.bf16 %v2875, %v2871
  %v2972 = vpack.c.bf16 %v2880, %v2876
  %v2973 = vpack.c.bf16 %v2881, %v2877
  %v2974 = vpack.c.bf16 %v2882, %v2878
  %v2975 = vpack.c.bf16 %v2883, %v2879
  %v2976 = vpack.c.bf16 %v2888, %v2884
  %v2977 = vpack.c.bf16 %v2889, %v2885
  %v2978 = vpack.c.bf16 %v2890, %v2886
  %v2979 = vpack.c.bf16 %v2891, %v2887
  %v2980 = vpack.c.bf16 %v2896, %v2892
  %v2981 = vpack.c.bf16 %v2897, %v2893
  %v2982 = vpack.c.bf16 %v2898, %v2894
  %v2983 = vpack.c.bf16 %v2899, %v2895
  %v2984 = vpack.c.bf16 %v2904, %v2900
  %v2985 = vpack.c.bf16 %v2905, %v2901
  %v2986 = vpack.c.bf16 %v2906, %v2902
  %v2987 = vpack.c.bf16 %v2907, %v2903
  %v2988 = vpack.c.bf16 %v2912, %v2908
  %v2989 = vpack.c.bf16 %v2913, %v2909
  %v2990 = vpack.c.bf16 %v2914, %v2910
  %v2991 = vpack.c.bf16 %v2915, %v2911
  %v2992 = vpack.c.bf16 %v2920, %v2916
  %v2993 = vpack.c.bf16 %v2921, %v2917
  %v2994 = vpack.c.bf16 %v2922, %v2918
  %v2995 = vpack.c.bf16 %v2923, %v2919
  %v2996 = vpack.c.bf16 %v2928, %v2924
  %v2997 = vpack.c.bf16 %v2929, %v2925
  %v2998 = vpack.c.bf16 %v2930, %v2926
  %v2999 = vpack.c.bf16 %v2931, %v2927
  %v3000 = vpack.c.bf16 %v2936, %v2932
  %v3001 = vpack.c.bf16 %v2937, %v2933
  %v3002 = vpack.c.bf16 %v2938, %v2934
  %v3003 = vpack.c.bf16 %v2939, %v2935
  %v3004 = vld [vmem:[%s9] sm:$0xf]
  %v3005 = vld [vmem:[%s9 + $0x4] sm:$0xf]
  %v3006 = vld [vmem:[%s9 + $0x8] sm:$0xf]
  %v3007 = vld [vmem:[%s9 + $0xc] sm:$0xf]
  %v3008 = vld [vmem:[%s9 + $0x10] sm:$0xf]
  %v3009 = vld [vmem:[%s9 + $0x14] sm:$0xf]
  %v3010 = vld [vmem:[%s9 + $0x18] sm:$0xf]
  %v3011 = vld [vmem:[%s9 + $0x1c] sm:$0xf]
  %v3012 = vld [vmem:[%s9 + $0x20] sm:$0xf]
  %v3013 = vld [vmem:[%s9 + $0x24] sm:$0xf]
  %v3014 = vld [vmem:[%s9 + $0x28] sm:$0xf]
  %v3015 = vld [vmem:[%s9 + $0x2c] sm:$0xf]
  %v3016 = vld [vmem:[%s9 + $0x30] sm:$0xf]
  %v3017 = vld [vmem:[%s9 + $0x34] sm:$0xf]
  %v3018 = vld [vmem:[%s9 + $0x38] sm:$0xf]
  %v3019 = vld [vmem:[%s9 + $0x3c] sm:$0xf]
  %v3020 = vld [vmem:[%s9 + $0x40] sm:$0xf]
  %v3021 = vld [vmem:[%s9 + $0x44] sm:$0xf]
  %v3022 = vld [vmem:[%s9 + $0x48] sm:$0xf]
  %v3023 = vld [vmem:[%s9 + $0x4c] sm:$0xf]
  %v3024 = vld [vmem:[%s9 + $0x50] sm:$0xf]
  %v3025 = vld [vmem:[%s9 + $0x54] sm:$0xf]
  %v3026 = vld [vmem:[%s9 + $0x58] sm:$0xf]
  %v3027 = vld [vmem:[%s9 + $0x5c] sm:$0xf]
  %v3028 = vld [vmem:[%s9 + $0x60] sm:$0xf]
  %v3029 = vld [vmem:[%s9 + $0x64] sm:$0xf]
  %v3030 = vld [vmem:[%s9 + $0x68] sm:$0xf]
  %v3031 = vld [vmem:[%s9 + $0x6c] sm:$0xf]
  %v3032 = vld [vmem:[%s9 + $0x70] sm:$0xf]
  %v3033 = vld [vmem:[%s9 + $0x74] sm:$0xf]
  %v3034 = vld [vmem:[%s9 + $0x78] sm:$0xf]
  %v3035 = vld [vmem:[%s9 + $0x7c] sm:$0xf]
  %v3036 = vld [vmem:[%s9 + $0x80] sm:$0xf]
  %v3037 = vld [vmem:[%s9 + $0x84] sm:$0xf]
  %v3038 = vld [vmem:[%s9 + $0x88] sm:$0xf]
  %v3039 = vld [vmem:[%s9 + $0x8c] sm:$0xf]
  %v3040 = vld [vmem:[%s9 + $0x90] sm:$0xf]
  %v3041 = vld [vmem:[%s9 + $0x94] sm:$0xf]
  %v3042 = vld [vmem:[%s9 + $0x98] sm:$0xf]
  %v3043 = vld [vmem:[%s9 + $0x9c] sm:$0xf]
  %v3044 = vld [vmem:[%s9 + $0xa0] sm:$0xf]
  %v3045 = vld [vmem:[%s9 + $0xa4] sm:$0xf]
  %v3046 = vld [vmem:[%s9 + $0xa8] sm:$0xf]
  %v3047 = vld [vmem:[%s9 + $0xac] sm:$0xf]
  %v3048 = vld [vmem:[%s9 + $0xb0] sm:$0xf]
  %v3049 = vld [vmem:[%s9 + $0xb4] sm:$0xf]
  %v3050 = vld [vmem:[%s9 + $0xb8] sm:$0xf]
  %v3051 = vld [vmem:[%s9 + $0xbc] sm:$0xf]
  %v3052 = vld [vmem:[%s9 + $0xc0] sm:$0xf]
  %v3053 = vld [vmem:[%s9 + $0xc4] sm:$0xf]
  %v3054 = vld [vmem:[%s9 + $0xc8] sm:$0xf]
  %v3055 = vld [vmem:[%s9 + $0xcc] sm:$0xf]
  %v3056 = vld [vmem:[%s9 + $0xd0] sm:$0xf]
  %v3057 = vld [vmem:[%s9 + $0xd4] sm:$0xf]
  %v3058 = vld [vmem:[%s9 + $0xd8] sm:$0xf]
  %v3059 = vld [vmem:[%s9 + $0xdc] sm:$0xf]
  %v3060 = vld [vmem:[%s9 + $0xe0] sm:$0xf]
  %v3061 = vld [vmem:[%s9 + $0xe4] sm:$0xf]
  %v3062 = vld [vmem:[%s9 + $0xe8] sm:$0xf]
  %v3063 = vld [vmem:[%s9 + $0xec] sm:$0xf]
  %v3064 = vld [vmem:[%s9 + $0xf0] sm:$0xf]
  %v3065 = vld [vmem:[%s9 + $0xf4] sm:$0xf]
  %v3066 = vld [vmem:[%s9 + $0xf8] sm:$0xf]
  %v3067 = vld [vmem:[%s9 + $0xfc] sm:$0xf]
  %v3068 = vld [vmem:[%s10] sm:$0x1]
  %v3070 = vlaneseq
  %v3071 = vshrl.u32 %v3070, 7
  %v3072 = vsub.s32 0, %v3071
  %v3073 = vrot.slane %v3068, %v3072
  %v3139 = vunpack.c.l.b16 %v3004
  %v3140 = vunpack.c.l.b16 %v3005
  %v3141 = vunpack.c.l.b16 %v3006
  %v3142 = vunpack.c.l.b16 %v3007
  %v3143 = vunpack.c.l.b16 %v3008
  %v3144 = vunpack.c.l.b16 %v3009
  %v3145 = vunpack.c.l.b16 %v3010
  %v3146 = vunpack.c.l.b16 %v3011
  %v3147 = vunpack.c.l.b16 %v3012
  %v3148 = vunpack.c.l.b16 %v3013
  %v3149 = vunpack.c.l.b16 %v3014
  %v3150 = vunpack.c.l.b16 %v3015
  %v3151 = vunpack.c.l.b16 %v3016
  %v3152 = vunpack.c.l.b16 %v3017
  %v3153 = vunpack.c.l.b16 %v3018
  %v3154 = vunpack.c.l.b16 %v3019
  %v3155 = vunpack.c.l.b16 %v3020
  %v3156 = vunpack.c.l.b16 %v3021
  %v3157 = vunpack.c.l.b16 %v3022
  %v3158 = vunpack.c.l.b16 %v3023
  %v3159 = vunpack.c.l.b16 %v3024
  %v3160 = vunpack.c.l.b16 %v3025
  %v3161 = vunpack.c.l.b16 %v3026
  %v3162 = vunpack.c.l.b16 %v3027
  %v3163 = vunpack.c.l.b16 %v3028
  %v3164 = vunpack.c.l.b16 %v3029
  %v3165 = vunpack.c.l.b16 %v3030
  %v3166 = vunpack.c.l.b16 %v3031
  %v3167 = vunpack.c.l.b16 %v3032
  %v3168 = vunpack.c.l.b16 %v3033
  %v3169 = vunpack.c.l.b16 %v3034
  %v3170 = vunpack.c.l.b16 %v3035
  %v3171 = vunpack.c.l.b16 %v3036
  %v3172 = vunpack.c.l.b16 %v3037
  %v3173 = vunpack.c.l.b16 %v3038
  %v3174 = vunpack.c.l.b16 %v3039
  %v3175 = vunpack.c.l.b16 %v3040
  %v3176 = vunpack.c.l.b16 %v3041
  %v3177 = vunpack.c.l.b16 %v3042
  %v3178 = vunpack.c.l.b16 %v3043
  %v3179 = vunpack.c.l.b16 %v3044
  %v3180 = vunpack.c.l.b16 %v3045
  %v3181 = vunpack.c.l.b16 %v3046
  %v3182 = vunpack.c.l.b16 %v3047
  %v3183 = vunpack.c.l.b16 %v3048
  %v3184 = vunpack.c.l.b16 %v3049
  %v3185 = vunpack.c.l.b16 %v3050
  %v3186 = vunpack.c.l.b16 %v3051
  %v3187 = vunpack.c.l.b16 %v3052
  %v3188 = vunpack.c.l.b16 %v3053
  %v3189 = vunpack.c.l.b16 %v3054
  %v3190 = vunpack.c.l.b16 %v3055
  %v3191 = vunpack.c.l.b16 %v3056
  %v3192 = vunpack.c.l.b16 %v3057
  %v3193 = vunpack.c.l.b16 %v3058
  %v3194 = vunpack.c.l.b16 %v3059
  %v3195 = vunpack.c.l.b16 %v3060
  %v3196 = vunpack.c.l.b16 %v3061
  %v3197 = vunpack.c.l.b16 %v3062
  %v3198 = vunpack.c.l.b16 %v3063
  %v3199 = vunpack.c.l.b16 %v3064
  %v3200 = vunpack.c.l.b16 %v3065
  %v3201 = vunpack.c.l.b16 %v3066
  %v3202 = vunpack.c.l.b16 %v3067
  %v3203 = vpack.c.b16 %v3140, %v3139
  %v3204 = vpack.c.b16 %v3142, %v3141
  %v3205 = vpack.c.b16 %v3144, %v3143
  %v3206 = vpack.c.b16 %v3146, %v3145
  %v3207 = vpack.c.b16 %v3148, %v3147
  %v3208 = vpack.c.b16 %v3150, %v3149
  %v3209 = vpack.c.b16 %v3152, %v3151
  %v3210 = vpack.c.b16 %v3154, %v3153
  %v3211 = vpack.c.b16 %v3156, %v3155
  %v3212 = vpack.c.b16 %v3158, %v3157
  %v3213 = vpack.c.b16 %v3160, %v3159
  %v3214 = vpack.c.b16 %v3162, %v3161
  %v3215 = vpack.c.b16 %v3164, %v3163
  %v3216 = vpack.c.b16 %v3166, %v3165
  %v3217 = vpack.c.b16 %v3168, %v3167
  %v3218 = vpack.c.b16 %v3170, %v3169
  %v3219 = vpack.c.b16 %v3172, %v3171
  %v3220 = vpack.c.b16 %v3174, %v3173
  %v3221 = vpack.c.b16 %v3176, %v3175
  %v3222 = vpack.c.b16 %v3178, %v3177
  %v3223 = vpack.c.b16 %v3180, %v3179
  %v3224 = vpack.c.b16 %v3182, %v3181
  %v3225 = vpack.c.b16 %v3184, %v3183
  %v3226 = vpack.c.b16 %v3186, %v3185
  %v3227 = vpack.c.b16 %v3188, %v3187
  %v3228 = vpack.c.b16 %v3190, %v3189
  %v3229 = vpack.c.b16 %v3192, %v3191
  %v3230 = vpack.c.b16 %v3194, %v3193
  %v3231 = vpack.c.b16 %v3196, %v3195
  %v3232 = vpack.c.b16 %v3198, %v3197
  %v3233 = vpack.c.b16 %v3200, %v3199
  %v3234 = vpack.c.b16 %v3202, %v3201
  %3267 = vmatprep.subr.bf16.mxu0 0
  %3268 = vmatpush1.bf16.msra.mxu0 %v3203
  %3269 = vmatprep.subr.bf16.mxu0 0
  %3270 = vmatpush1.bf16.msra.mxu0 %v3204
  %3271 = vmatprep.subr.bf16.mxu0 0
  %3272 = vmatpush1.bf16.msra.mxu0 %v3205
  %3273 = vmatprep.subr.bf16.mxu0 0
  %3274 = vmatpush1.bf16.msra.mxu0 %v3206
  %3275 = vmatprep.subr.bf16.mxu0 0
  %3276 = vmatpush1.bf16.msra.mxu0 %v3207
  %3277 = vmatprep.subr.bf16.mxu0 0
  %3278 = vmatpush1.bf16.msra.mxu0 %v3208
  %3279 = vmatprep.subr.bf16.mxu0 0
  %3280 = vmatpush1.bf16.msra.mxu0 %v3209
  %3281 = vmatprep.subr.bf16.mxu0 0
  %3282 = vmatpush1.bf16.msra.mxu0 %v3210
  %3283 = vmatprep.subr.bf16.mxu0 0
  %3284 = vmatpush1.bf16.msra.mxu0 %v3211
  %3285 = vmatprep.subr.bf16.mxu0 0
  %3286 = vmatpush1.bf16.msra.mxu0 %v3212
  %3287 = vmatprep.subr.bf16.mxu0 0
  %3288 = vmatpush1.bf16.msra.mxu0 %v3213
  %3289 = vmatprep.subr.bf16.mxu0 0
  %3290 = vmatpush1.bf16.msra.mxu0 %v3214
  %3291 = vmatprep.subr.bf16.mxu0 0
  %3292 = vmatpush1.bf16.msra.mxu0 %v3215
  %3293 = vmatprep.subr.bf16.mxu0 0
  %3294 = vmatpush1.bf16.msra.mxu0 %v3216
  %3295 = vmatprep.subr.bf16.mxu0 0
  %3296 = vmatpush1.bf16.msra.mxu0 %v3217
  %3297 = vmatprep.subr.bf16.mxu0 0
  %3298 = vmatpush1.bf16.msra.mxu0 %v3218
  %3299 = vmatprep.mubr.bf16.mxu0 %v2941
  %3300 = vmatmul.mubr.bf16.gmra.mrb[0].mxu0 %v2940
  %v3301 = vpop.f32.mrb[0].mxu0
  %v3302 = vadd.f32 %v3073, %v3301
  %v3303 = vpop.f32.mrb[0].mxu0
  %v3304 = vpop.f32.mrb[0].mxu0
  %v3305 = vadd.f32 %v3073, %v3304
  %v3306 = vpop.f32.mrb[0].mxu0
  %3307 = vmatprep.mubr.bf16.mxu0 %v2945
  %3308 = vmatmul.mubr.bf16.gmra.mrb[0].mxu0 %v2944
  %v3309 = vpop.f32.mrb[0].mxu0
  %v3310 = vadd.f32 %v3073, %v3309
  %v3311 = vpop.f32.mrb[0].mxu0
  %v3312 = vpop.f32.mrb[0].mxu0
  %v3313 = vadd.f32 %v3073, %v3312
  %v3314 = vpop.f32.mrb[0].mxu0
  %3315 = vmatprep.mubr.bf16.mxu0 %v2949
  %3316 = vmatmul.mubr.bf16.gmra.mrb[0].mxu0 %v2948
  %v3317 = vpop.f32.mrb[0].mxu0
  %v3318 = vadd.f32 %v3073, %v3317
  %v3319 = vpop.f32.mrb[0].mxu0
  %v3320 = vpop.f32.mrb[0].mxu0
  %v3321 = vadd.f32 %v3073, %v3320
  %v3322 = vpop.f32.mrb[0].mxu0
  %3323 = vmatprep.mubr.bf16.mxu0 %v2953
  %3324 = vmatmul.mubr.bf16.gmra.mrb[0].mxu0 %v2952
  %v3325 = vpop.f32.mrb[0].mxu0
  %v3326 = vadd.f32 %v3073, %v3325
  %v3327 = vpop.f32.mrb[0].mxu0
  %v3328 = vpop.f32.mrb[0].mxu0
  %v3329 = vadd.f32 %v3073, %v3328
  %v3330 = vpop.f32.mrb[0].mxu0
  %3331 = vmatprep.mubr.bf16.mxu0 %v2957
  %3332 = vmatmul.mubr.bf16.gmra.mrb[0].mxu0 %v2956
  %v3333 = vpop.f32.mrb[0].mxu0
  %v3334 = vadd.f32 %v3073, %v3333
  %v3335 = vpop.f32.mrb[0].mxu0
  %v3336 = vpop.f32.mrb[0].mxu0
  %v3337 = vadd.f32 %v3073, %v3336
  %v3338 = vpop.f32.mrb[0].mxu0
  %3339 = vmatprep.mubr.bf16.mxu0 %v2961
  %3340 = vmatmul.mubr.bf16.gmra.mrb[0].mxu0 %v2960
  %v3341 = vpop.f32.mrb[0].mxu0
  %v3342 = vadd.f32 %v3073, %v3341
  %v3343 = vpop.f32.mrb[0].mxu0
  %v3344 = vpop.f32.mrb[0].mxu0
  %v3345 = vadd.f32 %v3073, %v3344
  %v3346 = vpop.f32.mrb[0].mxu0
  %3347 = vmatprep.mubr.bf16.mxu0 %v2965
  %3348 = vmatmul.mubr.bf16.gmra.mrb[0].mxu0 %v2964
  %v3349 = vpop.f32.mrb[0].mxu0
  %v3350 = vadd.f32 %v3073, %v3349
  %v3351 = vpop.f32.mrb[0].mxu0
  %v3352 = vpop.f32.mrb[0].mxu0
  %v3353 = vadd.f32 %v3073, %v3352
  %v3354 = vpop.f32.mrb[0].mxu0
  %3355 = vmatprep.mubr.bf16.mxu0 %v2969
  %3356 = vmatmul.mubr.bf16.gmra.mrb[0].mxu0 %v2968
  %v3357 = vpop.f32.mrb[0].mxu0
  %v3358 = vadd.f32 %v3073, %v3357
  %v3359 = vpop.f32.mrb[0].mxu0
  %v3360 = vpop.f32.mrb[0].mxu0
  %v3361 = vadd.f32 %v3073, %v3360
  %v3362 = vpop.f32.mrb[0].mxu0
  %3363 = vmatprep.mubr.bf16.mxu0 %v2973
  %3364 = vmatmul.mubr.bf16.gmra.mrb[0].mxu0 %v2972
  %v3365 = vpop.f32.mrb[0].mxu0
  %v3366 = vadd.f32 %v3073, %v3365
  %v3367 = vpop.f32.mrb[0].mxu0
  %v3368 = vpop.f32.mrb[0].mxu0
  %v3369 = vadd.f32 %v3073, %v3368
  %v3370 = vpop.f32.mrb[0].mxu0
  %3371 = vmatprep.mubr.bf16.mxu0 %v2977
  %3372 = vmatmul.mubr.bf16.gmra.mrb[0].mxu0 %v2976
  %v3373 = vpop.f32.mrb[0].mxu0
  %v3374 = vadd.f32 %v3073, %v3373
  %v3375 = vpop.f32.mrb[0].mxu0
  %v3376 = vpop.f32.mrb[0].mxu0
  %v3377 = vadd.f32 %v3073, %v3376
  %v3378 = vpop.f32.mrb[0].mxu0
  %3379 = vmatprep.mubr.bf16.mxu0 %v2981
  %3380 = vmatmul.mubr.bf16.gmra.mrb[0].mxu0 %v2980
  %v3381 = vpop.f32.mrb[0].mxu0
  %v3382 = vadd.f32 %v3073, %v3381
  %v3383 = vpop.f32.mrb[0].mxu0
  %v3384 = vpop.f32.mrb[0].mxu0
  %v3385 = vadd.f32 %v3073, %v3384
  %v3386 = vpop.f32.mrb[0].mxu0
  %3387 = vmatprep.mubr.bf16.mxu0 %v2985
  %3388 = vmatmul.mubr.bf16.gmra.mrb[0].mxu0 %v2984
  %v3389 = vpop.f32.mrb[0].mxu0
  %v3390 = vadd.f32 %v3073, %v3389
  %v3391 = vpop.f32.mrb[0].mxu0
  %v3392 = vpop.f32.mrb[0].mxu0
  %v3393 = vadd.f32 %v3073, %v3392
  %v3394 = vpop.f32.mrb[0].mxu0
  %3395 = vmatprep.mubr.bf16.mxu0 %v2989
  %3396 = vmatmul.mubr.bf16.gmra.mrb[0].mxu0 %v2988
  %v3397 = vpop.f32.mrb[0].mxu0
  %v3398 = vadd.f32 %v3073, %v3397
  %v3399 = vpop.f32.mrb[0].mxu0
  %v3400 = vpop.f32.mrb[0].mxu0
  %v3401 = vadd.f32 %v3073, %v3400
  %v3402 = vpop.f32.mrb[0].mxu0
  %3403 = vmatprep.mubr.bf16.mxu0 %v2993
  %3404 = vmatmul.mubr.bf16.gmra.mrb[0].mxu0 %v2992
  %v3405 = vpop.f32.mrb[0].mxu0
  %v3406 = vadd.f32 %v3073, %v3405
  %v3407 = vpop.f32.mrb[0].mxu0
  %v3408 = vpop.f32.mrb[0].mxu0
  %v3409 = vadd.f32 %v3073, %v3408
  %v3410 = vpop.f32.mrb[0].mxu0
  %3411 = vmatprep.mubr.bf16.mxu0 %v2997
  %3412 = vmatmul.mubr.bf16.gmra.mrb[0].mxu0 %v2996
  %v3413 = vpop.f32.mrb[0].mxu0
  %v3414 = vadd.f32 %v3073, %v3413
  %v3415 = vpop.f32.mrb[0].mxu0
  %v3416 = vpop.f32.mrb[0].mxu0
  %v3417 = vadd.f32 %v3073, %v3416
  %v3418 = vpop.f32.mrb[0].mxu0
  %3419 = vmatprep.mubr.bf16.mxu0 %v3001
  %3420 = vmatmul.mubr.bf16.gmra.mrb[0].mxu0 %v3000
  %v3421 = vpop.f32.mrb[0].mxu0
  %v3422 = vadd.f32 %v3073, %v3421
  %v3423 = vpop.f32.mrb[0].mxu0
  %v3424 = vpop.f32.mrb[0].mxu0
  %v3425 = vadd.f32 %v3073, %v3424
  %v3426 = vpop.f32.mrb[0].mxu0
  %3427 = vdwg.mxu0
  %3428 = vmatprep.subr.bf16.mxu0 0
  %3429 = vmatpush1.bf16.msra.mxu0 %v3219
  %3430 = vmatprep.subr.bf16.mxu0 0
  %3431 = vmatpush1.bf16.msra.mxu0 %v3220
  %3432 = vmatprep.subr.bf16.mxu0 0
  %3433 = vmatpush1.bf16.msra.mxu0 %v3221
  %3434 = vmatprep.subr.bf16.mxu0 0
  %3435 = vmatpush1.bf16.msra.mxu0 %v3222
  %3436 = vmatprep.subr.bf16.mxu0 0
  %3437 = vmatpush1.bf16.msra.mxu0 %v3223
  %3438 = vmatprep.subr.bf16.mxu0 0
  %3439 = vmatpush1.bf16.msra.mxu0 %v3224
  %3440 = vmatprep.subr.bf16.mxu0 0
  %3441 = vmatpush1.bf16.msra.mxu0 %v3225
  %3442 = vmatprep.subr.bf16.mxu0 0
  %3443 = vmatpush1.bf16.msra.mxu0 %v3226
  %3444 = vmatprep.subr.bf16.mxu0 0
  %3445 = vmatpush1.bf16.msra.mxu0 %v3227
  %3446 = vmatprep.subr.bf16.mxu0 0
  %3447 = vmatpush1.bf16.msra.mxu0 %v3228
  %3448 = vmatprep.subr.bf16.mxu0 0
  %3449 = vmatpush1.bf16.msra.mxu0 %v3229
  %3450 = vmatprep.subr.bf16.mxu0 0
  %3451 = vmatpush1.bf16.msra.mxu0 %v3230
  %3452 = vmatprep.subr.bf16.mxu0 0
  %3453 = vmatpush1.bf16.msra.mxu0 %v3231
  %3454 = vmatprep.subr.bf16.mxu0 0
  %3455 = vmatpush1.bf16.msra.mxu0 %v3232
  %3456 = vmatprep.subr.bf16.mxu0 0
  %3457 = vmatpush1.bf16.msra.mxu0 %v3233
  %3458 = vmatprep.subr.bf16.mxu0 0
  %3459 = vmatpush1.bf16.msra.mxu0 %v3234
  %3460 = vmatprep.mubr.bf16.mxu0 %v2943
  %3461 = vmatmul.mubr.bf16.gmra.mrb[0].mxu0 %v2942
  %v3462 = vpop.f32.mrb[0].mxu0
  %v3463 = vadd.f32 %v3302, %v3462
  %v3464 = vpop.f32.mrb[0].mxu0
  %v3465 = vpop.f32.mrb[0].mxu0
  %v3466 = vadd.f32 %v3305, %v3465
  %v3467 = vpop.f32.mrb[0].mxu0
  %3468 = vmatprep.mubr.bf16.mxu0 %v2947
  %3469 = vmatmul.mubr.bf16.gmra.mrb[0].mxu0 %v2946
  %v3470 = vpop.f32.mrb[0].mxu0
  %v3471 = vadd.f32 %v3310, %v3470
  %v3472 = vpop.f32.mrb[0].mxu0
  %v3473 = vpop.f32.mrb[0].mxu0
  %v3474 = vadd.f32 %v3313, %v3473
  %v3475 = vpop.f32.mrb[0].mxu0
  %3476 = vmatprep.mubr.bf16.mxu0 %v2951
  %3477 = vmatmul.mubr.bf16.gmra.mrb[0].mxu0 %v2950
  %v3478 = vpop.f32.mrb[0].mxu0
  %v3479 = vadd.f32 %v3318, %v3478
  %v3480 = vpop.f32.mrb[0].mxu0
  %v3481 = vpop.f32.mrb[0].mxu0
  %v3482 = vadd.f32 %v3321, %v3481
  %v3483 = vpop.f32.mrb[0].mxu0
  %3484 = vmatprep.mubr.bf16.mxu0 %v2955
  %3485 = vmatmul.mubr.bf16.gmra.mrb[0].mxu0 %v2954
  %v3486 = vpop.f32.mrb[0].mxu0
  %v3487 = vadd.f32 %v3326, %v3486
  %v3488 = vpop.f32.mrb[0].mxu0
  %v3489 = vpop.f32.mrb[0].mxu0
  %v3490 = vadd.f32 %v3329, %v3489
  %v3491 = vpop.f32.mrb[0].mxu0
  %3492 = vmatprep.mubr.bf16.mxu0 %v2959
  %3493 = vmatmul.mubr.bf16.gmra.mrb[0].mxu0 %v2958
  %v3494 = vpop.f32.mrb[0].mxu0
  %v3495 = vadd.f32 %v3334, %v3494
  %v3496 = vpop.f32.mrb[0].mxu0
  %v3497 = vpop.f32.mrb[0].mxu0
  %v3498 = vadd.f32 %v3337, %v3497
  %v3499 = vpop.f32.mrb[0].mxu0
  %3500 = vmatprep.mubr.bf16.mxu0 %v2963
  %3501 = vmatmul.mubr.bf16.gmra.mrb[0].mxu0 %v2962
  %v3502 = vpop.f32.mrb[0].mxu0
  %v3503 = vadd.f32 %v3342, %v3502
  %v3504 = vpop.f32.mrb[0].mxu0
  %v3505 = vpop.f32.mrb[0].mxu0
  %v3506 = vadd.f32 %v3345, %v3505
  %v3507 = vpop.f32.mrb[0].mxu0
  %3508 = vmatprep.mubr.bf16.mxu0 %v2967
  %3509 = vmatmul.mubr.bf16.gmra.mrb[0].mxu0 %v2966
  %v3510 = vpop.f32.mrb[0].mxu0
  %v3511 = vadd.f32 %v3350, %v3510
  %v3512 = vpop.f32.mrb[0].mxu0
  %v3513 = vpop.f32.mrb[0].mxu0
  %v3514 = vadd.f32 %v3353, %v3513
  %v3515 = vpop.f32.mrb[0].mxu0
  %3516 = vmatprep.mubr.bf16.mxu0 %v2971
  %3517 = vmatmul.mubr.bf16.gmra.mrb[0].mxu0 %v2970
  %v3518 = vpop.f32.mrb[0].mxu0
  %v3519 = vadd.f32 %v3358, %v3518
  %v3520 = vpop.f32.mrb[0].mxu0
  %v3521 = vpop.f32.mrb[0].mxu0
  %v3522 = vadd.f32 %v3361, %v3521
  %v3523 = vpop.f32.mrb[0].mxu0
  %3524 = vmatprep.mubr.bf16.mxu0 %v2975
  %3525 = vmatmul.mubr.bf16.gmra.mrb[0].mxu0 %v2974
  %v3526 = vpop.f32.mrb[0].mxu0
  %v3527 = vadd.f32 %v3366, %v3526
  %v3528 = vpop.f32.mrb[0].mxu0
  %v3529 = vpop.f32.mrb[0].mxu0
  %v3530 = vadd.f32 %v3369, %v3529
  %v3531 = vpop.f32.mrb[0].mxu0
  %3532 = vmatprep.mubr.bf16.mxu0 %v2979
  %3533 = vmatmul.mubr.bf16.gmra.mrb[0].mxu0 %v2978
  %v3534 = vpop.f32.mrb[0].mxu0
  %v3535 = vadd.f32 %v3374, %v3534
  %v3536 = vpop.f32.mrb[0].mxu0
  %v3537 = vpop.f32.mrb[0].mxu0
  %v3538 = vadd.f32 %v3377, %v3537
  %v3539 = vpop.f32.mrb[0].mxu0
  %3540 = vmatprep.mubr.bf16.mxu0 %v2983
  %3541 = vmatmul.mubr.bf16.gmra.mrb[0].mxu0 %v2982
  %v3542 = vpop.f32.mrb[0].mxu0
  %v3543 = vadd.f32 %v3382, %v3542
  %v3544 = vpop.f32.mrb[0].mxu0
  %v3545 = vpop.f32.mrb[0].mxu0
  %v3546 = vadd.f32 %v3385, %v3545
  %v3547 = vpop.f32.mrb[0].mxu0
  %3548 = vmatprep.mubr.bf16.mxu0 %v2987
  %3549 = vmatmul.mubr.bf16.gmra.mrb[0].mxu0 %v2986
  %v3550 = vpop.f32.mrb[0].mxu0
  %v3551 = vadd.f32 %v3390, %v3550
  %v3552 = vpop.f32.mrb[0].mxu0
  %v3553 = vpop.f32.mrb[0].mxu0
  %v3554 = vadd.f32 %v3393, %v3553
  %v3555 = vpop.f32.mrb[0].mxu0
  %3556 = vmatprep.mubr.bf16.mxu0 %v2991
  %3557 = vmatmul.mubr.bf16.gmra.mrb[0].mxu0 %v2990
  %v3558 = vpop.f32.mrb[0].mxu0
  %v3559 = vadd.f32 %v3398, %v3558
  %v3560 = vpop.f32.mrb[0].mxu0
  %v3561 = vpop.f32.mrb[0].mxu0
  %v3562 = vadd.f32 %v3401, %v3561
  %v3563 = vpop.f32.mrb[0].mxu0
  %3564 = vmatprep.mubr.bf16.mxu0 %v2995
  %3565 = vmatmul.mubr.bf16.gmra.mrb[0].mxu0 %v2994
  %v3566 = vpop.f32.mrb[0].mxu0
  %v3567 = vadd.f32 %v3406, %v3566
  %v3568 = vpop.f32.mrb[0].mxu0
  %v3569 = vpop.f32.mrb[0].mxu0
  %v3570 = vadd.f32 %v3409, %v3569
  %v3571 = vpop.f32.mrb[0].mxu0
  %3572 = vmatprep.mubr.bf16.mxu0 %v2999
  %3573 = vmatmul.mubr.bf16.gmra.mrb[0].mxu0 %v2998
  %v3574 = vpop.f32.mrb[0].mxu0
  %v3575 = vadd.f32 %v3414, %v3574
  %v3576 = vpop.f32.mrb[0].mxu0
  %v3577 = vpop.f32.mrb[0].mxu0
  %v3578 = vadd.f32 %v3417, %v3577
  %v3579 = vpop.f32.mrb[0].mxu0
  %3580 = vmatprep.mubr.bf16.mxu0 %v3003
  %3581 = vmatmul.mubr.bf16.gmra.mrb[0].mxu0 %v3002
  %v3582 = vpop.f32.mrb[0].mxu0
  %v3583 = vadd.f32 %v3422, %v3582
  %v3584 = vpop.f32.mrb[0].mxu0
  %v3585 = vpop.f32.mrb[0].mxu0
  %v3586 = vadd.f32 %v3425, %v3585
  %v3587 = vpop.f32.mrb[0].mxu0
  %3588 = vdwg.mxu0
  %v3589 = vtanh.pop %v3463
  %v3590 = vtanh.pop %v3466
  %v3591 = vtanh.pop %v3471
  %v3592 = vtanh.pop %v3474
  %v3593 = vtanh.pop %v3479
  %v3594 = vtanh.pop %v3482
  %v3595 = vtanh.pop %v3487
  %v3596 = vtanh.pop %v3490
  %v3597 = vtanh.pop %v3495
  %v3598 = vtanh.pop %v3498
  %v3599 = vtanh.pop %v3503
  %v3600 = vtanh.pop %v3506
  %v3601 = vtanh.pop %v3511
  %v3602 = vtanh.pop %v3514
  %v3603 = vtanh.pop %v3519
  %v3604 = vtanh.pop %v3522
  %v3605 = vtanh.pop %v3527
  %v3606 = vtanh.pop %v3530
  %v3607 = vtanh.pop %v3535
  %v3608 = vtanh.pop %v3538
  %v3609 = vtanh.pop %v3543
  %v3610 = vtanh.pop %v3546
  %v3611 = vtanh.pop %v3551
  %v3612 = vtanh.pop %v3554
  %v3613 = vtanh.pop %v3559
  %v3614 = vtanh.pop %v3562
  %v3615 = vtanh.pop %v3567
  %v3616 = vtanh.pop %v3570
  %v3617 = vtanh.pop %v3575
  %v3618 = vtanh.pop %v3578
  %v3619 = vtanh.pop %v3583
  %v3620 = vtanh.pop %v3586
  %3621 = vst [vmem:[%s11] sm:$0xff] %v3589
  %3622 = vst [vmem:[%s11 + $0x8] sm:$0xff] %v3590
  %3623 = vst [vmem:[%s11 + $0x10] sm:$0xff] %v3591
  %3624 = vst [vmem:[%s11 + $0x18] sm:$0xff] %v3592
  %3625 = vst [vmem:[%s11 + $0x20] sm:$0xff] %v3593
  %3626 = vst [vmem:[%s11 + $0x28] sm:$0xff] %v3594
  %3627 = vst [vmem:[%s11 + $0x30] sm:$0xff] %v3595
  %3628 = vst [vmem:[%s11 + $0x38] sm:$0xff] %v3596
  %3629 = vst [vmem:[%s11 + $0x40] sm:$0xff] %v3597
  %3630 = vst [vmem:[%s11 + $0x48] sm:$0xff] %v3598
  %3631 = vst [vmem:[%s11 + $0x50] sm:$0xff] %v3599
  %3632 = vst [vmem:[%s11 + $0x58] sm:$0xff] %v3600
  %3633 = vst [vmem:[%s11 + $0x60] sm:$0xff] %v3601
  %3634 = vst [vmem:[%s11 + $0x68] sm:$0xff] %v3602
  %3635 = vst [vmem:[%s11 + $0x70] sm:$0xff] %v3603
  %3636 = vst [vmem:[%s11 + $0x78] sm:$0xff] %v3604
  %3637 = vst [vmem:[%s11 + $0x80] sm:$0xff] %v3605
  %3638 = vst [vmem:[%s11 + $0x88] sm:$0xff] %v3606
  %3639 = vst [vmem:[%s11 + $0x90] sm:$0xff] %v3607
  %3640 = vst [vmem:[%s11 + $0x98] sm:$0xff] %v3608
  %3641 = vst [vmem:[%s11 + $0xa0] sm:$0xff] %v3609
  %3642 = vst [vmem:[%s11 + $0xa8] sm:$0xff] %v3610
  %3643 = vst [vmem:[%s11 + $0xb0] sm:$0xff] %v3611
  %3644 = vst [vmem:[%s11 + $0xb8] sm:$0xff] %v3612
  %3645 = vst [vmem:[%s11 + $0xc0] sm:$0xff] %v3613
  %3646 = vst [vmem:[%s11 + $0xc8] sm:$0xff] %v3614
  %3647 = vst [vmem:[%s11 + $0xd0] sm:$0xff] %v3615
  %3648 = vst [vmem:[%s11 + $0xd8] sm:$0xff] %v3616
  %3649 = vst [vmem:[%s11 + $0xe0] sm:$0xff] %v3617
  %3650 = vst [vmem:[%s11 + $0xe8] sm:$0xff] %v3618
  %3651 = vst [vmem:[%s11 + $0xf0] sm:$0xff] %v3619
  %3652 = vst [vmem:[%s11 + $0xf8] sm:$0xff] %v3620
  // Predicated region
  $region46: #{generator_forward.1} parent=0 // pred_check
    _
  $region47: #{generator_forward.1} parent=0 // pred_check_branch
    %3654 = sbr.rel (0) target = $region49
  $region48: #{generator_forward.1} parent=0 // pred_region
    _
  $region49: #{generator_forward.1} parent=0 // pred_fallthru
    _
  // Predicated region
  $region50: #{generator_forward.1} parent=0 // pred_check
    _
  $region51: #{generator_forward.1} parent=0 // pred_check_branch
    %3656 = sbr.rel (0) target = $region53
  $region52: #{generator_forward.1} parent=0 // pred_region
    _
  $region53: #{generator_forward.1} parent=0 // pred_fallthru
    _

</llo_original>
